<compile_context>
chip_gen: v5e
topology: v5e:2x2
jax: 0.10.0
libtpu: 0.0.40
codegen_flags: <defaults>
</compile_context>

<pallas_src>
import math

import jax
import jax.numpy as jnp
from jax import lax
from jax.experimental import pallas as pl
from jax.experimental.pallas import tpu as pltpu


def _pair(v):
    if isinstance(v, (tuple, list)):
        assert len(v) == 2
        return tuple(int(i) for i in v)
    return (int(v),) * 2


def _round_up(x, m):
    return ((x + m - 1) // m) * m


def _cdiv(a, b):
    return -(-a // b)


def _make_tap_gemm_kernel(KH, KW, dh, dw, Wp, TH):
    """Per-(batch, row-block) kernel.

    Refs:
      sre/sim : (Cin, L)       padded-input slab (row block + halo), flattened (h, w)
      wre/wim : (T, Cout, Cin) per-tap weights
      bre/bim : (Cout, 1)      merlinth bias combos (f32)
      ore/oim : (Cout, Lt)     f32 dense (stride-1) outputs, Lt = TH * Wp
    """
    T = KH * KW
    Lt = TH * Wp

    def kernel(sre_ref, sim_ref, wre_ref, wim_ref, bre_ref, bim_ref,
               ore_ref, oim_ref):
        acc_re = None
        acc_im = None
        # Static unroll over taps: the gather is a VMEM-local shifted slice,
        # never an extra HBM pass.
        for t in range(T):
            kh, kw = divmod(t, KW)
            off = kh * dh * Wp + kw * dw
            s_re = sre_ref[:, off:off + Lt]          # (Cin, Lt)
            s_im = sim_ref[:, off:off + Lt]
            w_re = wre_ref[t]                        # (Cout, Cin)
            w_im = wim_ref[t]
            rr = jnp.dot(w_re, s_re, preferred_element_type=jnp.float32)
            ii = jnp.dot(w_im, s_im, preferred_element_type=jnp.float32)
            ri = jnp.dot(w_im, s_re, preferred_element_type=jnp.float32)
            ir = jnp.dot(w_re, s_im, preferred_element_type=jnp.float32)
            d_re = rr - ii
            d_im = ir + ri
            acc_re = d_re if acc_re is None else acc_re + d_re
            acc_im = d_im if acc_im is None else acc_im + d_im
        # merlinth bias semantics folded on the host: bre = b_re - b_im, bim = b_re + b_im
        ore_ref[...] = acc_re + bre_ref[...]
        oim_ref[...] = acc_im + bim_ref[...]

    return kernel


def complex_conv2d(x, weight, bias=None, stride=1, padding=0, dilation=1,
                   groups=1, padding_mode="zeros", use_bf16=True):
    """ComplexConv2d forward.

    x:      (N, Cin, H, W)        complex64
    weight: (Cout, Cin, KH, KW)   complex64
    bias:   (Cout,) complex64 or None
    returns (N, Cout, Hout, Wout) complex64
    """
    assert groups == 1, "TODO(synk): grouped complex conv not implemented"
    sh, sw = _pair(stride)
    dh, dw = _pair(dilation)

    N, Cin, H, W = x.shape
    Cout, Cin_w, KH, KW = weight.shape
    assert Cin_w == Cin

    # --- resolve padding (int / tuple / 'same' / 'valid') ---
    if isinstance(padding, str):
        if padding == "valid":
            pads = ((0, 0), (0, 0))
        elif padding == "same":
            assert sh == 1 and sw == 1, "padding='same' requires stride 1"
            th_, tw_ = dh * (KH - 1), dw * (KW - 1)
            pads = ((th_ // 2, th_ - th_ // 2), (tw_ // 2, tw_ - tw_ // 2))
        else:
            raise ValueError(f"bad padding string {padding!r}")
    else:
        ph, pw = _pair(padding)
        pads = ((ph, ph), (pw, pw))
    (ph0, ph1), (pw0, pw1) = pads

    Hp, Wp = H + ph0 + ph1, W + pw0 + pw1
    Hd, Wd = Hp - dh * (KH - 1), Wp - dw * (KW - 1)   # dense (stride-1) output dims
    assert Hd >= 1 and Wd >= 1, "kernel larger than padded input"
    Hout = (Hd - 1) // sh + 1
    Wout = (Wd - 1) // sw + 1

    pad_mode = {"zeros": "constant", "reflect": "reflect",
                "replicate": "edge", "circular": "wrap"}[padding_mode]

    op_dtype = jnp.bfloat16 if use_bf16 else jnp.float32
    isz = jnp.dtype(op_dtype).itemsize
    T = KH * KW

    # --- host prep: pad spatially, cast to operand dtype BEFORE any gather ---
    x_re = jnp.real(x).astype(jnp.float32)
    x_im = jnp.imag(x).astype(jnp.float32)
    spat_pad = ((0, 0), (0, 0), (ph0, ph1), (pw0, pw1))
    xp_re = jnp.pad(x_re, spat_pad, mode=pad_mode).astype(op_dtype)
    xp_im = jnp.pad(x_im, spat_pad, mode=pad_mode).astype(op_dtype)

    # --- choose the output-row tile TH from the VMEM budget ---
    try:
        vmem_cap = int(pltpu.get_tpu_info().vmem_capacity_bytes)
    except Exception:
        vmem_cap = 64 * 1024 * 1024            # conservative (v7x per-TC VMEM)
    budget = int(vmem_cap * 0.5)
    vmem_limit = int(min(vmem_cap * 0.8, vmem_cap - (8 << 20)))

    sub = 8 * (4 // isz)                        # sublane tile of the operand dtype
    cin_vm = _round_up(max(Cin, 1), sub)
    cout_vm = _round_up(max(Cout, 1), 8)
    # resident weights (lane-padded Cin -> 128) + biases, counted double-buffered
    fixed = (2 * T * cout_vm * 128 * isz * 2
             + 2 * 8 * 128 * 4 * 2
             + 2 * 2 * cin_vm * ((KH - 1) * dh * Wp + (KW - 1) * dw + 128) * isz
             + (2 << 20))
    per_row = (2 * 2 * cin_vm * Wp * isz        # slab planes x double buffer
               + 2 * 2 * cout_vm * Wp * 4       # output planes x double buffer
               + 4 * cout_vm * Wp * 4           # f32 accumulators + matmul temps
               + 2 * cin_vm * Wp * isz)         # tap-slice temporaries
    TH = int(max(1, min(Hd, (budget - fixed) // per_row)))
    TH = max(TH, _cdiv(Hd, 256))                # bound the number of row blocks
    nb = _cdiv(Hd, TH)
    if N * nb < 2 and Hd >= 2:                  # keep both TensorCores busy (v7x)
        TH = _cdiv(Hd, 2)
        nb = _cdiv(Hd, TH)

    TH_in = TH + (KH - 1) * dh
    Lt = TH * Wp
    L = _round_up(TH_in * Wp + (KW - 1) * dw, 128)

    # --- blocked slab gather (~1x input traffic + halo), flattened (h, w) ---
    flat_len = (nb - 1) * TH * Wp + L
    def to_blocks(a):                            # (N, Cin, Hp, Wp) -> (N, nb, Cin, L)
        flat = a.reshape(N, Cin, Hp * Wp)
        flat = jnp.pad(flat, ((0, 0), (0, 0), (0, flat_len - Hp * Wp)))
        return jnp.stack([flat[:, :, b * TH * Wp: b * TH * Wp + L]
                          for b in range(nb)], axis=1)
    xb_re = to_blocks(xp_re)
    xb_im = to_blocks(xp_im)

    # --- weights: (Cout, Cin, KH, KW) -> (T, Cout, Cin), tap-major ---
    w = jnp.transpose(weight, (2, 3, 0, 1)).reshape(T, Cout, Cin)
    w_re = jnp.real(w).astype(op_dtype)
    w_im = jnp.imag(w).astype(op_dtype)

    if bias is None:
        b_re = jnp.zeros((Cout,), jnp.float32)
        b_im = jnp.zeros((Cout,), jnp.float32)
    else:
        b_re = jnp.real(bias).astype(jnp.float32)
        b_im = jnp.imag(bias).astype(jnp.float32)
    # merlinth complex_conv bias semantics: re += (b_re - b_im), im += (b_re + b_im)
    b_re_eff = (b_re - b_im).reshape(Cout, 1)
    b_im_eff = (b_re + b_im).reshape(Cout, 1)

    kernel = _make_tap_gemm_kernel(KH, KW, dh, dw, Wp, TH)

    grid_spec = pltpu.PrefetchScalarGridSpec(
        num_scalar_prefetch=0,
        grid=(N, nb),
        in_specs=[
            pl.BlockSpec((None, None, Cin, L), lambda n, b: (n, b, 0, 0)),
            pl.BlockSpec((None, None, Cin, L), lambda n, b: (n, b, 0, 0)),
            pl.BlockSpec((T, Cout, Cin), lambda n, b: (0, 0, 0)),   # resident
            pl.BlockSpec((T, Cout, Cin), lambda n, b: (0, 0, 0)),   # resident
            pl.BlockSpec((Cout, 1), lambda n, b: (0, 0)),           # resident
            pl.BlockSpec((Cout, 1), lambda n, b: (0, 0)),           # resident
        ],
        out_specs=[
            pl.BlockSpec((None, None, Cout, Lt), lambda n, b: (n, b, 0, 0)),
            pl.BlockSpec((None, None, Cout, Lt), lambda n, b: (n, b, 0, 0)),
        ],
    )

    out_re, out_im = pl.pallas_call(
        kernel,
        out_shape=[jax.ShapeDtypeStruct((N, nb, Cout, Lt), jnp.float32),
                   jax.ShapeDtypeStruct((N, nb, Cout, Lt), jnp.float32)],
        grid_spec=grid_spec,
        compiler_params=pltpu.CompilerParams(
            dimension_semantics=("parallel", "parallel"),
            vmem_limit_bytes=vmem_limit),
    )(xb_re, xb_im, w_re, w_im, b_re_eff, b_im_eff)

    # --- epilogue: channel-major row blocks -> NCHW, crop, stride-subsample ---
    def finish(o):
        o = o.reshape(N, nb, Cout, TH, Wp)
        o = jnp.transpose(o, (0, 2, 1, 3, 4)).reshape(N, Cout, nb * TH, Wp)
        return o[:, :, :Hd:sh, :Wd:sw]

    return lax.complex(finish(out_re), finish(out_im))


def init_complex_conv2d_params(key, in_channels, out_channels, kernel_size,
                               groups=1, bias=True):
    """Deterministic synthetic init matching _ComplexConvNd shapes/bounds."""
    KH, KW = _pair(kernel_size)
    fan_in = (in_channels // groups) * KH * KW
    w_bound = 1.0 / math.sqrt(fan_in)   # kaiming_uniform with a=sqrt(5)
    b_bound = 1.0 / math.sqrt(fan_in)
    k1, k2, k3, k4 = jax.random.split(key, 4)
    wshape = (out_channels, in_channels // groups, KH, KW)
    weight = lax.complex(
        jax.random.uniform(k1, wshape, jnp.float32, -w_bound, w_bound),
        jax.random.uniform(k2, wshape, jnp.float32, -w_bound, w_bound))
    if bias:
        b = lax.complex(
            jax.random.uniform(k3, (out_channels,), jnp.float32, -b_bound, b_bound),
            jax.random.uniform(k4, (out_channels,), jnp.float32, -b_bound, b_bound))
    else:
        b = None
    return weight, b


if __name__ == "__main__":
    key = jax.random.PRNGKey(0)
    N, Cin, Cout = 2, 4, 8
    H = W = 16
    ksize, stride, padding = 3, 1, 1

    kx, kparam = jax.random.split(key)
    kxr, kxi = jax.random.split(kx)
    x = lax.complex(jax.random.normal(kxr, (N, Cin, H, W), jnp.float32),
                    jax.random.normal(kxi, (N, Cin, H, W), jnp.float32))
    weight, bias = init_complex_conv2d_params(kparam, Cin, Cout, ksize, bias=True)

    # Pure-JAX reference reproducing merlinth complex_conv(F.conv2d, ...) semantics.
    def reference(xc, wc, bc, s, p):
        def real_conv(a, k):
            return lax.conv_general_dilated(
                a, k, window_strides=(s, s), padding=[(p, p)] * 2,
                dimension_numbers=('NCHW', 'OIHW', 'NCHW'))
        xr, xi = jnp.real(xc), jnp.imag(xc)
        kr, ki = jnp.real(wc), jnp.imag(wc)
        br, bi = jnp.real(bc), jnp.imag(bc)
        bb = lambda b: b[None, :, None, None]
        return lax.complex(real_conv(xr, kr) - real_conv(xi, ki) + bb(br - bi),
                           real_conv(xi, kr) + real_conv(xr, ki) + bb(br + bi))

    ref = reference(x, weight, bias, stride, padding)

    # 1) strict check with f32 operands
    out32 = jax.block_until_ready(
        complex_conv2d(x, weight, bias, stride=stride, padding=padding,
                       use_bf16=False))
    assert out32.shape == (N, Cout, H, W), out32.shape
    assert out32.dtype == jnp.complex64
    err32 = float(jnp.max(jnp.abs(out32 - ref)))
    assert jnp.allclose(out32, ref, atol=1e-4, rtol=1e-4), f"f32 max_err={err32}"

    # 2) default bf16-operand path (f32 accumulation), looser tolerance
    out16 = jax.block_until_ready(
        complex_conv2d(x, weight, bias, stride=stride, padding=padding))
    err16 = float(jnp.max(jnp.abs(out16 - ref)))
    assert jnp.allclose(out16, ref, atol=1e-1, rtol=1e-1), f"bf16 max_err={err16}"

    # 3) strided case exercises the dense-compute + host-subsample fallback
    out_s2 = jax.block_until_ready(
        complex_conv2d(x, weight, bias, stride=2, padding=padding,
                       use_bf16=False))
    ref_s2 = reference(x, weight, bias, 2, padding)
    assert out_s2.shape == ref_s2.shape, (out_s2.shape, ref_s2.shape)
    err_s2 = float(jnp.max(jnp.abs(out_s2 - ref_s2)))
    assert jnp.allclose(out_s2, ref_s2, atol=1e-4, rtol=1e-4), f"s2 max_err={err_s2}"

    print("KERNEL_OK")
</pallas_src>

<mosaic_0001>
module attributes {stable_mosaic.version = 11 : i64} {
  func.func @kernel(%arg0: i32, %arg1: i32, %arg2: memref<1x1x4x384xf32, #tpu.memory_space<vmem>>, %arg3: memref<1x1x4x384xf32, #tpu.memory_space<vmem>>, %arg4: memref<9x8x4xf32, #tpu.memory_space<vmem>>, %arg5: memref<9x8x4xf32, #tpu.memory_space<vmem>>, %arg6: memref<8x1xf32, #tpu.memory_space<vmem>>, %arg7: memref<8x1xf32, #tpu.memory_space<vmem>>, %arg8: memref<1x1x8x288xf32, #tpu.memory_space<vmem>>, %arg9: memref<1x1x8x288xf32, #tpu.memory_space<vmem>>) attributes {dimension_semantics = [#tpu.dimension_semantics<parallel>, #tpu.dimension_semantics<parallel>], iteration_bounds = array<i64: 2, 1>, scalar_prefetch = 0 : i64, scratch_operands = 0 : i64, tpu.core_type = #tpu.core_type<tc>, window_params = [{transform_indices = @transform_0, window_bounds = array<i64: 1, 1, 4, 384>}, {transform_indices = @transform_1, window_bounds = array<i64: 1, 1, 4, 384>}, {pipeline_mode = #tpu.pipeline_mode<synchronous>, transform_indices = @transform_2, window_bounds = array<i64: 9, 8, 4>}, {pipeline_mode = #tpu.pipeline_mode<synchronous>, transform_indices = @transform_3, window_bounds = array<i64: 9, 8, 4>}, {pipeline_mode = #tpu.pipeline_mode<synchronous>, transform_indices = @transform_4, window_bounds = array<i64: 8, 1>}, {pipeline_mode = #tpu.pipeline_mode<synchronous>, transform_indices = @transform_5, window_bounds = array<i64: 8, 1>}, {transform_indices = @transform_6, window_bounds = array<i64: 1, 1, 8, 288>}, {transform_indices = @transform_7, window_bounds = array<i64: 1, 1, 8, 288>}]} {
    %c0 = arith.constant 0 : index
    %c0_0 = arith.constant 0 : index
    %c0_1 = arith.constant 0 : index
    %c0_2 = arith.constant 0 : index
    %0 = vector.load %arg2[%c0, %c0_0, %c0_1, %c0_2] : memref<1x1x4x384xf32, #tpu.memory_space<vmem>>, vector<1x1x4x288xf32>
    %1 = vector.shape_cast %0 : vector<1x1x4x288xf32> to vector<4x288xf32>
    %c0_3 = arith.constant 0 : index
    %c0_4 = arith.constant 0 : index
    %c0_5 = arith.constant 0 : index
    %c0_6 = arith.constant 0 : index
    %2 = vector.load %arg3[%c0_3, %c0_4, %c0_5, %c0_6] : memref<1x1x4x384xf32, #tpu.memory_space<vmem>>, vector<1x1x4x288xf32>
    %3 = vector.shape_cast %2 : vector<1x1x4x288xf32> to vector<4x288xf32>
    %c0_7 = arith.constant 0 : index
    %c0_8 = arith.constant 0 : index
    %c0_9 = arith.constant 0 : index
    %4 = vector.load %arg4[%c0_7, %c0_8, %c0_9] : memref<9x8x4xf32, #tpu.memory_space<vmem>>, vector<1x8x4xf32>
    %5 = vector.shape_cast %4 : vector<1x8x4xf32> to vector<8x4xf32>
    %c0_10 = arith.constant 0 : index
    %c0_11 = arith.constant 0 : index
    %c0_12 = arith.constant 0 : index
    %6 = vector.load %arg5[%c0_10, %c0_11, %c0_12] : memref<9x8x4xf32, #tpu.memory_space<vmem>>, vector<1x8x4xf32>
    %7 = vector.shape_cast %6 : vector<1x8x4xf32> to vector<8x4xf32>
    %cst = arith.constant dense<0.000000e+00> : vector<8x288xf32>
    %8 = tpu.matmul %5, %1, %cst {dimension_numbers = #tpu.dot_dimension_numbers<[1], [0], [0], [1], [0, 0, 1, 1], [], []>} : vector<8x4xf32>, vector<4x288xf32>, vector<8x288xf32> -> vector<8x288xf32>
    %cst_13 = arith.constant dense<0.000000e+00> : vector<8x288xf32>
    %9 = tpu.matmul %7, %3, %cst_13 {dimension_numbers = #tpu.dot_dimension_numbers<[1], [0], [0], [1], [0, 0, 1, 1], [], []>} : vector<8x4xf32>, vector<4x288xf32>, vector<8x288xf32> -> vector<8x288xf32>
    %cst_14 = arith.constant dense<0.000000e+00> : vector<8x288xf32>
    %10 = tpu.matmul %7, %1, %cst_14 {dimension_numbers = #tpu.dot_dimension_numbers<[1], [0], [0], [1], [0, 0, 1, 1], [], []>} : vector<8x4xf32>, vector<4x288xf32>, vector<8x288xf32> -> vector<8x288xf32>
    %cst_15 = arith.constant dense<0.000000e+00> : vector<8x288xf32>
    %11 = tpu.matmul %5, %3, %cst_15 {dimension_numbers = #tpu.dot_dimension_numbers<[1], [0], [0], [1], [0, 0, 1, 1], [], []>} : vector<8x4xf32>, vector<4x288xf32>, vector<8x288xf32> -> vector<8x288xf32>
    %12 = arith.subf %8, %9 : vector<8x288xf32>
    %13 = arith.addf %11, %10 : vector<8x288xf32>
    %c0_16 = arith.constant 0 : index
    %c0_17 = arith.constant 0 : index
    %c0_18 = arith.constant 0 : index
    %c1 = arith.constant 1 : index
    %14 = vector.load %arg2[%c0_16, %c0_17, %c0_18, %c1] : memref<1x1x4x384xf32, #tpu.memory_space<vmem>>, vector<1x1x4x288xf32>
    %15 = vector.shape_cast %14 : vector<1x1x4x288xf32> to vector<4x288xf32>
    %c0_19 = arith.constant 0 : index
    %c0_20 = arith.constant 0 : index
    %c0_21 = arith.constant 0 : index
    %c1_22 = arith.constant 1 : index
    %16 = vector.load %arg3[%c0_19, %c0_20, %c0_21, %c1_22] : memref<1x1x4x384xf32, #tpu.memory_space<vmem>>, vector<1x1x4x288xf32>
    %17 = vector.shape_cast %16 : vector<1x1x4x288xf32> to vector<4x288xf32>
    %c1_23 = arith.constant 1 : index
    %c0_24 = arith.constant 0 : index
    %c0_25 = arith.constant 0 : index
    %18 = vector.load %arg4[%c1_23, %c0_24, %c0_25] : memref<9x8x4xf32, #tpu.memory_space<vmem>>, vector<1x8x4xf32>
    %19 = vector.shape_cast %18 : vector<1x8x4xf32> to vector<8x4xf32>
    %c1_26 = arith.constant 1 : index
    %c0_27 = arith.constant 0 : index
    %c0_28 = arith.constant 0 : index
    %20 = vector.load %arg5[%c1_26, %c0_27, %c0_28] : memref<9x8x4xf32, #tpu.memory_space<vmem>>, vector<1x8x4xf32>
    %21 = vector.shape_cast %20 : vector<1x8x4xf32> to vector<8x4xf32>
    %cst_29 = arith.constant dense<0.000000e+00> : vector<8x288xf32>
    %22 = tpu.matmul %19, %15, %cst_29 {dimension_numbers = #tpu.dot_dimension_numbers<[1], [0], [0], [1], [0, 0, 1, 1], [], []>} : vector<8x4xf32>, vector<4x288xf32>, vector<8x288xf32> -> vector<8x288xf32>
    %cst_30 = arith.constant dense<0.000000e+00> : vector<8x288xf32>
    %23 = tpu.matmul %21, %17, %cst_30 {dimension_numbers = #tpu.dot_dimension_numbers<[1], [0], [0], [1], [0, 0, 1, 1], [], []>} : vector<8x4xf32>, vector<4x288xf32>, vector<8x288xf32> -> vector<8x288xf32>
    %cst_31 = arith.constant dense<0.000000e+00> : vector<8x288xf32>
    %24 = tpu.matmul %21, %15, %cst_31 {dimension_numbers = #tpu.dot_dimension_numbers<[1], [0], [0], [1], [0, 0, 1, 1], [], []>} : vector<8x4xf32>, vector<4x288xf32>, vector<8x288xf32> -> vector<8x288xf32>
    %cst_32 = arith.constant dense<0.000000e+00> : vector<8x288xf32>
    %25 = tpu.matmul %19, %17, %cst_32 {dimension_numbers = #tpu.dot_dimension_numbers<[1], [0], [0], [1], [0, 0, 1, 1], [], []>} : vector<8x4xf32>, vector<4x288xf32>, vector<8x288xf32> -> vector<8x288xf32>
    %26 = arith.subf %22, %23 : vector<8x288xf32>
    %27 = arith.addf %25, %24 : vector<8x288xf32>
    %28 = arith.addf %12, %26 : vector<8x288xf32>
    %29 = arith.addf %13, %27 : vector<8x288xf32>
    %c0_33 = arith.constant 0 : index
    %c0_34 = arith.constant 0 : index
    %c0_35 = arith.constant 0 : index
    %c2 = arith.constant 2 : index
    %30 = vector.load %arg2[%c0_33, %c0_34, %c0_35, %c2] : memref<1x1x4x384xf32, #tpu.memory_space<vmem>>, vector<1x1x4x288xf32>
    %31 = vector.shape_cast %30 : vector<1x1x4x288xf32> to vector<4x288xf32>
    %c0_36 = arith.constant 0 : index
    %c0_37 = arith.constant 0 : index
    %c0_38 = arith.constant 0 : index
    %c2_39 = arith.constant 2 : index
    %32 = vector.load %arg3[%c0_36, %c0_37, %c0_38, %c2_39] : memref<1x1x4x384xf32, #tpu.memory_space<vmem>>, vector<1x1x4x288xf32>
    %33 = vector.shape_cast %32 : vector<1x1x4x288xf32> to vector<4x288xf32>
    %c2_40 = arith.constant 2 : index
    %c0_41 = arith.constant 0 : index
    %c0_42 = arith.constant 0 : index
    %34 = vector.load %arg4[%c2_40, %c0_41, %c0_42] : memref<9x8x4xf32, #tpu.memory_space<vmem>>, vector<1x8x4xf32>
    %35 = vector.shape_cast %34 : vector<1x8x4xf32> to vector<8x4xf32>
    %c2_43 = arith.constant 2 : index
    %c0_44 = arith.constant 0 : index
    %c0_45 = arith.constant 0 : index
    %36 = vector.load %arg5[%c2_43, %c0_44, %c0_45] : memref<9x8x4xf32, #tpu.memory_space<vmem>>, vector<1x8x4xf32>
    %37 = vector.shape_cast %36 : vector<1x8x4xf32> to vector<8x4xf32>
    %cst_46 = arith.constant dense<0.000000e+00> : vector<8x288xf32>
    %38 = tpu.matmul %35, %31, %cst_46 {dimension_numbers = #tpu.dot_dimension_numbers<[1], [0], [0], [1], [0, 0, 1, 1], [], []>} : vector<8x4xf32>, vector<4x288xf32>, vector<8x288xf32> -> vector<8x288xf32>
    %cst_47 = arith.constant dense<0.000000e+00> : vector<8x288xf32>
    %39 = tpu.matmul %37, %33, %cst_47 {dimension_numbers = #tpu.dot_dimension_numbers<[1], [0], [0], [1], [0, 0, 1, 1], [], []>} : vector<8x4xf32>, vector<4x288xf32>, vector<8x288xf32> -> vector<8x288xf32>
    %cst_48 = arith.constant dense<0.000000e+00> : vector<8x288xf32>
    %40 = tpu.matmul %37, %31, %cst_48 {dimension_numbers = #tpu.dot_dimension_numbers<[1], [0], [0], [1], [0, 0, 1, 1], [], []>} : vector<8x4xf32>, vector<4x288xf32>, vector<8x288xf32> -> vector<8x288xf32>
    %cst_49 = arith.constant dense<0.000000e+00> : vector<8x288xf32>
    %41 = tpu.matmul %35, %33, %cst_49 {dimension_numbers = #tpu.dot_dimension_numbers<[1], [0], [0], [1], [0, 0, 1, 1], [], []>} : vector<8x4xf32>, vector<4x288xf32>, vector<8x288xf32> -> vector<8x288xf32>
    %42 = arith.subf %38, %39 : vector<8x288xf32>
    %43 = arith.addf %41, %40 : vector<8x288xf32>
    %44 = arith.addf %28, %42 : vector<8x288xf32>
    %45 = arith.addf %29, %43 : vector<8x288xf32>
    %c0_50 = arith.constant 0 : index
    %c0_51 = arith.constant 0 : index
    %c0_52 = arith.constant 0 : index
    %c18 = arith.constant 18 : index
    %46 = vector.load %arg2[%c0_50, %c0_51, %c0_52, %c18] : memref<1x1x4x384xf32, #tpu.memory_space<vmem>>, vector<1x1x4x288xf32>
    %47 = vector.shape_cast %46 : vector<1x1x4x288xf32> to vector<4x288xf32>
    %c0_53 = arith.constant 0 : index
    %c0_54 = arith.constant 0 : index
    %c0_55 = arith.constant 0 : index
    %c18_56 = arith.constant 18 : index
    %48 = vector.load %arg3[%c0_53, %c0_54, %c0_55, %c18_56] : memref<1x1x4x384xf32, #tpu.memory_space<vmem>>, vector<1x1x4x288xf32>
    %49 = vector.shape_cast %48 : vector<1x1x4x288xf32> to vector<4x288xf32>
    %c3 = arith.constant 3 : index
    %c0_57 = arith.constant 0 : index
    %c0_58 = arith.constant 0 : index
    %50 = vector.load %arg4[%c3, %c0_57, %c0_58] : memref<9x8x4xf32, #tpu.memory_space<vmem>>, vector<1x8x4xf32>
    %51 = vector.shape_cast %50 : vector<1x8x4xf32> to vector<8x4xf32>
    %c3_59 = arith.constant 3 : index
    %c0_60 = arith.constant 0 : index
    %c0_61 = arith.constant 0 : index
    %52 = vector.load %arg5[%c3_59, %c0_60, %c0_61] : memref<9x8x4xf32, #tpu.memory_space<vmem>>, vector<1x8x4xf32>
    %53 = vector.shape_cast %52 : vector<1x8x4xf32> to vector<8x4xf32>
    %cst_62 = arith.constant dense<0.000000e+00> : vector<8x288xf32>
    %54 = tpu.matmul %51, %47, %cst_62 {dimension_numbers = #tpu.dot_dimension_numbers<[1], [0], [0], [1], [0, 0, 1, 1], [], []>} : vector<8x4xf32>, vector<4x288xf32>, vector<8x288xf32> -> vector<8x288xf32>
    %cst_63 = arith.constant dense<0.000000e+00> : vector<8x288xf32>
    %55 = tpu.matmul %53, %49, %cst_63 {dimension_numbers = #tpu.dot_dimension_numbers<[1], [0], [0], [1], [0, 0, 1, 1], [], []>} : vector<8x4xf32>, vector<4x288xf32>, vector<8x288xf32> -> vector<8x288xf32>
    %cst_64 = arith.constant dense<0.000000e+00> : vector<8x288xf32>
    %56 = tpu.matmul %53, %47, %cst_64 {dimension_numbers = #tpu.dot_dimension_numbers<[1], [0], [0], [1], [0, 0, 1, 1], [], []>} : vector<8x4xf32>, vector<4x288xf32>, vector<8x288xf32> -> vector<8x288xf32>
    %cst_65 = arith.constant dense<0.000000e+00> : vector<8x288xf32>
    %57 = tpu.matmul %51, %49, %cst_65 {dimension_numbers = #tpu.dot_dimension_numbers<[1], [0], [0], [1], [0, 0, 1, 1], [], []>} : vector<8x4xf32>, vector<4x288xf32>, vector<8x288xf32> -> vector<8x288xf32>
    %58 = arith.subf %54, %55 : vector<8x288xf32>
    %59 = arith.addf %57, %56 : vector<8x288xf32>
    %60 = arith.addf %44, %58 : vector<8x288xf32>
    %61 = arith.addf %45, %59 : vector<8x288xf32>
    %c0_66 = arith.constant 0 : index
    %c0_67 = arith.constant 0 : index
    %c0_68 = arith.constant 0 : index
    %c19 = arith.constant 19 : index
    %62 = vector.load %arg2[%c0_66, %c0_67, %c0_68, %c19] : memref<1x1x4x384xf32, #tpu.memory_space<vmem>>, vector<1x1x4x288xf32>
    %63 = vector.shape_cast %62 : vector<1x1x4x288xf32> to vector<4x288xf32>
    %c0_69 = arith.constant 0 : index
    %c0_70 = arith.constant 0 : index
    %c0_71 = arith.constant 0 : index
    %c19_72 = arith.constant 19 : index
    %64 = vector.load %arg3[%c0_69, %c0_70, %c0_71, %c19_72] : memref<1x1x4x384xf32, #tpu.memory_space<vmem>>, vector<1x1x4x288xf32>
    %65 = vector.shape_cast %64 : vector<1x1x4x288xf32> to vector<4x288xf32>
    %c4 = arith.constant 4 : index
    %c0_73 = arith.constant 0 : index
    %c0_74 = arith.constant 0 : index
    %66 = vector.load %arg4[%c4, %c0_73, %c0_74] : memref<9x8x4xf32, #tpu.memory_space<vmem>>, vector<1x8x4xf32>
    %67 = vector.shape_cast %66 : vector<1x8x4xf32> to vector<8x4xf32>
    %c4_75 = arith.constant 4 : index
    %c0_76 = arith.constant 0 : index
    %c0_77 = arith.constant 0 : index
    %68 = vector.load %arg5[%c4_75, %c0_76, %c0_77] : memref<9x8x4xf32, #tpu.memory_space<vmem>>, vector<1x8x4xf32>
    %69 = vector.shape_cast %68 : vector<1x8x4xf32> to vector<8x4xf32>
    %cst_78 = arith.constant dense<0.000000e+00> : vector<8x288xf32>
    %70 = tpu.matmul %67, %63, %cst_78 {dimension_numbers = #tpu.dot_dimension_numbers<[1], [0], [0], [1], [0, 0, 1, 1], [], []>} : vector<8x4xf32>, vector<4x288xf32>, vector<8x288xf32> -> vector<8x288xf32>
    %cst_79 = arith.constant dense<0.000000e+00> : vector<8x288xf32>
    %71 = tpu.matmul %69, %65, %cst_79 {dimension_numbers = #tpu.dot_dimension_numbers<[1], [0], [0], [1], [0, 0, 1, 1], [], []>} : vector<8x4xf32>, vector<4x288xf32>, vector<8x288xf32> -> vector<8x288xf32>
    %cst_80 = arith.constant dense<0.000000e+00> : vector<8x288xf32>
    %72 = tpu.matmul %69, %63, %cst_80 {dimension_numbers = #tpu.dot_dimension_numbers<[1], [0], [0], [1], [0, 0, 1, 1], [], []>} : vector<8x4xf32>, vector<4x288xf32>, vector<8x288xf32> -> vector<8x288xf32>
    %cst_81 = arith.constant dense<0.000000e+00> : vector<8x288xf32>
    %73 = tpu.matmul %67, %65, %cst_81 {dimension_numbers = #tpu.dot_dimension_numbers<[1], [0], [0], [1], [0, 0, 1, 1], [], []>} : vector<8x4xf32>, vector<4x288xf32>, vector<8x288xf32> -> vector<8x288xf32>
    %74 = arith.subf %70, %71 : vector<8x288xf32>
    %75 = arith.addf %73, %72 : vector<8x288xf32>
    %76 = arith.addf %60, %74 : vector<8x288xf32>
    %77 = arith.addf %61, %75 : vector<8x288xf32>
    %c0_82 = arith.constant 0 : index
    %c0_83 = arith.constant 0 : index
    %c0_84 = arith.constant 0 : index
    %c20 = arith.constant 20 : index
    %78 = vector.load %arg2[%c0_82, %c0_83, %c0_84, %c20] : memref<1x1x4x384xf32, #tpu.memory_space<vmem>>, vector<1x1x4x288xf32>
    %79 = vector.shape_cast %78 : vector<1x1x4x288xf32> to vector<4x288xf32>
    %c0_85 = arith.constant 0 : index
    %c0_86 = arith.constant 0 : index
    %c0_87 = arith.constant 0 : index
    %c20_88 = arith.constant 20 : index
    %80 = vector.load %arg3[%c0_85, %c0_86, %c0_87, %c20_88] : memref<1x1x4x384xf32, #tpu.memory_space<vmem>>, vector<1x1x4x288xf32>
    %81 = vector.shape_cast %80 : vector<1x1x4x288xf32> to vector<4x288xf32>
    %c5 = arith.constant 5 : index
    %c0_89 = arith.constant 0 : index
    %c0_90 = arith.constant 0 : index
    %82 = vector.load %arg4[%c5, %c0_89, %c0_90] : memref<9x8x4xf32, #tpu.memory_space<vmem>>, vector<1x8x4xf32>
    %83 = vector.shape_cast %82 : vector<1x8x4xf32> to vector<8x4xf32>
    %c5_91 = arith.constant 5 : index
    %c0_92 = arith.constant 0 : index
    %c0_93 = arith.constant 0 : index
    %84 = vector.load %arg5[%c5_91, %c0_92, %c0_93] : memref<9x8x4xf32, #tpu.memory_space<vmem>>, vector<1x8x4xf32>
    %85 = vector.shape_cast %84 : vector<1x8x4xf32> to vector<8x4xf32>
    %cst_94 = arith.constant dense<0.000000e+00> : vector<8x288xf32>
    %86 = tpu.matmul %83, %79, %cst_94 {dimension_numbers = #tpu.dot_dimension_numbers<[1], [0], [0], [1], [0, 0, 1, 1], [], []>} : vector<8x4xf32>, vector<4x288xf32>, vector<8x288xf32> -> vector<8x288xf32>
    %cst_95 = arith.constant dense<0.000000e+00> : vector<8x288xf32>
    %87 = tpu.matmul %85, %81, %cst_95 {dimension_numbers = #tpu.dot_dimension_numbers<[1], [0], [0], [1], [0, 0, 1, 1], [], []>} : vector<8x4xf32>, vector<4x288xf32>, vector<8x288xf32> -> vector<8x288xf32>
    %cst_96 = arith.constant dense<0.000000e+00> : vector<8x288xf32>
    %88 = tpu.matmul %85, %79, %cst_96 {dimension_numbers = #tpu.dot_dimension_numbers<[1], [0], [0], [1], [0, 0, 1, 1], [], []>} : vector<8x4xf32>, vector<4x288xf32>, vector<8x288xf32> -> vector<8x288xf32>
    %cst_97 = arith.constant dense<0.000000e+00> : vector<8x288xf32>
    %89 = tpu.matmul %83, %81, %cst_97 {dimension_numbers = #tpu.dot_dimension_numbers<[1], [0], [0], [1], [0, 0, 1, 1], [], []>} : vector<8x4xf32>, vector<4x288xf32>, vector<8x288xf32> -> vector<8x288xf32>
    %90 = arith.subf %86, %87 : vector<8x288xf32>
    %91 = arith.addf %89, %88 : vector<8x288xf32>
    %92 = arith.addf %76, %90 : vector<8x288xf32>
    %93 = arith.addf %77, %91 : vector<8x288xf32>
    %c0_98 = arith.constant 0 : index
    %c0_99 = arith.constant 0 : index
    %c0_100 = arith.constant 0 : index
    %c36 = arith.constant 36 : index
    %94 = vector.load %arg2[%c0_98, %c0_99, %c0_100, %c36] : memref<1x1x4x384xf32, #tpu.memory_space<vmem>>, vector<1x1x4x288xf32>
    %95 = vector.shape_cast %94 : vector<1x1x4x288xf32> to vector<4x288xf32>
    %c0_101 = arith.constant 0 : index
    %c0_102 = arith.constant 0 : index
    %c0_103 = arith.constant 0 : index
    %c36_104 = arith.constant 36 : index
    %96 = vector.load %arg3[%c0_101, %c0_102, %c0_103, %c36_104] : memref<1x1x4x384xf32, #tpu.memory_space<vmem>>, vector<1x1x4x288xf32>
    %97 = vector.shape_cast %96 : vector<1x1x4x288xf32> to vector<4x288xf32>
    %c6 = arith.constant 6 : index
    %c0_105 = arith.constant 0 : index
    %c0_106 = arith.constant 0 : index
    %98 = vector.load %arg4[%c6, %c0_105, %c0_106] : memref<9x8x4xf32, #tpu.memory_space<vmem>>, vector<1x8x4xf32>
    %99 = vector.shape_cast %98 : vector<1x8x4xf32> to vector<8x4xf32>
    %c6_107 = arith.constant 6 : index
    %c0_108 = arith.constant 0 : index
    %c0_109 = arith.constant 0 : index
    %100 = vector.load %arg5[%c6_107, %c0_108, %c0_109] : memref<9x8x4xf32, #tpu.memory_space<vmem>>, vector<1x8x4xf32>
    %101 = vector.shape_cast %100 : vector<1x8x4xf32> to vector<8x4xf32>
    %cst_110 = arith.constant dense<0.000000e+00> : vector<8x288xf32>
    %102 = tpu.matmul %99, %95, %cst_110 {dimension_numbers = #tpu.dot_dimension_numbers<[1], [0], [0], [1], [0, 0, 1, 1], [], []>} : vector<8x4xf32>, vector<4x288xf32>, vector<8x288xf32> -> vector<8x288xf32>
    %cst_111 = arith.constant dense<0.000000e+00> : vector<8x288xf32>
    %103 = tpu.matmul %101, %97, %cst_111 {dimension_numbers = #tpu.dot_dimension_numbers<[1], [0], [0], [1], [0, 0, 1, 1], [], []>} : vector<8x4xf32>, vector<4x288xf32>, vector<8x288xf32> -> vector<8x288xf32>
    %cst_112 = arith.constant dense<0.000000e+00> : vector<8x288xf32>
    %104 = tpu.matmul %101, %95, %cst_112 {dimension_numbers = #tpu.dot_dimension_numbers<[1], [0], [0], [1], [0, 0, 1, 1], [], []>} : vector<8x4xf32>, vector<4x288xf32>, vector<8x288xf32> -> vector<8x288xf32>
    %cst_113 = arith.constant dense<0.000000e+00> : vector<8x288xf32>
    %105 = tpu.matmul %99, %97, %cst_113 {dimension_numbers = #tpu.dot_dimension_numbers<[1], [0], [0], [1], [0, 0, 1, 1], [], []>} : vector<8x4xf32>, vector<4x288xf32>, vector<8x288xf32> -> vector<8x288xf32>
    %106 = arith.subf %102, %103 : vector<8x288xf32>
    %107 = arith.addf %105, %104 : vector<8x288xf32>
    %108 = arith.addf %92, %106 : vector<8x288xf32>
    %109 = arith.addf %93, %107 : vector<8x288xf32>
    %c0_114 = arith.constant 0 : index
    %c0_115 = arith.constant 0 : index
    %c0_116 = arith.constant 0 : index
    %c37 = arith.constant 37 : index
    %110 = vector.load %arg2[%c0_114, %c0_115, %c0_116, %c37] : memref<1x1x4x384xf32, #tpu.memory_space<vmem>>, vector<1x1x4x288xf32>
    %111 = vector.shape_cast %110 : vector<1x1x4x288xf32> to vector<4x288xf32>
    %c0_117 = arith.constant 0 : index
    %c0_118 = arith.constant 0 : index
    %c0_119 = arith.constant 0 : index
    %c37_120 = arith.constant 37 : index
    %112 = vector.load %arg3[%c0_117, %c0_118, %c0_119, %c37_120] : memref<1x1x4x384xf32, #tpu.memory_space<vmem>>, vector<1x1x4x288xf32>
    %113 = vector.shape_cast %112 : vector<1x1x4x288xf32> to vector<4x288xf32>
    %c7 = arith.constant 7 : index
    %c0_121 = arith.constant 0 : index
    %c0_122 = arith.constant 0 : index
    %114 = vector.load %arg4[%c7, %c0_121, %c0_122] : memref<9x8x4xf32, #tpu.memory_space<vmem>>, vector<1x8x4xf32>
    %115 = vector.shape_cast %114 : vector<1x8x4xf32> to vector<8x4xf32>
    %c7_123 = arith.constant 7 : index
    %c0_124 = arith.constant 0 : index
    %c0_125 = arith.constant 0 : index
    %116 = vector.load %arg5[%c7_123, %c0_124, %c0_125] : memref<9x8x4xf32, #tpu.memory_space<vmem>>, vector<1x8x4xf32>
    %117 = vector.shape_cast %116 : vector<1x8x4xf32> to vector<8x4xf32>
    %cst_126 = arith.constant dense<0.000000e+00> : vector<8x288xf32>
    %118 = tpu.matmul %115, %111, %cst_126 {dimension_numbers = #tpu.dot_dimension_numbers<[1], [0], [0], [1], [0, 0, 1, 1], [], []>} : vector<8x4xf32>, vector<4x288xf32>, vector<8x288xf32> -> vector<8x288xf32>
    %cst_127 = arith.constant dense<0.000000e+00> : vector<8x288xf32>
    %119 = tpu.matmul %117, %113, %cst_127 {dimension_numbers = #tpu.dot_dimension_numbers<[1], [0], [0], [1], [0, 0, 1, 1], [], []>} : vector<8x4xf32>, vector<4x288xf32>, vector<8x288xf32> -> vector<8x288xf32>
    %cst_128 = arith.constant dense<0.000000e+00> : vector<8x288xf32>
    %120 = tpu.matmul %117, %111, %cst_128 {dimension_numbers = #tpu.dot_dimension_numbers<[1], [0], [0], [1], [0, 0, 1, 1], [], []>} : vector<8x4xf32>, vector<4x288xf32>, vector<8x288xf32> -> vector<8x288xf32>
    %cst_129 = arith.constant dense<0.000000e+00> : vector<8x288xf32>
    %121 = tpu.matmul %115, %113, %cst_129 {dimension_numbers = #tpu.dot_dimension_numbers<[1], [0], [0], [1], [0, 0, 1, 1], [], []>} : vector<8x4xf32>, vector<4x288xf32>, vector<8x288xf32> -> vector<8x288xf32>
    %122 = arith.subf %118, %119 : vector<8x288xf32>
    %123 = arith.addf %121, %120 : vector<8x288xf32>
    %124 = arith.addf %108, %122 : vector<8x288xf32>
    %125 = arith.addf %109, %123 : vector<8x288xf32>
    %c0_130 = arith.constant 0 : index
    %c0_131 = arith.constant 0 : index
    %c0_132 = arith.constant 0 : index
    %c38 = arith.constant 38 : index
    %126 = vector.load %arg2[%c0_130, %c0_131, %c0_132, %c38] : memref<1x1x4x384xf32, #tpu.memory_space<vmem>>, vector<1x1x4x288xf32>
    %127 = vector.shape_cast %126 : vector<1x1x4x288xf32> to vector<4x288xf32>
    %c0_133 = arith.constant 0 : index
    %c0_134 = arith.constant 0 : index
    %c0_135 = arith.constant 0 : index
    %c38_136 = arith.constant 38 : index
    %128 = vector.load %arg3[%c0_133, %c0_134, %c0_135, %c38_136] : memref<1x1x4x384xf32, #tpu.memory_space<vmem>>, vector<1x1x4x288xf32>
    %129 = vector.shape_cast %128 : vector<1x1x4x288xf32> to vector<4x288xf32>
    %c8 = arith.constant 8 : index
    %c0_137 = arith.constant 0 : index
    %c0_138 = arith.constant 0 : index
    %130 = vector.load %arg4[%c8, %c0_137, %c0_138] : memref<9x8x4xf32, #tpu.memory_space<vmem>>, vector<1x8x4xf32>
    %131 = vector.shape_cast %130 : vector<1x8x4xf32> to vector<8x4xf32>
    %c8_139 = arith.constant 8 : index
    %c0_140 = arith.constant 0 : index
    %c0_141 = arith.constant 0 : index
    %132 = vector.load %arg5[%c8_139, %c0_140, %c0_141] : memref<9x8x4xf32, #tpu.memory_space<vmem>>, vector<1x8x4xf32>
    %133 = vector.shape_cast %132 : vector<1x8x4xf32> to vector<8x4xf32>
    %cst_142 = arith.constant dense<0.000000e+00> : vector<8x288xf32>
    %134 = tpu.matmul %131, %127, %cst_142 {dimension_numbers = #tpu.dot_dimension_numbers<[1], [0], [0], [1], [0, 0, 1, 1], [], []>} : vector<8x4xf32>, vector<4x288xf32>, vector<8x288xf32> -> vector<8x288xf32>
    %cst_143 = arith.constant dense<0.000000e+00> : vector<8x288xf32>
    %135 = tpu.matmul %133, %129, %cst_143 {dimension_numbers = #tpu.dot_dimension_numbers<[1], [0], [0], [1], [0, 0, 1, 1], [], []>} : vector<8x4xf32>, vector<4x288xf32>, vector<8x288xf32> -> vector<8x288xf32>
    %cst_144 = arith.constant dense<0.000000e+00> : vector<8x288xf32>
    %136 = tpu.matmul %133, %127, %cst_144 {dimension_numbers = #tpu.dot_dimension_numbers<[1], [0], [0], [1], [0, 0, 1, 1], [], []>} : vector<8x4xf32>, vector<4x288xf32>, vector<8x288xf32> -> vector<8x288xf32>
    %cst_145 = arith.constant dense<0.000000e+00> : vector<8x288xf32>
    %137 = tpu.matmul %131, %129, %cst_145 {dimension_numbers = #tpu.dot_dimension_numbers<[1], [0], [0], [1], [0, 0, 1, 1], [], []>} : vector<8x4xf32>, vector<4x288xf32>, vector<8x288xf32> -> vector<8x288xf32>
    %138 = arith.subf %134, %135 : vector<8x288xf32>
    %139 = arith.addf %137, %136 : vector<8x288xf32>
    %140 = arith.addf %124, %138 : vector<8x288xf32>
    %141 = arith.addf %125, %139 : vector<8x288xf32>
    %c0_146 = arith.constant 0 : index
    %c0_147 = arith.constant 0 : index
    %142 = vector.load %arg6[%c0_146, %c0_147] : memref<8x1xf32, #tpu.memory_space<vmem>>, vector<8x1xf32>
    %143 = vector.broadcast %142 : vector<8x1xf32> to vector<8x288xf32>
    %144 = arith.addf %140, %143 : vector<8x288xf32>
    %c0_148 = arith.constant 0 : index
    %c0_149 = arith.constant 0 : index
    %c0_150 = arith.constant 0 : index
    %c0_151 = arith.constant 0 : index
    %145 = vector.load %arg8[%c0_148, %c0_149, %c0_150, %c0_151] : memref<1x1x8x288xf32, #tpu.memory_space<vmem>>, vector<1x1x8x288xf32>
    %146 = vector.shape_cast %145 : vector<1x1x8x288xf32> to vector<8x288xf32>
    %147 = vector.shape_cast %144 : vector<8x288xf32> to vector<1x1x8x288xf32>
    tpu.vector_store %arg8[%c0_148, %c0_149, %c0_150, %c0_151], %147 {strides = array<i32>} : memref<1x1x8x288xf32, #tpu.memory_space<vmem>>, vector<1x1x8x288xf32>,
    %c0_152 = arith.constant 0 : index
    %c0_153 = arith.constant 0 : index
    %148 = vector.load %arg7[%c0_152, %c0_153] : memref<8x1xf32, #tpu.memory_space<vmem>>, vector<8x1xf32>
    %149 = vector.broadcast %148 : vector<8x1xf32> to vector<8x288xf32>
    %150 = arith.addf %141, %149 : vector<8x288xf32>
    %c0_154 = arith.constant 0 : index
    %c0_155 = arith.constant 0 : index
    %c0_156 = arith.constant 0 : index
    %c0_157 = arith.constant 0 : index
    %151 = vector.load %arg9[%c0_154, %c0_155, %c0_156, %c0_157] : memref<1x1x8x288xf32, #tpu.memory_space<vmem>>, vector<1x1x8x288xf32>
    %152 = vector.shape_cast %151 : vector<1x1x8x288xf32> to vector<8x288xf32>
    %153 = vector.shape_cast %150 : vector<8x288xf32> to vector<1x1x8x288xf32>
    tpu.vector_store %arg9[%c0_154, %c0_155, %c0_156, %c0_157], %153 {strides = array<i32>} : memref<1x1x8x288xf32, #tpu.memory_space<vmem>>, vector<1x1x8x288xf32>,
    return
  }
  func.func @transform_0(%arg0: i32, %arg1: i32) -> (i32, i32, i32, i32) {
    %c0_i32 = arith.constant 0 : i32
    %c0_i32_0 = arith.constant 0 : i32
    %c0_i32_1 = arith.constant 0 : i32
    return %arg0, %arg1, %c0_i32, %c0_i32_0 : i32, i32, i32, i32
  }
  func.func @transform_1(%arg0: i32, %arg1: i32) -> (i32, i32, i32, i32) {
    %c0_i32 = arith.constant 0 : i32
    %c0_i32_0 = arith.constant 0 : i32
    %c0_i32_1 = arith.constant 0 : i32
    return %arg0, %arg1, %c0_i32, %c0_i32_0 : i32, i32, i32, i32
  }
  func.func @transform_2(%arg0: i32, %arg1: i32) -> (i32, i32, i32) {
    %c0_i32 = arith.constant 0 : i32
    %c0_i32_0 = arith.constant 0 : i32
    %c0_i32_1 = arith.constant 0 : i32
    %c0_i32_2 = arith.constant 0 : i32
    return %c0_i32, %c0_i32_0, %c0_i32_1 : i32, i32, i32
  }
  func.func @transform_3(%arg0: i32, %arg1: i32) -> (i32, i32, i32) {
    %c0_i32 = arith.constant 0 : i32
    %c0_i32_0 = arith.constant 0 : i32
    %c0_i32_1 = arith.constant 0 : i32
    %c0_i32_2 = arith.constant 0 : i32
    return %c0_i32, %c0_i32_0, %c0_i32_1 : i32, i32, i32
  }
  func.func @transform_4(%arg0: i32, %arg1: i32) -> (i32, i32) {
    %c0_i32 = arith.constant 0 : i32
    %c0_i32_0 = arith.constant 0 : i32
    %c0_i32_1 = arith.constant 0 : i32
    return %c0_i32, %c0_i32_0 : i32, i32
  }
  func.func @transform_5(%arg0: i32, %arg1: i32) -> (i32, i32) {
    %c0_i32 = arith.constant 0 : i32
    %c0_i32_0 = arith.constant 0 : i32
    %c0_i32_1 = arith.constant 0 : i32
    return %c0_i32, %c0_i32_0 : i32, i32
  }
  func.func @transform_6(%arg0: i32, %arg1: i32) -> (i32, i32, i32, i32) {
    %c0_i32 = arith.constant 0 : i32
    %c0_i32_0 = arith.constant 0 : i32
    %c0_i32_1 = arith.constant 0 : i32
    return %arg0, %arg1, %c0_i32, %c0_i32_0 : i32, i32, i32, i32
  }
  func.func @transform_7(%arg0: i32, %arg1: i32) -> (i32, i32, i32, i32) {
    %c0_i32 = arith.constant 0 : i32
    %c0_i32_0 = arith.constant 0 : i32
    %c0_i32_1 = arith.constant 0 : i32
    return %arg0, %arg1, %c0_i32, %c0_i32_0 : i32, i32, i32, i32
  }
}

</mosaic_0001>

<llo_original>
// kernel: tpu_custom_call.1
$region0: #{tpu_custom_call.1}
  #allocation0 [shape = 'u32[]', space=smem, size = 0x4, offset = 0x4, fixed_abs, tag = 'smem constant byte address 0x4 - core index']
  #allocation1 [shape = 'u32[72,128]{1,0:T(1,128)}', space=vmem, size = 0x9000, scoped, tag = 'internal scratch']
  %s0 = inlined_call_operand.vmem [shape: f32[2,1,4,384], index: 0, kind: input, shape index: {}]
  %s1 = inlined_call_operand.vmem [shape: f32[2,1,4,384], index: 1, kind: input, shape index: {}]
  %s2 = inlined_call_operand.vmem [shape: f32[9,8,4], index: 2, kind: input, shape index: {}]
  %s3 = inlined_call_operand.vmem [shape: f32[9,8,4], index: 3, kind: input, shape index: {}]
  %s4 = inlined_call_operand.vmem [shape: f32[8,1], index: 4, kind: input, shape index: {}]
  %s5 = inlined_call_operand.vmem [shape: f32[8,1], index: 5, kind: input, shape index: {}]
  %s6 = inlined_call_operand.hbm [shape: f32[2,1,8,288], index: 6, kind: output, shape index: {0}]
  %s7 = inlined_call_operand.hbm [shape: f32[2,1,8,288], index: 7, kind: output, shape index: {1}]
  %8 = xla_tuple %s6, %s7
  %s9 = sld [smem:[#allocation0]]
  $region65: #{tpu_custom_call.1} parent=0
    _
  %s11 = ssub.s32 1, %s9
  %s12 = scalar_select 0, %s11, %s9
  $region1: #{tpu_custom_call.1} parent=0
    #allocation2 [shape = 'u8[24576]{0}', space=vmem, size = 0x6000, scoped, tag = 'output window, operand 0']
    #allocation3 [shape = 's32[2]{0}', space=sflag, size = 0x8, scoped, tag = 'scoped memory for tpu_custom_call.1']
    #allocation4 [shape = 'u8[24576]{0}', space=vmem, size = 0x6000, scoped, tag = 'output window, operand 1']
    #allocation5 [shape = 's32[2]{0}', space=sflag, size = 0x8, scoped, tag = 'scoped memory for tpu_custom_call.1']
    %13 = vsyncpa [#allocation3], 0
    %s14 = scalar_lea.sflag [#allocation3], 1
    %15 = vsyncpa %s14, 0
    %16 = vsyncpa [#allocation5], 0
    %s17 = scalar_lea.sflag [#allocation5], 1
    %18 = vsyncpa %s17, 0
    loop: start=0, step=1, limit=4
    $region2: #{tpu_custom_call.1} parent=1 // loop_pre_header
      _
    $region3: #{tpu_custom_call.1} parent=1 // loop_header
      %s20 = sphi 0, %s24
      %p21 = scmp.ge.s32.totalorder %s20, 4
      %s27 = sphi 0, %s39
      %s28 = sphi 0, %s35
      %s29 = sphi 0, %s27
      %s30 = sphi 0, %s28
      %s31 = sphi 0, %s29
      %s32 = sphi 0, %s30
      %s44 = sphi 0, %s46
      %s47 = sphi 0, %s44
      %s48 = sphi 0, %s47
      %s64 = sphi 0, %s48
      %s72 = sphi 0, %s74
      %s75 = sphi 0, %s72
      %s76 = sphi 0, %s75
      %s92 = sphi 0, %s76
      %s96 = sphi 0, %s96
      %s98 = sphi 0, %s96
      %s99 = sphi 0, %s98
      %s113 = sphi 0, %s99
      %s117 = sphi 0, %s117
      %s119 = sphi 0, %s117
      %s120 = sphi 0, %s119
      %s134 = sphi 0, %s120
      %s138 = sphi 0, %s138
      %s140 = sphi 0, %s138
      %s141 = sphi 0, %s140
      %s155 = sphi 0, %s141
      %s159 = sphi 0, %s159
      %s161 = sphi 0, %s159
      %s162 = sphi 0, %s161
      %s176 = sphi 0, %s162
      %s184 = sphi 0, %s186
      %s187 = sphi 0, %s184
      %s188 = sphi 0, %s187
      %s204 = sphi 0, %s188
      %s212 = sphi 0, %s214
      %s215 = sphi 0, %s212
      %s216 = sphi 0, %s215
      %s232 = sphi 0, %s216
    $region4: #{tpu_custom_call.1} parent=1 // loop_header_branch
      %23 = sbr.rel (%p21) target = $region8
    $region5: #{tpu_custom_call.1} parent=1 // loop_body
      %s25 = ssub.s32 %s20, 1
      %s26 = ssub.s32 %s20, 2
      %s33 = sadd.s32 1, %s28
      %p34 = scmp.ge.s32.totalorder %s33, 1
      %s35 = scalar_select %p34, 0, %s33
      %s36 = sadd.s32 1, %s27
      %s37 = scalar_select %p34, %s36, %s27
      %p38 = scmp.ge.s32.totalorder %s37, 2
      %s39 = scalar_select %p38, 0, %s37
      %s40 = ssub.s32 %s27, %s39
      %s41 = ssub.s32 %s28, %s35
      %s42 = sor.u32 %s40, %s41
      %p43 = scmp.eq.s32.totalorder %s42, 0
      %s45 = sadd.s32 %s44, 1
      %s46 = scalar_select %p43, %s44, %s45
      %p49 = pneg %p43
      %p50 = scmp.eq.s32.totalorder %s20, 1
      %p51 = por %p49, %p50
      %p52 = scmp.ne.s32.totalorder %s44, %s47
      %p53 = scmp.eq.s32.totalorder %s20, 0
      %p54 = por %p52, %p53
      %p55 = scmp.ne.s32.totalorder %s44, %s47
      %p56 = scmp.eq.s32.totalorder %s25, 1
      %p57 = por %p55, %p56
      %p58 = scmp.ne.s32.totalorder %s47, %s48
      %p59 = scmp.eq.s32.totalorder %s25, 0
      %p60 = por %p58, %p59
      %p61 = scmp.ne.s32.totalorder %s47, %s48
      %p62 = scmp.eq.s32.totalorder %s26, 1
      %p63 = por %p61, %p62
      %p65 = scmp.ne.s32.totalorder %s48, %s64
      %p66 = scmp.eq.s32.totalorder %s26, 0
      %p67 = por %p65, %p66
      %s68 = ssub.s32 %s27, %s39
      %s69 = ssub.s32 %s28, %s35
      %s70 = sor.u32 %s68, %s69
      %p71 = scmp.eq.s32.totalorder %s70, 0
      %s73 = sadd.s32 %s72, 1
      %s74 = scalar_select %p71, %s72, %s73
      %p77 = pneg %p71
      %p78 = scmp.eq.s32.totalorder %s20, 1
      %p79 = por %p77, %p78
      %p80 = scmp.ne.s32.totalorder %s72, %s75
      %p81 = scmp.eq.s32.totalorder %s20, 0
      %p82 = por %p80, %p81
      %p83 = scmp.ne.s32.totalorder %s72, %s75
      %p84 = scmp.eq.s32.totalorder %s25, 1
      %p85 = por %p83, %p84
      %p86 = scmp.ne.s32.totalorder %s75, %s76
      %p87 = scmp.eq.s32.totalorder %s25, 0
      %p88 = por %p86, %p87
      %p89 = scmp.ne.s32.totalorder %s75, %s76
      %p90 = scmp.eq.s32.totalorder %s26, 1
      %p91 = por %p89, %p90
      %p93 = scmp.ne.s32.totalorder %s76, %s92
      %p94 = scmp.eq.s32.totalorder %s26, 0
      %p95 = por %p93, %p94
      %s97 = sadd.s32 %s96, 1
      %p100 = scmp.eq.s32.totalorder %s20, 1
      %p101 = scmp.ne.s32.totalorder %s96, %s98
      %p102 = scmp.eq.s32.totalorder %s20, 0
      %p103 = por %p101, %p102
      %p104 = scmp.ne.s32.totalorder %s96, %s98
      %p105 = scmp.eq.s32.totalorder %s25, 1
      %p106 = por %p104, %p105
      %p107 = scmp.ne.s32.totalorder %s98, %s99
      %p108 = scmp.eq.s32.totalorder %s25, 0
      %p109 = por %p107, %p108
      %p110 = scmp.ne.s32.totalorder %s98, %s99
      %p111 = scmp.eq.s32.totalorder %s26, 1
      %p112 = por %p110, %p111
      %p114 = scmp.ne.s32.totalorder %s99, %s113
      %p115 = scmp.eq.s32.totalorder %s26, 0
      %p116 = por %p114, %p115
      %s118 = sadd.s32 %s117, 1
      %p121 = scmp.eq.s32.totalorder %s20, 1
      %p122 = scmp.ne.s32.totalorder %s117, %s119
      %p123 = scmp.eq.s32.totalorder %s20, 0
      %p124 = por %p122, %p123
      %p125 = scmp.ne.s32.totalorder %s117, %s119
      %p126 = scmp.eq.s32.totalorder %s25, 1
      %p127 = por %p125, %p126
      %p128 = scmp.ne.s32.totalorder %s119, %s120
      %p129 = scmp.eq.s32.totalorder %s25, 0
      %p130 = por %p128, %p129
      %p131 = scmp.ne.s32.totalorder %s119, %s120
      %p132 = scmp.eq.s32.totalorder %s26, 1
      %p133 = por %p131, %p132
      %p135 = scmp.ne.s32.totalorder %s120, %s134
      %p136 = scmp.eq.s32.totalorder %s26, 0
      %p137 = por %p135, %p136
      %s139 = sadd.s32 %s138, 1
      %p142 = scmp.eq.s32.totalorder %s20, 1
      %p143 = scmp.ne.s32.totalorder %s138, %s140
      %p144 = scmp.eq.s32.totalorder %s20, 0
      %p145 = por %p143, %p144
      %p146 = scmp.ne.s32.totalorder %s138, %s140
      %p147 = scmp.eq.s32.totalorder %s25, 1
      %p148 = por %p146, %p147
      %p149 = scmp.ne.s32.totalorder %s140, %s141
      %p150 = scmp.eq.s32.totalorder %s25, 0
      %p151 = por %p149, %p150
      %p152 = scmp.ne.s32.totalorder %s140, %s141
      %p153 = scmp.eq.s32.totalorder %s26, 1
      %p154 = por %p152, %p153
      %p156 = scmp.ne.s32.totalorder %s141, %s155
      %p157 = scmp.eq.s32.totalorder %s26, 0
      %p158 = por %p156, %p157
      %s160 = sadd.s32 %s159, 1
      %p163 = scmp.eq.s32.totalorder %s20, 1
      %p164 = scmp.ne.s32.totalorder %s159, %s161
      %p165 = scmp.eq.s32.totalorder %s20, 0
      %p166 = por %p164, %p165
      %p167 = scmp.ne.s32.totalorder %s159, %s161
      %p168 = scmp.eq.s32.totalorder %s25, 1
      %p169 = por %p167, %p168
      %p170 = scmp.ne.s32.totalorder %s161, %s162
      %p171 = scmp.eq.s32.totalorder %s25, 0
      %p172 = por %p170, %p171
      %p173 = scmp.ne.s32.totalorder %s161, %s162
      %p174 = scmp.eq.s32.totalorder %s26, 1
      %p175 = por %p173, %p174
      %p177 = scmp.ne.s32.totalorder %s162, %s176
      %p178 = scmp.eq.s32.totalorder %s26, 0
      %p179 = por %p177, %p178
      %s180 = ssub.s32 %s27, %s39
      %s181 = ssub.s32 %s28, %s35
      %s182 = sor.u32 %s180, %s181
      %p183 = scmp.eq.s32.totalorder %s182, 0
      %s185 = sadd.s32 %s184, 1
      %s186 = scalar_select %p183, %s184, %s185
      %p189 = pneg %p183
      %p190 = scmp.eq.s32.totalorder %s20, 1
      %p191 = por %p189, %p190
      %p192 = scmp.ne.s32.totalorder %s184, %s187
      %p193 = scmp.eq.s32.totalorder %s20, 0
      %p194 = por %p192, %p193
      %p195 = scmp.ne.s32.totalorder %s184, %s187
      %p196 = scmp.eq.s32.totalorder %s25, 1
      %p197 = por %p195, %p196
      %p198 = scmp.ne.s32.totalorder %s187, %s188
      %p199 = scmp.eq.s32.totalorder %s25, 0
      %p200 = por %p198, %p199
      %p201 = scmp.ne.s32.totalorder %s187, %s188
      %p202 = scmp.eq.s32.totalorder %s26, 1
      %p203 = por %p201, %p202
      %p205 = scmp.ne.s32.totalorder %s188, %s204
      %p206 = scmp.eq.s32.totalorder %s26, 0
      %p207 = por %p205, %p206
      %s208 = ssub.s32 %s27, %s39
      %s209 = ssub.s32 %s28, %s35
      %s210 = sor.u32 %s208, %s209
      %p211 = scmp.eq.s32.totalorder %s210, 0
      %s213 = sadd.s32 %s212, 1
      %s214 = scalar_select %p211, %s212, %s213
      %p217 = pneg %p211
      %p218 = scmp.eq.s32.totalorder %s20, 1
      %p219 = por %p217, %p218
      %p220 = scmp.ne.s32.totalorder %s212, %s215
      %p221 = scmp.eq.s32.totalorder %s20, 0
      %p222 = por %p220, %p221
      %p223 = scmp.ne.s32.totalorder %s212, %s215
      %p224 = scmp.eq.s32.totalorder %s25, 1
      %p225 = por %p223, %p224
      %p226 = scmp.ne.s32.totalorder %s215, %s216
      %p227 = scmp.eq.s32.totalorder %s25, 0
      %p228 = por %p226, %p227
      %p229 = scmp.ne.s32.totalorder %s215, %s216
      %p230 = scmp.eq.s32.totalorder %s26, 1
      %p231 = por %p229, %p230
      %p233 = scmp.ne.s32.totalorder %s216, %s232
      %p234 = scmp.eq.s32.totalorder %s26, 0
      %p235 = por %p233, %p234
      %p236 = scmp.le.s32.totalorder 1, %s20
      %p237 = scmp.lt.s32.totalorder %s20, 3
      %p238 = pnand %p236, %p237
      %p239 = pneg %p238
      // Predicated region
      $region9: #{tpu_custom_call.1} parent=5 // pred_check
        _
      $region10: #{tpu_custom_call.1} parent=5 // pred_check_branch
        %241 = sbr.rel (%p238) target = $region12
      $region11: #{tpu_custom_call.1} parent=5 // pred_region
        %s242 = ssub.s32 %s20, 1
        // Predicated region
        $region13: #{tpu_custom_call.1} parent=11 // pred_check
          %p243 = pneg %p109
        $region14: #{tpu_custom_call.1} parent=11 // pred_check_branch
          %245 = sbr.rel (%p243) target = $region16
        $region15: #{tpu_custom_call.1} parent=11 // pred_region
          _
        $region16: #{tpu_custom_call.1} parent=11 // pred_fallthru
          _
        // Predicated region
        $region17: #{tpu_custom_call.1} parent=11 // pred_check
          %p246 = pneg %p130
        $region18: #{tpu_custom_call.1} parent=11 // pred_check_branch
          %248 = sbr.rel (%p246) target = $region20
        $region19: #{tpu_custom_call.1} parent=11 // pred_region
          _
        $region20: #{tpu_custom_call.1} parent=11 // pred_fallthru
          _
        // Predicated region
        $region21: #{tpu_custom_call.1} parent=11 // pred_check
          %p249 = pneg %p151
        $region22: #{tpu_custom_call.1} parent=11 // pred_check_branch
          %251 = sbr.rel (%p249) target = $region24
        $region23: #{tpu_custom_call.1} parent=11 // pred_region
          _
        $region24: #{tpu_custom_call.1} parent=11 // pred_fallthru
          _
        // Predicated region
        $region25: #{tpu_custom_call.1} parent=11 // pred_check
          %p252 = pneg %p172
        $region26: #{tpu_custom_call.1} parent=11 // pred_check_branch
          %254 = sbr.rel (%p252) target = $region28
        $region27: #{tpu_custom_call.1} parent=11 // pred_region
          _
        $region28: #{tpu_custom_call.1} parent=11 // pred_fallthru
          _
      $region12: #{tpu_custom_call.1} parent=5 // pred_fallthru
        _
      %p255 = scmp.lt.s32.totalorder %s20, 2
      // Predicated region
      $region29: #{tpu_custom_call.1} parent=5 // pred_check
        %p256 = pneg %p255
      $region30: #{tpu_custom_call.1} parent=5 // pred_check_branch
        %258 = sbr.rel (%p256) target = $region32
      $region31: #{tpu_custom_call.1} parent=5 // pred_region
        // Predicated region
        $region33: #{tpu_custom_call.1} parent=31 // pred_check
          %p259 = pneg %p54
        $region34: #{tpu_custom_call.1} parent=31 // pred_check_branch
          %261 = sbr.rel (%p259) target = $region36
        $region35: #{tpu_custom_call.1} parent=31 // pred_region
          %p262 = scmp.lt.s32.totalorder %s27, 1
          %s263 = scalar_select %p262, %s27, 1
          %p264 = scmp.lt.s32.totalorder %s28, 0
          %s265 = scalar_select %p264, %s28, 0
          %s266 = smul.addr %s265, 3
          %s267 = smul.addr %s263, 3
          %s268 = sadd.s32 %s266, %s267
          %s269 = smul.addr %s268, 4
          %s270 = scalar_lea.vmem %s0, %s269
        $region36: #{tpu_custom_call.1} parent=31 // pred_fallthru
          _
        // Predicated region
        $region37: #{tpu_custom_call.1} parent=31 // pred_check
          %p271 = pneg %p82
        $region38: #{tpu_custom_call.1} parent=31 // pred_check_branch
          %273 = sbr.rel (%p271) target = $region40
        $region39: #{tpu_custom_call.1} parent=31 // pred_region
          %p274 = scmp.lt.s32.totalorder %s27, 1
          %s275 = scalar_select %p274, %s27, 1
          %p276 = scmp.lt.s32.totalorder %s28, 0
          %s277 = scalar_select %p276, %s28, 0
          %s278 = smul.addr %s277, 3
          %s279 = smul.addr %s275, 3
          %s280 = sadd.s32 %s278, %s279
          %s281 = smul.addr %s280, 4
          %s282 = scalar_lea.vmem %s1, %s281
        $region40: #{tpu_custom_call.1} parent=31 // pred_fallthru
          _
      $region32: #{tpu_custom_call.1} parent=5 // pred_fallthru
        _
      %p283 = scmp.le.s32.totalorder 1, %s20
      %p284 = scmp.lt.s32.totalorder %s20, 3
      %p285 = pnand %p283, %p284
      %p286 = pneg %p285
      // Predicated region
      $region41: #{tpu_custom_call.1} parent=5 // pred_check
        _
      $region42: #{tpu_custom_call.1} parent=5 // pred_check_branch
        %288 = sbr.rel (%p285) target = $region44
      $region43: #{tpu_custom_call.1} parent=5 // pred_region
        %s289 = ssub.s32 %s20, 1
        %p290 = scmp.lt.s32.totalorder %s29, 1
        %s291 = scalar_select %p290, %s29, 1
        %p292 = scmp.lt.s32.totalorder %s30, 0
        %s293 = scalar_select %p292, %s30, 0
        %s294 = smul.addr %s293, 3
        %s295 = smul.addr %s291, 3
        %s296 = sadd.s32 %s294, %s295
        %s297 = smul.addr %s296, 4
        %s298 = scalar_lea.vmem %s0, %s297
        %p299 = pneg %p60
        %p300 = pneg %p57
        %p301 = scmp.lt.s32.totalorder %s29, 1
        %s302 = scalar_select %p301, %s29, 1
        %p303 = scmp.lt.s32.totalorder %s30, 0
        %s304 = scalar_select %p303, %s30, 0
        %s305 = smul.addr %s304, 3
        %s306 = smul.addr %s302, 3
        %s307 = sadd.s32 %s305, %s306
        %s308 = smul.addr %s307, 4
        %s309 = scalar_lea.vmem %s1, %s308
        %p310 = pneg %p88
        %p311 = pneg %p85
        %p312 = pneg %p109
        %p313 = pneg %p106
        %p314 = pneg %p130
        %p315 = pneg %p127
        %p316 = pneg %p151
        %p317 = pneg %p148
        %p318 = pneg %p172
        %p319 = pneg %p169
        %p320 = pneg %p200
        %p321 = pneg %p197
        %s322 = sand.u32 %s187, 1
        %s323 = scalar_lea.sflag [#allocation3], %s322
        %s324 = sand.u32 %s187, 1
        %s325 = smul.addr %s324, 24
        %s326 = scalar_lea.vmem [#allocation2], %s325
        %p327 = pneg %p228
        %p328 = pneg %p225
        %s329 = sand.u32 %s215, 1
        %s330 = scalar_lea.sflag [#allocation5], %s329
        %s331 = sand.u32 %s215, 1
        %s332 = smul.addr %s331, 24
        %s333 = scalar_lea.vmem [#allocation4], %s332
        %p334 = scmp.lt.s32.totalorder %s29, 1
        %s335 = scalar_select %p334, %s29, 1
        %p336 = scmp.lt.s32.totalorder %s30, 0
        %s337 = scalar_select %p336, %s30, 0
        %s338 = smul.addr %s337, 3
        %s339 = smul.addr %s335, 3
        %s340 = sadd.s32 %s338, %s339
        %s341 = smul.addr %s340, 4
        %s342 = scalar_lea.vmem %s0, %s341
        %p343 = scmp.lt.s32.totalorder %s29, 1
        %s344 = scalar_select %p343, %s29, 1
        %p345 = scmp.lt.s32.totalorder %s30, 0
        %s346 = scalar_select %p345, %s30, 0
        %s347 = smul.addr %s346, 3
        %s348 = smul.addr %s344, 3
        %s349 = sadd.s32 %s347, %s348
        %s350 = smul.addr %s349, 4
        %s351 = scalar_lea.vmem %s1, %s350
        %v352 = vld [vmem:[%s342] sm:$0xff]
        %v353 = vld [vmem:[%s342 + $0x8] sm:$0xf]
        %v354 = vld [vmem:[%s351] sm:$0xff]
        %v355 = vld [vmem:[%s351 + $0x8] sm:$0xf]
        %v356 = vld [vmem:[%s2] sm:$0xff]
        %v357 = vld [vmem:[%s3] sm:$0xff]
        %360 = vst [vmem:[#allocation1] ss:$2 sm:$0xff] %v352
        %s361 = scalar_lea.vmem [#allocation1], 16
        %362 = vst [vmem:[%s361] ss:$2 sm:$0xff] %v353
        %v363 = vld.sshfl [vmem:[#allocation1] sm:$0xff pattern:$0x75316420]
        %v364 = vld.sshfl [vmem:[#allocation1 + $0x8] sm:$0xff pattern:$0x75316420]
        %v365 = vld.sshfl [vmem:[#allocation1 + $0x10] sm:$0xff pattern:$0x75316420]
        %vm366 = vcmask 31744
        %v368 = vsel %vm366, %v356, 0
        %vm370 = vcmask 1043456
        %v371 = vsel %vm370, %v363, 0
        %v373 = vsel %vm370, %v364, 0
        %v375 = vsel %vm370, %v365, 0
        %377 = vmatpush.msra.mxu0 0.0
        %378 = vmatpush.msra.mxu0 0.0
        %379 = vmatpush.msra.mxu0 0.0
        %380 = vmatpush.msra.mxu0 0.0
        %381 = vmatpush.msra.mxu0 0.0
        %382 = vmatpush.msra.mxu0 0.0
        %383 = vmatpush.msra.mxu0 0.0
        %384 = vmatpush.msra.mxu0 0.0
        %385 = vmatpush.msra.mxu0 0.0
        %386 = vmatpush.msra.mxu0 0.0
        %387 = vmatpush.msra.mxu0 0.0
        %388 = vmatpush.msra.mxu0 0.0
        %389 = vmatpush.msra.mxu0 0.0
        %390 = vmatpush.msra.mxu0 0.0
        %391 = vmatpush.msra.mxu0 0.0
        %392 = vmatpush.msra.mxu0 %v371
        %393 = vmatmul.f32.gmra.mxu0 %v368
        %v394 = vpop.f32.mrf.mxu0
        %v395 = vadd.f32 0.0, %v394
        %396 = vdwg.mxu0
        %397 = vmatpush.msra.mxu0 0.0
        %398 = vmatpush.msra.mxu0 0.0
        %399 = vmatpush.msra.mxu0 0.0
        %400 = vmatpush.msra.mxu0 0.0
        %401 = vmatpush.msra.mxu0 0.0
        %402 = vmatpush.msra.mxu0 0.0
        %403 = vmatpush.msra.mxu0 0.0
        %404 = vmatpush.msra.mxu0 0.0
        %405 = vmatpush.msra.mxu0 0.0
        %406 = vmatpush.msra.mxu0 0.0
        %407 = vmatpush.msra.mxu0 0.0
        %408 = vmatpush.msra.mxu0 0.0
        %409 = vmatpush.msra.mxu0 0.0
        %410 = vmatpush.msra.mxu0 0.0
        %411 = vmatpush.msra.mxu0 0.0
        %412 = vmatpush.msra.mxu0 %v373
        %413 = vmatmul.f32.gmra.mxu0 %v368
        %v414 = vpop.f32.mrf.mxu0
        %v415 = vadd.f32 0.0, %v414
        %416 = vdwg.mxu0
        %417 = vmatpush.msra.mxu0 0.0
        %418 = vmatpush.msra.mxu0 0.0
        %419 = vmatpush.msra.mxu0 0.0
        %420 = vmatpush.msra.mxu0 0.0
        %421 = vmatpush.msra.mxu0 0.0
        %422 = vmatpush.msra.mxu0 0.0
        %423 = vmatpush.msra.mxu0 0.0
        %424 = vmatpush.msra.mxu0 0.0
        %425 = vmatpush.msra.mxu0 0.0
        %426 = vmatpush.msra.mxu0 0.0
        %427 = vmatpush.msra.mxu0 0.0
        %428 = vmatpush.msra.mxu0 0.0
        %429 = vmatpush.msra.mxu0 0.0
        %430 = vmatpush.msra.mxu0 0.0
        %431 = vmatpush.msra.mxu0 0.0
        %432 = vmatpush.msra.mxu0 %v375
        %433 = vmatmul.f32.gmra.mxu0 %v368
        %v434 = vpop.f32.mrf.mxu0
        %v435 = vadd.f32 0.0, %v434
        %436 = vdwg.mxu0
        %439 = vst [vmem:[#allocation1] ss:$2 sm:$0xff] %v354
        %s440 = scalar_lea.vmem [#allocation1], 16
        %441 = vst [vmem:[%s440] ss:$2 sm:$0xff] %v355
        %v442 = vld.sshfl [vmem:[#allocation1] sm:$0xff pattern:$0x75316420]
        %v443 = vld.sshfl [vmem:[#allocation1 + $0x8] sm:$0xff pattern:$0x75316420]
        %v444 = vld.sshfl [vmem:[#allocation1 + $0x10] sm:$0xff pattern:$0x75316420]
        %v446 = vsel %vm366, %v357, 0
        %v448 = vsel %vm370, %v442, 0
        %v450 = vsel %vm370, %v443, 0
        %v452 = vsel %vm370, %v444, 0
        %454 = vmatpush.msra.mxu0 0.0
        %455 = vmatpush.msra.mxu0 0.0
        %456 = vmatpush.msra.mxu0 0.0
        %457 = vmatpush.msra.mxu0 0.0
        %458 = vmatpush.msra.mxu0 0.0
        %459 = vmatpush.msra.mxu0 0.0
        %460 = vmatpush.msra.mxu0 0.0
        %461 = vmatpush.msra.mxu0 0.0
        %462 = vmatpush.msra.mxu0 0.0
        %463 = vmatpush.msra.mxu0 0.0
        %464 = vmatpush.msra.mxu0 0.0
        %465 = vmatpush.msra.mxu0 0.0
        %466 = vmatpush.msra.mxu0 0.0
        %467 = vmatpush.msra.mxu0 0.0
        %468 = vmatpush.msra.mxu0 0.0
        %469 = vmatpush.msra.mxu0 %v448
        %470 = vmatmul.f32.gmra.mxu0 %v446
        %v471 = vpop.f32.mrf.mxu0
        %v472 = vadd.f32 0.0, %v471
        %473 = vdwg.mxu0
        %474 = vmatpush.msra.mxu0 0.0
        %475 = vmatpush.msra.mxu0 0.0
        %476 = vmatpush.msra.mxu0 0.0
        %477 = vmatpush.msra.mxu0 0.0
        %478 = vmatpush.msra.mxu0 0.0
        %479 = vmatpush.msra.mxu0 0.0
        %480 = vmatpush.msra.mxu0 0.0
        %481 = vmatpush.msra.mxu0 0.0
        %482 = vmatpush.msra.mxu0 0.0
        %483 = vmatpush.msra.mxu0 0.0
        %484 = vmatpush.msra.mxu0 0.0
        %485 = vmatpush.msra.mxu0 0.0
        %486 = vmatpush.msra.mxu0 0.0
        %487 = vmatpush.msra.mxu0 0.0
        %488 = vmatpush.msra.mxu0 0.0
        %489 = vmatpush.msra.mxu0 %v450
        %490 = vmatmul.f32.gmra.mxu0 %v446
        %v491 = vpop.f32.mrf.mxu0
        %v492 = vadd.f32 0.0, %v491
        %493 = vdwg.mxu0
        %494 = vmatpush.msra.mxu0 0.0
        %495 = vmatpush.msra.mxu0 0.0
        %496 = vmatpush.msra.mxu0 0.0
        %497 = vmatpush.msra.mxu0 0.0
        %498 = vmatpush.msra.mxu0 0.0
        %499 = vmatpush.msra.mxu0 0.0
        %500 = vmatpush.msra.mxu0 0.0
        %501 = vmatpush.msra.mxu0 0.0
        %502 = vmatpush.msra.mxu0 0.0
        %503 = vmatpush.msra.mxu0 0.0
        %504 = vmatpush.msra.mxu0 0.0
        %505 = vmatpush.msra.mxu0 0.0
        %506 = vmatpush.msra.mxu0 0.0
        %507 = vmatpush.msra.mxu0 0.0
        %508 = vmatpush.msra.mxu0 0.0
        %509 = vmatpush.msra.mxu0 %v452
        %510 = vmatmul.f32.gmra.mxu0 %v446
        %v511 = vpop.f32.mrf.mxu0
        %v512 = vadd.f32 0.0, %v511
        %513 = vdwg.mxu0
        %514 = vst [vmem:[#allocation1] ss:$2 sm:$0xff] %v352
        %s515 = scalar_lea.vmem [#allocation1], 16
        %516 = vst [vmem:[%s515] ss:$2 sm:$0xff] %v353
        %v517 = vld.sshfl [vmem:[#allocation1] sm:$0xff pattern:$0x75316420]
        %v518 = vld.sshfl [vmem:[#allocation1 + $0x8] sm:$0xff pattern:$0x75316420]
        %v519 = vld.sshfl [vmem:[#allocation1 + $0x10] sm:$0xff pattern:$0x75316420]
        %v520 = vsel %vm370, %v517, 0
        %v522 = vsel %vm370, %v518, 0
        %v524 = vsel %vm370, %v519, 0
        %526 = vmatpush.msra.mxu0 0.0
        %527 = vmatpush.msra.mxu0 0.0
        %528 = vmatpush.msra.mxu0 0.0
        %529 = vmatpush.msra.mxu0 0.0
        %530 = vmatpush.msra.mxu0 0.0
        %531 = vmatpush.msra.mxu0 0.0
        %532 = vmatpush.msra.mxu0 0.0
        %533 = vmatpush.msra.mxu0 0.0
        %534 = vmatpush.msra.mxu0 0.0
        %535 = vmatpush.msra.mxu0 0.0
        %536 = vmatpush.msra.mxu0 0.0
        %537 = vmatpush.msra.mxu0 0.0
        %538 = vmatpush.msra.mxu0 0.0
        %539 = vmatpush.msra.mxu0 0.0
        %540 = vmatpush.msra.mxu0 0.0
        %541 = vmatpush.msra.mxu0 %v520
        %542 = vmatmul.f32.gmra.mxu0 %v446
        %v543 = vpop.f32.mrf.mxu0
        %v544 = vadd.f32 0.0, %v543
        %545 = vdwg.mxu0
        %546 = vmatpush.msra.mxu0 0.0
        %547 = vmatpush.msra.mxu0 0.0
        %548 = vmatpush.msra.mxu0 0.0
        %549 = vmatpush.msra.mxu0 0.0
        %550 = vmatpush.msra.mxu0 0.0
        %551 = vmatpush.msra.mxu0 0.0
        %552 = vmatpush.msra.mxu0 0.0
        %553 = vmatpush.msra.mxu0 0.0
        %554 = vmatpush.msra.mxu0 0.0
        %555 = vmatpush.msra.mxu0 0.0
        %556 = vmatpush.msra.mxu0 0.0
        %557 = vmatpush.msra.mxu0 0.0
        %558 = vmatpush.msra.mxu0 0.0
        %559 = vmatpush.msra.mxu0 0.0
        %560 = vmatpush.msra.mxu0 0.0
        %561 = vmatpush.msra.mxu0 %v522
        %562 = vmatmul.f32.gmra.mxu0 %v446
        %v563 = vpop.f32.mrf.mxu0
        %v564 = vadd.f32 0.0, %v563
        %565 = vdwg.mxu0
        %566 = vmatpush.msra.mxu0 0.0
        %567 = vmatpush.msra.mxu0 0.0
        %568 = vmatpush.msra.mxu0 0.0
        %569 = vmatpush.msra.mxu0 0.0
        %570 = vmatpush.msra.mxu0 0.0
        %571 = vmatpush.msra.mxu0 0.0
        %572 = vmatpush.msra.mxu0 0.0
        %573 = vmatpush.msra.mxu0 0.0
        %574 = vmatpush.msra.mxu0 0.0
        %575 = vmatpush.msra.mxu0 0.0
        %576 = vmatpush.msra.mxu0 0.0
        %577 = vmatpush.msra.mxu0 0.0
        %578 = vmatpush.msra.mxu0 0.0
        %579 = vmatpush.msra.mxu0 0.0
        %580 = vmatpush.msra.mxu0 0.0
        %581 = vmatpush.msra.mxu0 %v524
        %582 = vmatmul.f32.gmra.mxu0 %v446
        %v583 = vpop.f32.mrf.mxu0
        %v584 = vadd.f32 0.0, %v583
        %585 = vdwg.mxu0
        %v586 = vsub.f32 %v395, %v472
        %v587 = vsub.f32 %v415, %v492
        %v588 = vsub.f32 %v435, %v512
        %589 = vst [vmem:[#allocation1] ss:$2 sm:$0xff] %v354
        %s590 = scalar_lea.vmem [#allocation1], 16
        %591 = vst [vmem:[%s590] ss:$2 sm:$0xff] %v355
        %v592 = vld.sshfl [vmem:[#allocation1] sm:$0xff pattern:$0x75316420]
        %v593 = vld.sshfl [vmem:[#allocation1 + $0x8] sm:$0xff pattern:$0x75316420]
        %v594 = vld.sshfl [vmem:[#allocation1 + $0x10] sm:$0xff pattern:$0x75316420]
        %v595 = vsel %vm370, %v592, 0
        %v597 = vsel %vm370, %v593, 0
        %v599 = vsel %vm370, %v594, 0
        %601 = vmatpush.msra.mxu0 0.0
        %602 = vmatpush.msra.mxu0 0.0
        %603 = vmatpush.msra.mxu0 0.0
        %604 = vmatpush.msra.mxu0 0.0
        %605 = vmatpush.msra.mxu0 0.0
        %606 = vmatpush.msra.mxu0 0.0
        %607 = vmatpush.msra.mxu0 0.0
        %608 = vmatpush.msra.mxu0 0.0
        %609 = vmatpush.msra.mxu0 0.0
        %610 = vmatpush.msra.mxu0 0.0
        %611 = vmatpush.msra.mxu0 0.0
        %612 = vmatpush.msra.mxu0 0.0
        %613 = vmatpush.msra.mxu0 0.0
        %614 = vmatpush.msra.mxu0 0.0
        %615 = vmatpush.msra.mxu0 0.0
        %616 = vmatpush.msra.mxu0 %v595
        %617 = vmatmul.f32.gmra.mxu0 %v368
        %v618 = vpop.f32.mrf.mxu0
        %v619 = vadd.f32 %v544, %v618
        %620 = vdwg.mxu0
        %621 = vmatpush.msra.mxu0 0.0
        %622 = vmatpush.msra.mxu0 0.0
        %623 = vmatpush.msra.mxu0 0.0
        %624 = vmatpush.msra.mxu0 0.0
        %625 = vmatpush.msra.mxu0 0.0
        %626 = vmatpush.msra.mxu0 0.0
        %627 = vmatpush.msra.mxu0 0.0
        %628 = vmatpush.msra.mxu0 0.0
        %629 = vmatpush.msra.mxu0 0.0
        %630 = vmatpush.msra.mxu0 0.0
        %631 = vmatpush.msra.mxu0 0.0
        %632 = vmatpush.msra.mxu0 0.0
        %633 = vmatpush.msra.mxu0 0.0
        %634 = vmatpush.msra.mxu0 0.0
        %635 = vmatpush.msra.mxu0 0.0
        %636 = vmatpush.msra.mxu0 %v597
        %637 = vmatmul.f32.gmra.mxu0 %v368
        %v638 = vpop.f32.mrf.mxu0
        %v639 = vadd.f32 %v564, %v638
        %640 = vdwg.mxu0
        %641 = vmatpush.msra.mxu0 0.0
        %642 = vmatpush.msra.mxu0 0.0
        %643 = vmatpush.msra.mxu0 0.0
        %644 = vmatpush.msra.mxu0 0.0
        %645 = vmatpush.msra.mxu0 0.0
        %646 = vmatpush.msra.mxu0 0.0
        %647 = vmatpush.msra.mxu0 0.0
        %648 = vmatpush.msra.mxu0 0.0
        %649 = vmatpush.msra.mxu0 0.0
        %650 = vmatpush.msra.mxu0 0.0
        %651 = vmatpush.msra.mxu0 0.0
        %652 = vmatpush.msra.mxu0 0.0
        %653 = vmatpush.msra.mxu0 0.0
        %654 = vmatpush.msra.mxu0 0.0
        %655 = vmatpush.msra.mxu0 0.0
        %656 = vmatpush.msra.mxu0 %v599
        %657 = vmatmul.f32.gmra.mxu0 %v368
        %v658 = vpop.f32.mrf.mxu0
        %v659 = vadd.f32 %v584, %v658
        %660 = vdwg.mxu0
        %v661 = vld [vmem:[%s342] sm:$0xff]
        %v662 = vld [vmem:[%s342 + $0x8] sm:$0xf]
        %v663 = vld [vmem:[%s351] sm:$0xff]
        %v664 = vld [vmem:[%s351 + $0x8] sm:$0xf]
        %s665 = scalar_lea.vmem %s2, 8
        %v666 = vld [vmem:[%s665] sm:$0xff]
        %s667 = scalar_lea.vmem %s3, 8
        %v668 = vld [vmem:[%s667] sm:$0xff]
        %671 = vst [vmem:[#allocation1] ss:$2 sm:$0xff] %v661
        %s672 = scalar_lea.vmem [#allocation1], 16
        %673 = vst [vmem:[%s672] ss:$2 sm:$0xff] %v662
        %v674 = vld.sshfl [vmem:[#allocation1] sm:$0xff pattern:$0x75316420]
        %v675 = vld.sshfl [vmem:[#allocation1 + $0x8] sm:$0xff pattern:$0x75316420]
        %v676 = vld.sshfl [vmem:[#allocation1 + $0x10] sm:$0xff pattern:$0x75316420]
        %677 = vrot.lane.b32.xlu0 %v674, 127
        %v678 = vpop.permute.xlu0 %677
        %679 = vrot.lane.b32.xlu0 %v675, 127
        %v680 = vpop.permute.xlu0 %679
        %681 = vrot.lane.b32.xlu0 %v676, 127
        %v682 = vpop.permute.xlu0 %681
        %vm683 = vcmask 1039360
        %v684 = vsel %vm683, %v678, %v680
        %v685 = vsel %vm683, %v680, %v682
        %v687 = vsel %vm366, %v666, 0
        %v689 = vsel %vm370, %v684, 0
        %v691 = vsel %vm370, %v685, 0
        %v693 = vsel %vm370, %v682, 0
        %695 = vmatpush.msra.mxu0 0.0
        %696 = vmatpush.msra.mxu0 0.0
        %697 = vmatpush.msra.mxu0 0.0
        %698 = vmatpush.msra.mxu0 0.0
        %699 = vmatpush.msra.mxu0 0.0
        %700 = vmatpush.msra.mxu0 0.0
        %701 = vmatpush.msra.mxu0 0.0
        %702 = vmatpush.msra.mxu0 0.0
        %703 = vmatpush.msra.mxu0 0.0
        %704 = vmatpush.msra.mxu0 0.0
        %705 = vmatpush.msra.mxu0 0.0
        %706 = vmatpush.msra.mxu0 0.0
        %707 = vmatpush.msra.mxu0 0.0
        %708 = vmatpush.msra.mxu0 0.0
        %709 = vmatpush.msra.mxu0 0.0
        %710 = vmatpush.msra.mxu0 %v689
        %711 = vmatmul.f32.gmra.mxu0 %v687
        %v712 = vpop.f32.mrf.mxu0
        %v713 = vadd.f32 0.0, %v712
        %714 = vdwg.mxu0
        %715 = vmatpush.msra.mxu0 0.0
        %716 = vmatpush.msra.mxu0 0.0
        %717 = vmatpush.msra.mxu0 0.0
        %718 = vmatpush.msra.mxu0 0.0
        %719 = vmatpush.msra.mxu0 0.0
        %720 = vmatpush.msra.mxu0 0.0
        %721 = vmatpush.msra.mxu0 0.0
        %722 = vmatpush.msra.mxu0 0.0
        %723 = vmatpush.msra.mxu0 0.0
        %724 = vmatpush.msra.mxu0 0.0
        %725 = vmatpush.msra.mxu0 0.0
        %726 = vmatpush.msra.mxu0 0.0
        %727 = vmatpush.msra.mxu0 0.0
        %728 = vmatpush.msra.mxu0 0.0
        %729 = vmatpush.msra.mxu0 0.0
        %730 = vmatpush.msra.mxu0 %v691
        %731 = vmatmul.f32.gmra.mxu0 %v687
        %v732 = vpop.f32.mrf.mxu0
        %v733 = vadd.f32 0.0, %v732
        %734 = vdwg.mxu0
        %735 = vmatpush.msra.mxu0 0.0
        %736 = vmatpush.msra.mxu0 0.0
        %737 = vmatpush.msra.mxu0 0.0
        %738 = vmatpush.msra.mxu0 0.0
        %739 = vmatpush.msra.mxu0 0.0
        %740 = vmatpush.msra.mxu0 0.0
        %741 = vmatpush.msra.mxu0 0.0
        %742 = vmatpush.msra.mxu0 0.0
        %743 = vmatpush.msra.mxu0 0.0
        %744 = vmatpush.msra.mxu0 0.0
        %745 = vmatpush.msra.mxu0 0.0
        %746 = vmatpush.msra.mxu0 0.0
        %747 = vmatpush.msra.mxu0 0.0
        %748 = vmatpush.msra.mxu0 0.0
        %749 = vmatpush.msra.mxu0 0.0
        %750 = vmatpush.msra.mxu0 %v693
        %751 = vmatmul.f32.gmra.mxu0 %v687
        %v752 = vpop.f32.mrf.mxu0
        %v753 = vadd.f32 0.0, %v752
        %754 = vdwg.mxu0
        %757 = vst [vmem:[#allocation1] ss:$2 sm:$0xff] %v663
        %s758 = scalar_lea.vmem [#allocation1], 16
        %759 = vst [vmem:[%s758] ss:$2 sm:$0xff] %v664
        %v760 = vld.sshfl [vmem:[#allocation1] sm:$0xff pattern:$0x75316420]
        %v761 = vld.sshfl [vmem:[#allocation1 + $0x8] sm:$0xff pattern:$0x75316420]
        %v762 = vld.sshfl [vmem:[#allocation1 + $0x10] sm:$0xff pattern:$0x75316420]
        %763 = vrot.lane.b32.xlu0 %v760, 127
        %v764 = vpop.permute.xlu0 %763
        %765 = vrot.lane.b32.xlu0 %v761, 127
        %v766 = vpop.permute.xlu0 %765
        %767 = vrot.lane.b32.xlu0 %v762, 127
        %v768 = vpop.permute.xlu0 %767
        %v769 = vsel %vm683, %v764, %v766
        %v770 = vsel %vm683, %v766, %v768
        %v772 = vsel %vm366, %v668, 0
        %v774 = vsel %vm370, %v769, 0
        %v776 = vsel %vm370, %v770, 0
        %v778 = vsel %vm370, %v768, 0
        %780 = vmatpush.msra.mxu0 0.0
        %781 = vmatpush.msra.mxu0 0.0
        %782 = vmatpush.msra.mxu0 0.0
        %783 = vmatpush.msra.mxu0 0.0
        %784 = vmatpush.msra.mxu0 0.0
        %785 = vmatpush.msra.mxu0 0.0
        %786 = vmatpush.msra.mxu0 0.0
        %787 = vmatpush.msra.mxu0 0.0
        %788 = vmatpush.msra.mxu0 0.0
        %789 = vmatpush.msra.mxu0 0.0
        %790 = vmatpush.msra.mxu0 0.0
        %791 = vmatpush.msra.mxu0 0.0
        %792 = vmatpush.msra.mxu0 0.0
        %793 = vmatpush.msra.mxu0 0.0
        %794 = vmatpush.msra.mxu0 0.0
        %795 = vmatpush.msra.mxu0 %v774
        %796 = vmatmul.f32.gmra.mxu0 %v772
        %v797 = vpop.f32.mrf.mxu0
        %v798 = vadd.f32 0.0, %v797
        %799 = vdwg.mxu0
        %800 = vmatpush.msra.mxu0 0.0
        %801 = vmatpush.msra.mxu0 0.0
        %802 = vmatpush.msra.mxu0 0.0
        %803 = vmatpush.msra.mxu0 0.0
        %804 = vmatpush.msra.mxu0 0.0
        %805 = vmatpush.msra.mxu0 0.0
        %806 = vmatpush.msra.mxu0 0.0
        %807 = vmatpush.msra.mxu0 0.0
        %808 = vmatpush.msra.mxu0 0.0
        %809 = vmatpush.msra.mxu0 0.0
        %810 = vmatpush.msra.mxu0 0.0
        %811 = vmatpush.msra.mxu0 0.0
        %812 = vmatpush.msra.mxu0 0.0
        %813 = vmatpush.msra.mxu0 0.0
        %814 = vmatpush.msra.mxu0 0.0
        %815 = vmatpush.msra.mxu0 %v776
        %816 = vmatmul.f32.gmra.mxu0 %v772
        %v817 = vpop.f32.mrf.mxu0
        %v818 = vadd.f32 0.0, %v817
        %819 = vdwg.mxu0
        %820 = vmatpush.msra.mxu0 0.0
        %821 = vmatpush.msra.mxu0 0.0
        %822 = vmatpush.msra.mxu0 0.0
        %823 = vmatpush.msra.mxu0 0.0
        %824 = vmatpush.msra.mxu0 0.0
        %825 = vmatpush.msra.mxu0 0.0
        %826 = vmatpush.msra.mxu0 0.0
        %827 = vmatpush.msra.mxu0 0.0
        %828 = vmatpush.msra.mxu0 0.0
        %829 = vmatpush.msra.mxu0 0.0
        %830 = vmatpush.msra.mxu0 0.0
        %831 = vmatpush.msra.mxu0 0.0
        %832 = vmatpush.msra.mxu0 0.0
        %833 = vmatpush.msra.mxu0 0.0
        %834 = vmatpush.msra.mxu0 0.0
        %835 = vmatpush.msra.mxu0 %v778
        %836 = vmatmul.f32.gmra.mxu0 %v772
        %v837 = vpop.f32.mrf.mxu0
        %v838 = vadd.f32 0.0, %v837
        %839 = vdwg.mxu0
        %840 = vst [vmem:[#allocation1] ss:$2 sm:$0xff] %v661
        %s841 = scalar_lea.vmem [#allocation1], 16
        %842 = vst [vmem:[%s841] ss:$2 sm:$0xff] %v662
        %v843 = vld.sshfl [vmem:[#allocation1] sm:$0xff pattern:$0x75316420]
        %v844 = vld.sshfl [vmem:[#allocation1 + $0x8] sm:$0xff pattern:$0x75316420]
        %v845 = vld.sshfl [vmem:[#allocation1 + $0x10] sm:$0xff pattern:$0x75316420]
        %846 = vrot.lane.b32.xlu0 %v843, 127
        %v847 = vpop.permute.xlu0 %846
        %848 = vrot.lane.b32.xlu0 %v844, 127
        %v849 = vpop.permute.xlu0 %848
        %850 = vrot.lane.b32.xlu0 %v845, 127
        %v851 = vpop.permute.xlu0 %850
        %v852 = vsel %vm683, %v847, %v849
        %v853 = vsel %vm683, %v849, %v851
        %v854 = vsel %vm370, %v852, 0
        %v856 = vsel %vm370, %v853, 0
        %v858 = vsel %vm370, %v851, 0
        %860 = vmatpush.msra.mxu0 0.0
        %861 = vmatpush.msra.mxu0 0.0
        %862 = vmatpush.msra.mxu0 0.0
        %863 = vmatpush.msra.mxu0 0.0
        %864 = vmatpush.msra.mxu0 0.0
        %865 = vmatpush.msra.mxu0 0.0
        %866 = vmatpush.msra.mxu0 0.0
        %867 = vmatpush.msra.mxu0 0.0
        %868 = vmatpush.msra.mxu0 0.0
        %869 = vmatpush.msra.mxu0 0.0
        %870 = vmatpush.msra.mxu0 0.0
        %871 = vmatpush.msra.mxu0 0.0
        %872 = vmatpush.msra.mxu0 0.0
        %873 = vmatpush.msra.mxu0 0.0
        %874 = vmatpush.msra.mxu0 0.0
        %875 = vmatpush.msra.mxu0 %v854
        %876 = vmatmul.f32.gmra.mxu0 %v772
        %v877 = vpop.f32.mrf.mxu0
        %v878 = vadd.f32 0.0, %v877
        %879 = vdwg.mxu0
        %880 = vmatpush.msra.mxu0 0.0
        %881 = vmatpush.msra.mxu0 0.0
        %882 = vmatpush.msra.mxu0 0.0
        %883 = vmatpush.msra.mxu0 0.0
        %884 = vmatpush.msra.mxu0 0.0
        %885 = vmatpush.msra.mxu0 0.0
        %886 = vmatpush.msra.mxu0 0.0
        %887 = vmatpush.msra.mxu0 0.0
        %888 = vmatpush.msra.mxu0 0.0
        %889 = vmatpush.msra.mxu0 0.0
        %890 = vmatpush.msra.mxu0 0.0
        %891 = vmatpush.msra.mxu0 0.0
        %892 = vmatpush.msra.mxu0 0.0
        %893 = vmatpush.msra.mxu0 0.0
        %894 = vmatpush.msra.mxu0 0.0
        %895 = vmatpush.msra.mxu0 %v856
        %896 = vmatmul.f32.gmra.mxu0 %v772
        %v897 = vpop.f32.mrf.mxu0
        %v898 = vadd.f32 0.0, %v897
        %899 = vdwg.mxu0
        %900 = vmatpush.msra.mxu0 0.0
        %901 = vmatpush.msra.mxu0 0.0
        %902 = vmatpush.msra.mxu0 0.0
        %903 = vmatpush.msra.mxu0 0.0
        %904 = vmatpush.msra.mxu0 0.0
        %905 = vmatpush.msra.mxu0 0.0
        %906 = vmatpush.msra.mxu0 0.0
        %907 = vmatpush.msra.mxu0 0.0
        %908 = vmatpush.msra.mxu0 0.0
        %909 = vmatpush.msra.mxu0 0.0
        %910 = vmatpush.msra.mxu0 0.0
        %911 = vmatpush.msra.mxu0 0.0
        %912 = vmatpush.msra.mxu0 0.0
        %913 = vmatpush.msra.mxu0 0.0
        %914 = vmatpush.msra.mxu0 0.0
        %915 = vmatpush.msra.mxu0 %v858
        %916 = vmatmul.f32.gmra.mxu0 %v772
        %v917 = vpop.f32.mrf.mxu0
        %v918 = vadd.f32 0.0, %v917
        %919 = vdwg.mxu0
        %v920 = vsub.f32 %v713, %v798
        %v921 = vsub.f32 %v733, %v818
        %v922 = vsub.f32 %v753, %v838
        %923 = vst [vmem:[#allocation1] ss:$2 sm:$0xff] %v663
        %s924 = scalar_lea.vmem [#allocation1], 16
        %925 = vst [vmem:[%s924] ss:$2 sm:$0xff] %v664
        %v926 = vld.sshfl [vmem:[#allocation1] sm:$0xff pattern:$0x75316420]
        %v927 = vld.sshfl [vmem:[#allocation1 + $0x8] sm:$0xff pattern:$0x75316420]
        %v928 = vld.sshfl [vmem:[#allocation1 + $0x10] sm:$0xff pattern:$0x75316420]
        %929 = vrot.lane.b32.xlu0 %v926, 127
        %v930 = vpop.permute.xlu0 %929
        %931 = vrot.lane.b32.xlu0 %v927, 127
        %v932 = vpop.permute.xlu0 %931
        %933 = vrot.lane.b32.xlu0 %v928, 127
        %v934 = vpop.permute.xlu0 %933
        %v935 = vsel %vm683, %v930, %v932
        %v936 = vsel %vm683, %v932, %v934
        %v937 = vsel %vm370, %v935, 0
        %v939 = vsel %vm370, %v936, 0
        %v941 = vsel %vm370, %v934, 0
        %943 = vmatpush.msra.mxu0 0.0
        %944 = vmatpush.msra.mxu0 0.0
        %945 = vmatpush.msra.mxu0 0.0
        %946 = vmatpush.msra.mxu0 0.0
        %947 = vmatpush.msra.mxu0 0.0
        %948 = vmatpush.msra.mxu0 0.0
        %949 = vmatpush.msra.mxu0 0.0
        %950 = vmatpush.msra.mxu0 0.0
        %951 = vmatpush.msra.mxu0 0.0
        %952 = vmatpush.msra.mxu0 0.0
        %953 = vmatpush.msra.mxu0 0.0
        %954 = vmatpush.msra.mxu0 0.0
        %955 = vmatpush.msra.mxu0 0.0
        %956 = vmatpush.msra.mxu0 0.0
        %957 = vmatpush.msra.mxu0 0.0
        %958 = vmatpush.msra.mxu0 %v937
        %959 = vmatmul.f32.gmra.mxu0 %v687
        %v960 = vpop.f32.mrf.mxu0
        %v961 = vadd.f32 %v878, %v960
        %962 = vdwg.mxu0
        %963 = vmatpush.msra.mxu0 0.0
        %964 = vmatpush.msra.mxu0 0.0
        %965 = vmatpush.msra.mxu0 0.0
        %966 = vmatpush.msra.mxu0 0.0
        %967 = vmatpush.msra.mxu0 0.0
        %968 = vmatpush.msra.mxu0 0.0
        %969 = vmatpush.msra.mxu0 0.0
        %970 = vmatpush.msra.mxu0 0.0
        %971 = vmatpush.msra.mxu0 0.0
        %972 = vmatpush.msra.mxu0 0.0
        %973 = vmatpush.msra.mxu0 0.0
        %974 = vmatpush.msra.mxu0 0.0
        %975 = vmatpush.msra.mxu0 0.0
        %976 = vmatpush.msra.mxu0 0.0
        %977 = vmatpush.msra.mxu0 0.0
        %978 = vmatpush.msra.mxu0 %v939
        %979 = vmatmul.f32.gmra.mxu0 %v687
        %v980 = vpop.f32.mrf.mxu0
        %v981 = vadd.f32 %v898, %v980
        %982 = vdwg.mxu0
        %983 = vmatpush.msra.mxu0 0.0
        %984 = vmatpush.msra.mxu0 0.0
        %985 = vmatpush.msra.mxu0 0.0
        %986 = vmatpush.msra.mxu0 0.0
        %987 = vmatpush.msra.mxu0 0.0
        %988 = vmatpush.msra.mxu0 0.0
        %989 = vmatpush.msra.mxu0 0.0
        %990 = vmatpush.msra.mxu0 0.0
        %991 = vmatpush.msra.mxu0 0.0
        %992 = vmatpush.msra.mxu0 0.0
        %993 = vmatpush.msra.mxu0 0.0
        %994 = vmatpush.msra.mxu0 0.0
        %995 = vmatpush.msra.mxu0 0.0
        %996 = vmatpush.msra.mxu0 0.0
        %997 = vmatpush.msra.mxu0 0.0
        %998 = vmatpush.msra.mxu0 %v941
        %999 = vmatmul.f32.gmra.mxu0 %v687
        %v1000 = vpop.f32.mrf.mxu0
        %v1001 = vadd.f32 %v918, %v1000
        %1002 = vdwg.mxu0
        %v1003 = vadd.f32 %v586, %v920
        %v1004 = vadd.f32 %v587, %v921
        %v1005 = vadd.f32 %v588, %v922
        %v1006 = vadd.f32 %v619, %v961
        %v1007 = vadd.f32 %v639, %v981
        %v1008 = vadd.f32 %v659, %v1001
        %v1009 = vld [vmem:[%s342] sm:$0xff]
        %v1010 = vld [vmem:[%s342 + $0x8] sm:$0xf]
        %v1011 = vld [vmem:[%s351] sm:$0xff]
        %v1012 = vld [vmem:[%s351 + $0x8] sm:$0xf]
        %s1013 = scalar_lea.vmem %s2, 16
        %v1014 = vld [vmem:[%s1013] sm:$0xff]
        %s1015 = scalar_lea.vmem %s3, 16
        %v1016 = vld [vmem:[%s1015] sm:$0xff]
        %1019 = vst [vmem:[#allocation1] ss:$2 sm:$0xff] %v1009
        %s1020 = scalar_lea.vmem [#allocation1], 16
        %1021 = vst [vmem:[%s1020] ss:$2 sm:$0xff] %v1010
        %v1022 = vld.sshfl [vmem:[#allocation1] sm:$0xff pattern:$0x75316420]
        %v1023 = vld.sshfl [vmem:[#allocation1 + $0x8] sm:$0xff pattern:$0x75316420]
        %v1024 = vld.sshfl [vmem:[#allocation1 + $0x10] sm:$0xff pattern:$0x75316420]
        %1025 = vrot.lane.b32.xlu0 %v1022, 126
        %v1026 = vpop.permute.xlu0 %1025
        %1027 = vrot.lane.b32.xlu0 %v1023, 126
        %v1028 = vpop.permute.xlu0 %1027
        %1029 = vrot.lane.b32.xlu0 %v1024, 126
        %v1030 = vpop.permute.xlu0 %1029
        %vm1031 = vcmask 1031168
        %v1032 = vsel %vm1031, %v1026, %v1028
        %v1033 = vsel %vm1031, %v1028, %v1030
        %v1035 = vsel %vm366, %v1014, 0
        %v1037 = vsel %vm370, %v1032, 0
        %v1039 = vsel %vm370, %v1033, 0
        %v1041 = vsel %vm370, %v1030, 0
        %1043 = vmatpush.msra.mxu0 0.0
        %1044 = vmatpush.msra.mxu0 0.0
        %1045 = vmatpush.msra.mxu0 0.0
        %1046 = vmatpush.msra.mxu0 0.0
        %1047 = vmatpush.msra.mxu0 0.0
        %1048 = vmatpush.msra.mxu0 0.0
        %1049 = vmatpush.msra.mxu0 0.0
        %1050 = vmatpush.msra.mxu0 0.0
        %1051 = vmatpush.msra.mxu0 0.0
        %1052 = vmatpush.msra.mxu0 0.0
        %1053 = vmatpush.msra.mxu0 0.0
        %1054 = vmatpush.msra.mxu0 0.0
        %1055 = vmatpush.msra.mxu0 0.0
        %1056 = vmatpush.msra.mxu0 0.0
        %1057 = vmatpush.msra.mxu0 0.0
        %1058 = vmatpush.msra.mxu0 %v1037
        %1059 = vmatmul.f32.gmra.mxu0 %v1035
        %v1060 = vpop.f32.mrf.mxu0
        %v1061 = vadd.f32 0.0, %v1060
        %1062 = vdwg.mxu0
        %1063 = vmatpush.msra.mxu0 0.0
        %1064 = vmatpush.msra.mxu0 0.0
        %1065 = vmatpush.msra.mxu0 0.0
        %1066 = vmatpush.msra.mxu0 0.0
        %1067 = vmatpush.msra.mxu0 0.0
        %1068 = vmatpush.msra.mxu0 0.0
        %1069 = vmatpush.msra.mxu0 0.0
        %1070 = vmatpush.msra.mxu0 0.0
        %1071 = vmatpush.msra.mxu0 0.0
        %1072 = vmatpush.msra.mxu0 0.0
        %1073 = vmatpush.msra.mxu0 0.0
        %1074 = vmatpush.msra.mxu0 0.0
        %1075 = vmatpush.msra.mxu0 0.0
        %1076 = vmatpush.msra.mxu0 0.0
        %1077 = vmatpush.msra.mxu0 0.0
        %1078 = vmatpush.msra.mxu0 %v1039
        %1079 = vmatmul.f32.gmra.mxu0 %v1035
        %v1080 = vpop.f32.mrf.mxu0
        %v1081 = vadd.f32 0.0, %v1080
        %1082 = vdwg.mxu0
        %1083 = vmatpush.msra.mxu0 0.0
        %1084 = vmatpush.msra.mxu0 0.0
        %1085 = vmatpush.msra.mxu0 0.0
        %1086 = vmatpush.msra.mxu0 0.0
        %1087 = vmatpush.msra.mxu0 0.0
        %1088 = vmatpush.msra.mxu0 0.0
        %1089 = vmatpush.msra.mxu0 0.0
        %1090 = vmatpush.msra.mxu0 0.0
        %1091 = vmatpush.msra.mxu0 0.0
        %1092 = vmatpush.msra.mxu0 0.0
        %1093 = vmatpush.msra.mxu0 0.0
        %1094 = vmatpush.msra.mxu0 0.0
        %1095 = vmatpush.msra.mxu0 0.0
        %1096 = vmatpush.msra.mxu0 0.0
        %1097 = vmatpush.msra.mxu0 0.0
        %1098 = vmatpush.msra.mxu0 %v1041
        %1099 = vmatmul.f32.gmra.mxu0 %v1035
        %v1100 = vpop.f32.mrf.mxu0
        %v1101 = vadd.f32 0.0, %v1100
        %1102 = vdwg.mxu0
        %1105 = vst [vmem:[#allocation1] ss:$2 sm:$0xff] %v1011
        %s1106 = scalar_lea.vmem [#allocation1], 16
        %1107 = vst [vmem:[%s1106] ss:$2 sm:$0xff] %v1012
        %v1108 = vld.sshfl [vmem:[#allocation1] sm:$0xff pattern:$0x75316420]
        %v1109 = vld.sshfl [vmem:[#allocation1 + $0x8] sm:$0xff pattern:$0x75316420]
        %v1110 = vld.sshfl [vmem:[#allocation1 + $0x10] sm:$0xff pattern:$0x75316420]
        %1111 = vrot.lane.b32.xlu0 %v1108, 126
        %v1112 = vpop.permute.xlu0 %1111
        %1113 = vrot.lane.b32.xlu0 %v1109, 126
        %v1114 = vpop.permute.xlu0 %1113
        %1115 = vrot.lane.b32.xlu0 %v1110, 126
        %v1116 = vpop.permute.xlu0 %1115
        %v1117 = vsel %vm1031, %v1112, %v1114
        %v1118 = vsel %vm1031, %v1114, %v1116
        %v1120 = vsel %vm366, %v1016, 0
        %v1122 = vsel %vm370, %v1117, 0
        %v1124 = vsel %vm370, %v1118, 0
        %v1126 = vsel %vm370, %v1116, 0
        %1128 = vmatpush.msra.mxu0 0.0
        %1129 = vmatpush.msra.mxu0 0.0
        %1130 = vmatpush.msra.mxu0 0.0
        %1131 = vmatpush.msra.mxu0 0.0
        %1132 = vmatpush.msra.mxu0 0.0
        %1133 = vmatpush.msra.mxu0 0.0
        %1134 = vmatpush.msra.mxu0 0.0
        %1135 = vmatpush.msra.mxu0 0.0
        %1136 = vmatpush.msra.mxu0 0.0
        %1137 = vmatpush.msra.mxu0 0.0
        %1138 = vmatpush.msra.mxu0 0.0
        %1139 = vmatpush.msra.mxu0 0.0
        %1140 = vmatpush.msra.mxu0 0.0
        %1141 = vmatpush.msra.mxu0 0.0
        %1142 = vmatpush.msra.mxu0 0.0
        %1143 = vmatpush.msra.mxu0 %v1122
        %1144 = vmatmul.f32.gmra.mxu0 %v1120
        %v1145 = vpop.f32.mrf.mxu0
        %v1146 = vadd.f32 0.0, %v1145
        %1147 = vdwg.mxu0
        %1148 = vmatpush.msra.mxu0 0.0
        %1149 = vmatpush.msra.mxu0 0.0
        %1150 = vmatpush.msra.mxu0 0.0
        %1151 = vmatpush.msra.mxu0 0.0
        %1152 = vmatpush.msra.mxu0 0.0
        %1153 = vmatpush.msra.mxu0 0.0
        %1154 = vmatpush.msra.mxu0 0.0
        %1155 = vmatpush.msra.mxu0 0.0
        %1156 = vmatpush.msra.mxu0 0.0
        %1157 = vmatpush.msra.mxu0 0.0
        %1158 = vmatpush.msra.mxu0 0.0
        %1159 = vmatpush.msra.mxu0 0.0
        %1160 = vmatpush.msra.mxu0 0.0
        %1161 = vmatpush.msra.mxu0 0.0
        %1162 = vmatpush.msra.mxu0 0.0
        %1163 = vmatpush.msra.mxu0 %v1124
        %1164 = vmatmul.f32.gmra.mxu0 %v1120
        %v1165 = vpop.f32.mrf.mxu0
        %v1166 = vadd.f32 0.0, %v1165
        %1167 = vdwg.mxu0
        %1168 = vmatpush.msra.mxu0 0.0
        %1169 = vmatpush.msra.mxu0 0.0
        %1170 = vmatpush.msra.mxu0 0.0
        %1171 = vmatpush.msra.mxu0 0.0
        %1172 = vmatpush.msra.mxu0 0.0
        %1173 = vmatpush.msra.mxu0 0.0
        %1174 = vmatpush.msra.mxu0 0.0
        %1175 = vmatpush.msra.mxu0 0.0
        %1176 = vmatpush.msra.mxu0 0.0
        %1177 = vmatpush.msra.mxu0 0.0
        %1178 = vmatpush.msra.mxu0 0.0
        %1179 = vmatpush.msra.mxu0 0.0
        %1180 = vmatpush.msra.mxu0 0.0
        %1181 = vmatpush.msra.mxu0 0.0
        %1182 = vmatpush.msra.mxu0 0.0
        %1183 = vmatpush.msra.mxu0 %v1126
        %1184 = vmatmul.f32.gmra.mxu0 %v1120
        %v1185 = vpop.f32.mrf.mxu0
        %v1186 = vadd.f32 0.0, %v1185
        %1187 = vdwg.mxu0
        %1188 = vst [vmem:[#allocation1] ss:$2 sm:$0xff] %v1009
        %s1189 = scalar_lea.vmem [#allocation1], 16
        %1190 = vst [vmem:[%s1189] ss:$2 sm:$0xff] %v1010
        %v1191 = vld.sshfl [vmem:[#allocation1] sm:$0xff pattern:$0x75316420]
        %v1192 = vld.sshfl [vmem:[#allocation1 + $0x8] sm:$0xff pattern:$0x75316420]
        %v1193 = vld.sshfl [vmem:[#allocation1 + $0x10] sm:$0xff pattern:$0x75316420]
        %1194 = vrot.lane.b32.xlu0 %v1191, 126
        %v1195 = vpop.permute.xlu0 %1194
        %1196 = vrot.lane.b32.xlu0 %v1192, 126
        %v1197 = vpop.permute.xlu0 %1196
        %1198 = vrot.lane.b32.xlu0 %v1193, 126
        %v1199 = vpop.permute.xlu0 %1198
        %v1200 = vsel %vm1031, %v1195, %v1197
        %v1201 = vsel %vm1031, %v1197, %v1199
        %v1202 = vsel %vm370, %v1200, 0
        %v1204 = vsel %vm370, %v1201, 0
        %v1206 = vsel %vm370, %v1199, 0
        %1208 = vmatpush.msra.mxu0 0.0
        %1209 = vmatpush.msra.mxu0 0.0
        %1210 = vmatpush.msra.mxu0 0.0
        %1211 = vmatpush.msra.mxu0 0.0
        %1212 = vmatpush.msra.mxu0 0.0
        %1213 = vmatpush.msra.mxu0 0.0
        %1214 = vmatpush.msra.mxu0 0.0
        %1215 = vmatpush.msra.mxu0 0.0
        %1216 = vmatpush.msra.mxu0 0.0
        %1217 = vmatpush.msra.mxu0 0.0
        %1218 = vmatpush.msra.mxu0 0.0
        %1219 = vmatpush.msra.mxu0 0.0
        %1220 = vmatpush.msra.mxu0 0.0
        %1221 = vmatpush.msra.mxu0 0.0
        %1222 = vmatpush.msra.mxu0 0.0
        %1223 = vmatpush.msra.mxu0 %v1202
        %1224 = vmatmul.f32.gmra.mxu0 %v1120
        %v1225 = vpop.f32.mrf.mxu0
        %v1226 = vadd.f32 0.0, %v1225
        %1227 = vdwg.mxu0
        %1228 = vmatpush.msra.mxu0 0.0
        %1229 = vmatpush.msra.mxu0 0.0
        %1230 = vmatpush.msra.mxu0 0.0
        %1231 = vmatpush.msra.mxu0 0.0
        %1232 = vmatpush.msra.mxu0 0.0
        %1233 = vmatpush.msra.mxu0 0.0
        %1234 = vmatpush.msra.mxu0 0.0
        %1235 = vmatpush.msra.mxu0 0.0
        %1236 = vmatpush.msra.mxu0 0.0
        %1237 = vmatpush.msra.mxu0 0.0
        %1238 = vmatpush.msra.mxu0 0.0
        %1239 = vmatpush.msra.mxu0 0.0
        %1240 = vmatpush.msra.mxu0 0.0
        %1241 = vmatpush.msra.mxu0 0.0
        %1242 = vmatpush.msra.mxu0 0.0
        %1243 = vmatpush.msra.mxu0 %v1204
        %1244 = vmatmul.f32.gmra.mxu0 %v1120
        %v1245 = vpop.f32.mrf.mxu0
        %v1246 = vadd.f32 0.0, %v1245
        %1247 = vdwg.mxu0
        %1248 = vmatpush.msra.mxu0 0.0
        %1249 = vmatpush.msra.mxu0 0.0
        %1250 = vmatpush.msra.mxu0 0.0
        %1251 = vmatpush.msra.mxu0 0.0
        %1252 = vmatpush.msra.mxu0 0.0
        %1253 = vmatpush.msra.mxu0 0.0
        %1254 = vmatpush.msra.mxu0 0.0
        %1255 = vmatpush.msra.mxu0 0.0
        %1256 = vmatpush.msra.mxu0 0.0
        %1257 = vmatpush.msra.mxu0 0.0
        %1258 = vmatpush.msra.mxu0 0.0
        %1259 = vmatpush.msra.mxu0 0.0
        %1260 = vmatpush.msra.mxu0 0.0
        %1261 = vmatpush.msra.mxu0 0.0
        %1262 = vmatpush.msra.mxu0 0.0
        %1263 = vmatpush.msra.mxu0 %v1206
        %1264 = vmatmul.f32.gmra.mxu0 %v1120
        %v1265 = vpop.f32.mrf.mxu0
        %v1266 = vadd.f32 0.0, %v1265
        %1267 = vdwg.mxu0
        %v1268 = vsub.f32 %v1061, %v1146
        %v1269 = vsub.f32 %v1081, %v1166
        %v1270 = vsub.f32 %v1101, %v1186
        %1271 = vst [vmem:[#allocation1] ss:$2 sm:$0xff] %v1011
        %s1272 = scalar_lea.vmem [#allocation1], 16
        %1273 = vst [vmem:[%s1272] ss:$2 sm:$0xff] %v1012
        %v1274 = vld.sshfl [vmem:[#allocation1] sm:$0xff pattern:$0x75316420]
        %v1275 = vld.sshfl [vmem:[#allocation1 + $0x8] sm:$0xff pattern:$0x75316420]
        %v1276 = vld.sshfl [vmem:[#allocation1 + $0x10] sm:$0xff pattern:$0x75316420]
        %1277 = vrot.lane.b32.xlu0 %v1274, 126
        %v1278 = vpop.permute.xlu0 %1277
        %1279 = vrot.lane.b32.xlu0 %v1275, 126
        %v1280 = vpop.permute.xlu0 %1279
        %1281 = vrot.lane.b32.xlu0 %v1276, 126
        %v1282 = vpop.permute.xlu0 %1281
        %v1283 = vsel %vm1031, %v1278, %v1280
        %v1284 = vsel %vm1031, %v1280, %v1282
        %v1285 = vsel %vm370, %v1283, 0
        %v1287 = vsel %vm370, %v1284, 0
        %v1289 = vsel %vm370, %v1282, 0
        %1291 = vmatpush.msra.mxu0 0.0
        %1292 = vmatpush.msra.mxu0 0.0
        %1293 = vmatpush.msra.mxu0 0.0
        %1294 = vmatpush.msra.mxu0 0.0
        %1295 = vmatpush.msra.mxu0 0.0
        %1296 = vmatpush.msra.mxu0 0.0
        %1297 = vmatpush.msra.mxu0 0.0
        %1298 = vmatpush.msra.mxu0 0.0
        %1299 = vmatpush.msra.mxu0 0.0
        %1300 = vmatpush.msra.mxu0 0.0
        %1301 = vmatpush.msra.mxu0 0.0
        %1302 = vmatpush.msra.mxu0 0.0
        %1303 = vmatpush.msra.mxu0 0.0
        %1304 = vmatpush.msra.mxu0 0.0
        %1305 = vmatpush.msra.mxu0 0.0
        %1306 = vmatpush.msra.mxu0 %v1285
        %1307 = vmatmul.f32.gmra.mxu0 %v1035
        %v1308 = vpop.f32.mrf.mxu0
        %v1309 = vadd.f32 %v1226, %v1308
        %1310 = vdwg.mxu0
        %1311 = vmatpush.msra.mxu0 0.0
        %1312 = vmatpush.msra.mxu0 0.0
        %1313 = vmatpush.msra.mxu0 0.0
        %1314 = vmatpush.msra.mxu0 0.0
        %1315 = vmatpush.msra.mxu0 0.0
        %1316 = vmatpush.msra.mxu0 0.0
        %1317 = vmatpush.msra.mxu0 0.0
        %1318 = vmatpush.msra.mxu0 0.0
        %1319 = vmatpush.msra.mxu0 0.0
        %1320 = vmatpush.msra.mxu0 0.0
        %1321 = vmatpush.msra.mxu0 0.0
        %1322 = vmatpush.msra.mxu0 0.0
        %1323 = vmatpush.msra.mxu0 0.0
        %1324 = vmatpush.msra.mxu0 0.0
        %1325 = vmatpush.msra.mxu0 0.0
        %1326 = vmatpush.msra.mxu0 %v1287
        %1327 = vmatmul.f32.gmra.mxu0 %v1035
        %v1328 = vpop.f32.mrf.mxu0
        %v1329 = vadd.f32 %v1246, %v1328
        %1330 = vdwg.mxu0
        %1331 = vmatpush.msra.mxu0 0.0
        %1332 = vmatpush.msra.mxu0 0.0
        %1333 = vmatpush.msra.mxu0 0.0
        %1334 = vmatpush.msra.mxu0 0.0
        %1335 = vmatpush.msra.mxu0 0.0
        %1336 = vmatpush.msra.mxu0 0.0
        %1337 = vmatpush.msra.mxu0 0.0
        %1338 = vmatpush.msra.mxu0 0.0
        %1339 = vmatpush.msra.mxu0 0.0
        %1340 = vmatpush.msra.mxu0 0.0
        %1341 = vmatpush.msra.mxu0 0.0
        %1342 = vmatpush.msra.mxu0 0.0
        %1343 = vmatpush.msra.mxu0 0.0
        %1344 = vmatpush.msra.mxu0 0.0
        %1345 = vmatpush.msra.mxu0 0.0
        %1346 = vmatpush.msra.mxu0 %v1289
        %1347 = vmatmul.f32.gmra.mxu0 %v1035
        %v1348 = vpop.f32.mrf.mxu0
        %v1349 = vadd.f32 %v1266, %v1348
        %1350 = vdwg.mxu0
        %v1351 = vadd.f32 %v1003, %v1268
        %v1352 = vadd.f32 %v1004, %v1269
        %v1353 = vadd.f32 %v1005, %v1270
        %v1354 = vadd.f32 %v1006, %v1309
        %v1355 = vadd.f32 %v1007, %v1329
        %v1356 = vadd.f32 %v1008, %v1349
        %v1357 = vld [vmem:[%s342] sm:$0xff]
        %v1358 = vld [vmem:[%s342 + $0x8] sm:$0xf]
        %v1359 = vld [vmem:[%s351] sm:$0xff]
        %v1360 = vld [vmem:[%s351 + $0x8] sm:$0xf]
        %s1361 = scalar_lea.vmem %s2, 24
        %v1362 = vld [vmem:[%s1361] sm:$0xff]
        %s1363 = scalar_lea.vmem %s3, 24
        %v1364 = vld [vmem:[%s1363] sm:$0xff]
        %1367 = vst [vmem:[#allocation1] ss:$2 sm:$0xff] %v1357
        %s1368 = scalar_lea.vmem [#allocation1], 16
        %1369 = vst [vmem:[%s1368] ss:$2 sm:$0xff] %v1358
        %v1370 = vld.sshfl [vmem:[#allocation1] sm:$0xff pattern:$0x75316420]
        %v1371 = vld.sshfl [vmem:[#allocation1 + $0x8] sm:$0xff pattern:$0x75316420]
        %v1372 = vld.sshfl [vmem:[#allocation1 + $0x10] sm:$0xff pattern:$0x75316420]
        %1373 = vrot.lane.b32.xlu0 %v1370, 110
        %v1374 = vpop.permute.xlu0 %1373
        %1375 = vrot.lane.b32.xlu0 %v1371, 110
        %v1376 = vpop.permute.xlu0 %1375
        %1377 = vrot.lane.b32.xlu0 %v1372, 110
        %v1378 = vpop.permute.xlu0 %1377
        %vm1379 = vcmask 900096
        %v1380 = vsel %vm1379, %v1374, %v1376
        %v1381 = vsel %vm1379, %v1376, %v1378
        %v1383 = vsel %vm366, %v1362, 0
        %v1385 = vsel %vm370, %v1380, 0
        %v1387 = vsel %vm370, %v1381, 0
        %v1389 = vsel %vm370, %v1378, 0
        %1391 = vmatpush.msra.mxu0 0.0
        %1392 = vmatpush.msra.mxu0 0.0
        %1393 = vmatpush.msra.mxu0 0.0
        %1394 = vmatpush.msra.mxu0 0.0
        %1395 = vmatpush.msra.mxu0 0.0
        %1396 = vmatpush.msra.mxu0 0.0
        %1397 = vmatpush.msra.mxu0 0.0
        %1398 = vmatpush.msra.mxu0 0.0
        %1399 = vmatpush.msra.mxu0 0.0
        %1400 = vmatpush.msra.mxu0 0.0
        %1401 = vmatpush.msra.mxu0 0.0
        %1402 = vmatpush.msra.mxu0 0.0
        %1403 = vmatpush.msra.mxu0 0.0
        %1404 = vmatpush.msra.mxu0 0.0
        %1405 = vmatpush.msra.mxu0 0.0
        %1406 = vmatpush.msra.mxu0 %v1385
        %1407 = vmatmul.f32.gmra.mxu0 %v1383
        %v1408 = vpop.f32.mrf.mxu0
        %v1409 = vadd.f32 0.0, %v1408
        %1410 = vdwg.mxu0
        %1411 = vmatpush.msra.mxu0 0.0
        %1412 = vmatpush.msra.mxu0 0.0
        %1413 = vmatpush.msra.mxu0 0.0
        %1414 = vmatpush.msra.mxu0 0.0
        %1415 = vmatpush.msra.mxu0 0.0
        %1416 = vmatpush.msra.mxu0 0.0
        %1417 = vmatpush.msra.mxu0 0.0
        %1418 = vmatpush.msra.mxu0 0.0
        %1419 = vmatpush.msra.mxu0 0.0
        %1420 = vmatpush.msra.mxu0 0.0
        %1421 = vmatpush.msra.mxu0 0.0
        %1422 = vmatpush.msra.mxu0 0.0
        %1423 = vmatpush.msra.mxu0 0.0
        %1424 = vmatpush.msra.mxu0 0.0
        %1425 = vmatpush.msra.mxu0 0.0
        %1426 = vmatpush.msra.mxu0 %v1387
        %1427 = vmatmul.f32.gmra.mxu0 %v1383
        %v1428 = vpop.f32.mrf.mxu0
        %v1429 = vadd.f32 0.0, %v1428
        %1430 = vdwg.mxu0
        %1431 = vmatpush.msra.mxu0 0.0
        %1432 = vmatpush.msra.mxu0 0.0
        %1433 = vmatpush.msra.mxu0 0.0
        %1434 = vmatpush.msra.mxu0 0.0
        %1435 = vmatpush.msra.mxu0 0.0
        %1436 = vmatpush.msra.mxu0 0.0
        %1437 = vmatpush.msra.mxu0 0.0
        %1438 = vmatpush.msra.mxu0 0.0
        %1439 = vmatpush.msra.mxu0 0.0
        %1440 = vmatpush.msra.mxu0 0.0
        %1441 = vmatpush.msra.mxu0 0.0
        %1442 = vmatpush.msra.mxu0 0.0
        %1443 = vmatpush.msra.mxu0 0.0
        %1444 = vmatpush.msra.mxu0 0.0
        %1445 = vmatpush.msra.mxu0 0.0
        %1446 = vmatpush.msra.mxu0 %v1389
        %1447 = vmatmul.f32.gmra.mxu0 %v1383
        %v1448 = vpop.f32.mrf.mxu0
        %v1449 = vadd.f32 0.0, %v1448
        %1450 = vdwg.mxu0
        %1453 = vst [vmem:[#allocation1] ss:$2 sm:$0xff] %v1359
        %s1454 = scalar_lea.vmem [#allocation1], 16
        %1455 = vst [vmem:[%s1454] ss:$2 sm:$0xff] %v1360
        %v1456 = vld.sshfl [vmem:[#allocation1] sm:$0xff pattern:$0x75316420]
        %v1457 = vld.sshfl [vmem:[#allocation1 + $0x8] sm:$0xff pattern:$0x75316420]
        %v1458 = vld.sshfl [vmem:[#allocation1 + $0x10] sm:$0xff pattern:$0x75316420]
        %1459 = vrot.lane.b32.xlu0 %v1456, 110
        %v1460 = vpop.permute.xlu0 %1459
        %1461 = vrot.lane.b32.xlu0 %v1457, 110
        %v1462 = vpop.permute.xlu0 %1461
        %1463 = vrot.lane.b32.xlu0 %v1458, 110
        %v1464 = vpop.permute.xlu0 %1463
        %v1465 = vsel %vm1379, %v1460, %v1462
        %v1466 = vsel %vm1379, %v1462, %v1464
        %v1468 = vsel %vm366, %v1364, 0
        %v1470 = vsel %vm370, %v1465, 0
        %v1472 = vsel %vm370, %v1466, 0
        %v1474 = vsel %vm370, %v1464, 0
        %1476 = vmatpush.msra.mxu0 0.0
        %1477 = vmatpush.msra.mxu0 0.0
        %1478 = vmatpush.msra.mxu0 0.0
        %1479 = vmatpush.msra.mxu0 0.0
        %1480 = vmatpush.msra.mxu0 0.0
        %1481 = vmatpush.msra.mxu0 0.0
        %1482 = vmatpush.msra.mxu0 0.0
        %1483 = vmatpush.msra.mxu0 0.0
        %1484 = vmatpush.msra.mxu0 0.0
        %1485 = vmatpush.msra.mxu0 0.0
        %1486 = vmatpush.msra.mxu0 0.0
        %1487 = vmatpush.msra.mxu0 0.0
        %1488 = vmatpush.msra.mxu0 0.0
        %1489 = vmatpush.msra.mxu0 0.0
        %1490 = vmatpush.msra.mxu0 0.0
        %1491 = vmatpush.msra.mxu0 %v1470
        %1492 = vmatmul.f32.gmra.mxu0 %v1468
        %v1493 = vpop.f32.mrf.mxu0
        %v1494 = vadd.f32 0.0, %v1493
        %1495 = vdwg.mxu0
        %1496 = vmatpush.msra.mxu0 0.0
        %1497 = vmatpush.msra.mxu0 0.0
        %1498 = vmatpush.msra.mxu0 0.0
        %1499 = vmatpush.msra.mxu0 0.0
        %1500 = vmatpush.msra.mxu0 0.0
        %1501 = vmatpush.msra.mxu0 0.0
        %1502 = vmatpush.msra.mxu0 0.0
        %1503 = vmatpush.msra.mxu0 0.0
        %1504 = vmatpush.msra.mxu0 0.0
        %1505 = vmatpush.msra.mxu0 0.0
        %1506 = vmatpush.msra.mxu0 0.0
        %1507 = vmatpush.msra.mxu0 0.0
        %1508 = vmatpush.msra.mxu0 0.0
        %1509 = vmatpush.msra.mxu0 0.0
        %1510 = vmatpush.msra.mxu0 0.0
        %1511 = vmatpush.msra.mxu0 %v1472
        %1512 = vmatmul.f32.gmra.mxu0 %v1468
        %v1513 = vpop.f32.mrf.mxu0
        %v1514 = vadd.f32 0.0, %v1513
        %1515 = vdwg.mxu0
        %1516 = vmatpush.msra.mxu0 0.0
        %1517 = vmatpush.msra.mxu0 0.0
        %1518 = vmatpush.msra.mxu0 0.0
        %1519 = vmatpush.msra.mxu0 0.0
        %1520 = vmatpush.msra.mxu0 0.0
        %1521 = vmatpush.msra.mxu0 0.0
        %1522 = vmatpush.msra.mxu0 0.0
        %1523 = vmatpush.msra.mxu0 0.0
        %1524 = vmatpush.msra.mxu0 0.0
        %1525 = vmatpush.msra.mxu0 0.0
        %1526 = vmatpush.msra.mxu0 0.0
        %1527 = vmatpush.msra.mxu0 0.0
        %1528 = vmatpush.msra.mxu0 0.0
        %1529 = vmatpush.msra.mxu0 0.0
        %1530 = vmatpush.msra.mxu0 0.0
        %1531 = vmatpush.msra.mxu0 %v1474
        %1532 = vmatmul.f32.gmra.mxu0 %v1468
        %v1533 = vpop.f32.mrf.mxu0
        %v1534 = vadd.f32 0.0, %v1533
        %1535 = vdwg.mxu0
        %1536 = vst [vmem:[#allocation1] ss:$2 sm:$0xff] %v1357
        %s1537 = scalar_lea.vmem [#allocation1], 16
        %1538 = vst [vmem:[%s1537] ss:$2 sm:$0xff] %v1358
        %v1539 = vld.sshfl [vmem:[#allocation1] sm:$0xff pattern:$0x75316420]
        %v1540 = vld.sshfl [vmem:[#allocation1 + $0x8] sm:$0xff pattern:$0x75316420]
        %v1541 = vld.sshfl [vmem:[#allocation1 + $0x10] sm:$0xff pattern:$0x75316420]
        %1542 = vrot.lane.b32.xlu0 %v1539, 110
        %v1543 = vpop.permute.xlu0 %1542
        %1544 = vrot.lane.b32.xlu0 %v1540, 110
        %v1545 = vpop.permute.xlu0 %1544
        %1546 = vrot.lane.b32.xlu0 %v1541, 110
        %v1547 = vpop.permute.xlu0 %1546
        %v1548 = vsel %vm1379, %v1543, %v1545
        %v1549 = vsel %vm1379, %v1545, %v1547
        %v1550 = vsel %vm370, %v1548, 0
        %v1552 = vsel %vm370, %v1549, 0
        %v1554 = vsel %vm370, %v1547, 0
        %1556 = vmatpush.msra.mxu0 0.0
        %1557 = vmatpush.msra.mxu0 0.0
        %1558 = vmatpush.msra.mxu0 0.0
        %1559 = vmatpush.msra.mxu0 0.0
        %1560 = vmatpush.msra.mxu0 0.0
        %1561 = vmatpush.msra.mxu0 0.0
        %1562 = vmatpush.msra.mxu0 0.0
        %1563 = vmatpush.msra.mxu0 0.0
        %1564 = vmatpush.msra.mxu0 0.0
        %1565 = vmatpush.msra.mxu0 0.0
        %1566 = vmatpush.msra.mxu0 0.0
        %1567 = vmatpush.msra.mxu0 0.0
        %1568 = vmatpush.msra.mxu0 0.0
        %1569 = vmatpush.msra.mxu0 0.0
        %1570 = vmatpush.msra.mxu0 0.0
        %1571 = vmatpush.msra.mxu0 %v1550
        %1572 = vmatmul.f32.gmra.mxu0 %v1468
        %v1573 = vpop.f32.mrf.mxu0
        %v1574 = vadd.f32 0.0, %v1573
        %1575 = vdwg.mxu0
        %1576 = vmatpush.msra.mxu0 0.0
        %1577 = vmatpush.msra.mxu0 0.0
        %1578 = vmatpush.msra.mxu0 0.0
        %1579 = vmatpush.msra.mxu0 0.0
        %1580 = vmatpush.msra.mxu0 0.0
        %1581 = vmatpush.msra.mxu0 0.0
        %1582 = vmatpush.msra.mxu0 0.0
        %1583 = vmatpush.msra.mxu0 0.0
        %1584 = vmatpush.msra.mxu0 0.0
        %1585 = vmatpush.msra.mxu0 0.0
        %1586 = vmatpush.msra.mxu0 0.0
        %1587 = vmatpush.msra.mxu0 0.0
        %1588 = vmatpush.msra.mxu0 0.0
        %1589 = vmatpush.msra.mxu0 0.0
        %1590 = vmatpush.msra.mxu0 0.0
        %1591 = vmatpush.msra.mxu0 %v1552
        %1592 = vmatmul.f32.gmra.mxu0 %v1468
        %v1593 = vpop.f32.mrf.mxu0
        %v1594 = vadd.f32 0.0, %v1593
        %1595 = vdwg.mxu0
        %1596 = vmatpush.msra.mxu0 0.0
        %1597 = vmatpush.msra.mxu0 0.0
        %1598 = vmatpush.msra.mxu0 0.0
        %1599 = vmatpush.msra.mxu0 0.0
        %1600 = vmatpush.msra.mxu0 0.0
        %1601 = vmatpush.msra.mxu0 0.0
        %1602 = vmatpush.msra.mxu0 0.0
        %1603 = vmatpush.msra.mxu0 0.0
        %1604 = vmatpush.msra.mxu0 0.0
        %1605 = vmatpush.msra.mxu0 0.0
        %1606 = vmatpush.msra.mxu0 0.0
        %1607 = vmatpush.msra.mxu0 0.0
        %1608 = vmatpush.msra.mxu0 0.0
        %1609 = vmatpush.msra.mxu0 0.0
        %1610 = vmatpush.msra.mxu0 0.0
        %1611 = vmatpush.msra.mxu0 %v1554
        %1612 = vmatmul.f32.gmra.mxu0 %v1468
        %v1613 = vpop.f32.mrf.mxu0
        %v1614 = vadd.f32 0.0, %v1613
        %1615 = vdwg.mxu0
        %v1616 = vsub.f32 %v1409, %v1494
        %v1617 = vsub.f32 %v1429, %v1514
        %v1618 = vsub.f32 %v1449, %v1534
        %1619 = vst [vmem:[#allocation1] ss:$2 sm:$0xff] %v1359
        %s1620 = scalar_lea.vmem [#allocation1], 16
        %1621 = vst [vmem:[%s1620] ss:$2 sm:$0xff] %v1360
        %v1622 = vld.sshfl [vmem:[#allocation1] sm:$0xff pattern:$0x75316420]
        %v1623 = vld.sshfl [vmem:[#allocation1 + $0x8] sm:$0xff pattern:$0x75316420]
        %v1624 = vld.sshfl [vmem:[#allocation1 + $0x10] sm:$0xff pattern:$0x75316420]
        %1625 = vrot.lane.b32.xlu0 %v1622, 110
        %v1626 = vpop.permute.xlu0 %1625
        %1627 = vrot.lane.b32.xlu0 %v1623, 110
        %v1628 = vpop.permute.xlu0 %1627
        %1629 = vrot.lane.b32.xlu0 %v1624, 110
        %v1630 = vpop.permute.xlu0 %1629
        %v1631 = vsel %vm1379, %v1626, %v1628
        %v1632 = vsel %vm1379, %v1628, %v1630
        %v1633 = vsel %vm370, %v1631, 0
        %v1635 = vsel %vm370, %v1632, 0
        %v1637 = vsel %vm370, %v1630, 0
        %1639 = vmatpush.msra.mxu0 0.0
        %1640 = vmatpush.msra.mxu0 0.0
        %1641 = vmatpush.msra.mxu0 0.0
        %1642 = vmatpush.msra.mxu0 0.0
        %1643 = vmatpush.msra.mxu0 0.0
        %1644 = vmatpush.msra.mxu0 0.0
        %1645 = vmatpush.msra.mxu0 0.0
        %1646 = vmatpush.msra.mxu0 0.0
        %1647 = vmatpush.msra.mxu0 0.0
        %1648 = vmatpush.msra.mxu0 0.0
        %1649 = vmatpush.msra.mxu0 0.0
        %1650 = vmatpush.msra.mxu0 0.0
        %1651 = vmatpush.msra.mxu0 0.0
        %1652 = vmatpush.msra.mxu0 0.0
        %1653 = vmatpush.msra.mxu0 0.0
        %1654 = vmatpush.msra.mxu0 %v1633
        %1655 = vmatmul.f32.gmra.mxu0 %v1383
        %v1656 = vpop.f32.mrf.mxu0
        %v1657 = vadd.f32 %v1574, %v1656
        %1658 = vdwg.mxu0
        %1659 = vmatpush.msra.mxu0 0.0
        %1660 = vmatpush.msra.mxu0 0.0
        %1661 = vmatpush.msra.mxu0 0.0
        %1662 = vmatpush.msra.mxu0 0.0
        %1663 = vmatpush.msra.mxu0 0.0
        %1664 = vmatpush.msra.mxu0 0.0
        %1665 = vmatpush.msra.mxu0 0.0
        %1666 = vmatpush.msra.mxu0 0.0
        %1667 = vmatpush.msra.mxu0 0.0
        %1668 = vmatpush.msra.mxu0 0.0
        %1669 = vmatpush.msra.mxu0 0.0
        %1670 = vmatpush.msra.mxu0 0.0
        %1671 = vmatpush.msra.mxu0 0.0
        %1672 = vmatpush.msra.mxu0 0.0
        %1673 = vmatpush.msra.mxu0 0.0
        %1674 = vmatpush.msra.mxu0 %v1635
        %1675 = vmatmul.f32.gmra.mxu0 %v1383
        %v1676 = vpop.f32.mrf.mxu0
        %v1677 = vadd.f32 %v1594, %v1676
        %1678 = vdwg.mxu0
        %1679 = vmatpush.msra.mxu0 0.0
        %1680 = vmatpush.msra.mxu0 0.0
        %1681 = vmatpush.msra.mxu0 0.0
        %1682 = vmatpush.msra.mxu0 0.0
        %1683 = vmatpush.msra.mxu0 0.0
        %1684 = vmatpush.msra.mxu0 0.0
        %1685 = vmatpush.msra.mxu0 0.0
        %1686 = vmatpush.msra.mxu0 0.0
        %1687 = vmatpush.msra.mxu0 0.0
        %1688 = vmatpush.msra.mxu0 0.0
        %1689 = vmatpush.msra.mxu0 0.0
        %1690 = vmatpush.msra.mxu0 0.0
        %1691 = vmatpush.msra.mxu0 0.0
        %1692 = vmatpush.msra.mxu0 0.0
        %1693 = vmatpush.msra.mxu0 0.0
        %1694 = vmatpush.msra.mxu0 %v1637
        %1695 = vmatmul.f32.gmra.mxu0 %v1383
        %v1696 = vpop.f32.mrf.mxu0
        %v1697 = vadd.f32 %v1614, %v1696
        %1698 = vdwg.mxu0
        %v1699 = vadd.f32 %v1351, %v1616
        %v1700 = vadd.f32 %v1352, %v1617
        %v1701 = vadd.f32 %v1353, %v1618
        %v1702 = vadd.f32 %v1354, %v1657
        %v1703 = vadd.f32 %v1355, %v1677
        %v1704 = vadd.f32 %v1356, %v1697
        %v1705 = vld [vmem:[%s342] sm:$0xff]
        %v1706 = vld [vmem:[%s342 + $0x8] sm:$0xf]
        %v1707 = vld [vmem:[%s351] sm:$0xff]
        %v1708 = vld [vmem:[%s351 + $0x8] sm:$0xf]
        %s1709 = scalar_lea.vmem %s2, 32
        %v1710 = vld [vmem:[%s1709] sm:$0xff]
        %s1711 = scalar_lea.vmem %s3, 32
        %v1712 = vld [vmem:[%s1711] sm:$0xff]
        %1715 = vst [vmem:[#allocation1] ss:$2 sm:$0xff] %v1705
        %s1716 = scalar_lea.vmem [#allocation1], 16
        %1717 = vst [vmem:[%s1716] ss:$2 sm:$0xff] %v1706
        %v1718 = vld.sshfl [vmem:[#allocation1] sm:$0xff pattern:$0x75316420]
        %v1719 = vld.sshfl [vmem:[#allocation1 + $0x8] sm:$0xff pattern:$0x75316420]
        %v1720 = vld.sshfl [vmem:[#allocation1 + $0x10] sm:$0xff pattern:$0x75316420]
        %1721 = vrot.lane.b32.xlu0 %v1718, 109
        %v1722 = vpop.permute.xlu0 %1721
        %1723 = vrot.lane.b32.xlu0 %v1719, 109
        %v1724 = vpop.permute.xlu0 %1723
        %1725 = vrot.lane.b32.xlu0 %v1720, 109
        %v1726 = vpop.permute.xlu0 %1725
        %vm1727 = vcmask 891904
        %v1728 = vsel %vm1727, %v1722, %v1724
        %v1729 = vsel %vm1727, %v1724, %v1726
        %v1731 = vsel %vm366, %v1710, 0
        %v1733 = vsel %vm370, %v1728, 0
        %v1735 = vsel %vm370, %v1729, 0
        %v1737 = vsel %vm370, %v1726, 0
        %1739 = vmatpush.msra.mxu0 0.0
        %1740 = vmatpush.msra.mxu0 0.0
        %1741 = vmatpush.msra.mxu0 0.0
        %1742 = vmatpush.msra.mxu0 0.0
        %1743 = vmatpush.msra.mxu0 0.0
        %1744 = vmatpush.msra.mxu0 0.0
        %1745 = vmatpush.msra.mxu0 0.0
        %1746 = vmatpush.msra.mxu0 0.0
        %1747 = vmatpush.msra.mxu0 0.0
        %1748 = vmatpush.msra.mxu0 0.0
        %1749 = vmatpush.msra.mxu0 0.0
        %1750 = vmatpush.msra.mxu0 0.0
        %1751 = vmatpush.msra.mxu0 0.0
        %1752 = vmatpush.msra.mxu0 0.0
        %1753 = vmatpush.msra.mxu0 0.0
        %1754 = vmatpush.msra.mxu0 %v1733
        %1755 = vmatmul.f32.gmra.mxu0 %v1731
        %v1756 = vpop.f32.mrf.mxu0
        %v1757 = vadd.f32 0.0, %v1756
        %1758 = vdwg.mxu0
        %1759 = vmatpush.msra.mxu0 0.0
        %1760 = vmatpush.msra.mxu0 0.0
        %1761 = vmatpush.msra.mxu0 0.0
        %1762 = vmatpush.msra.mxu0 0.0
        %1763 = vmatpush.msra.mxu0 0.0
        %1764 = vmatpush.msra.mxu0 0.0
        %1765 = vmatpush.msra.mxu0 0.0
        %1766 = vmatpush.msra.mxu0 0.0
        %1767 = vmatpush.msra.mxu0 0.0
        %1768 = vmatpush.msra.mxu0 0.0
        %1769 = vmatpush.msra.mxu0 0.0
        %1770 = vmatpush.msra.mxu0 0.0
        %1771 = vmatpush.msra.mxu0 0.0
        %1772 = vmatpush.msra.mxu0 0.0
        %1773 = vmatpush.msra.mxu0 0.0
        %1774 = vmatpush.msra.mxu0 %v1735
        %1775 = vmatmul.f32.gmra.mxu0 %v1731
        %v1776 = vpop.f32.mrf.mxu0
        %v1777 = vadd.f32 0.0, %v1776
        %1778 = vdwg.mxu0
        %1779 = vmatpush.msra.mxu0 0.0
        %1780 = vmatpush.msra.mxu0 0.0
        %1781 = vmatpush.msra.mxu0 0.0
        %1782 = vmatpush.msra.mxu0 0.0
        %1783 = vmatpush.msra.mxu0 0.0
        %1784 = vmatpush.msra.mxu0 0.0
        %1785 = vmatpush.msra.mxu0 0.0
        %1786 = vmatpush.msra.mxu0 0.0
        %1787 = vmatpush.msra.mxu0 0.0
        %1788 = vmatpush.msra.mxu0 0.0
        %1789 = vmatpush.msra.mxu0 0.0
        %1790 = vmatpush.msra.mxu0 0.0
        %1791 = vmatpush.msra.mxu0 0.0
        %1792 = vmatpush.msra.mxu0 0.0
        %1793 = vmatpush.msra.mxu0 0.0
        %1794 = vmatpush.msra.mxu0 %v1737
        %1795 = vmatmul.f32.gmra.mxu0 %v1731
        %v1796 = vpop.f32.mrf.mxu0
        %v1797 = vadd.f32 0.0, %v1796
        %1798 = vdwg.mxu0
        %1801 = vst [vmem:[#allocation1] ss:$2 sm:$0xff] %v1707
        %s1802 = scalar_lea.vmem [#allocation1], 16
        %1803 = vst [vmem:[%s1802] ss:$2 sm:$0xff] %v1708
        %v1804 = vld.sshfl [vmem:[#allocation1] sm:$0xff pattern:$0x75316420]
        %v1805 = vld.sshfl [vmem:[#allocation1 + $0x8] sm:$0xff pattern:$0x75316420]
        %v1806 = vld.sshfl [vmem:[#allocation1 + $0x10] sm:$0xff pattern:$0x75316420]
        %1807 = vrot.lane.b32.xlu0 %v1804, 109
        %v1808 = vpop.permute.xlu0 %1807
        %1809 = vrot.lane.b32.xlu0 %v1805, 109
        %v1810 = vpop.permute.xlu0 %1809
        %1811 = vrot.lane.b32.xlu0 %v1806, 109
        %v1812 = vpop.permute.xlu0 %1811
        %v1813 = vsel %vm1727, %v1808, %v1810
        %v1814 = vsel %vm1727, %v1810, %v1812
        %v1816 = vsel %vm366, %v1712, 0
        %v1818 = vsel %vm370, %v1813, 0
        %v1820 = vsel %vm370, %v1814, 0
        %v1822 = vsel %vm370, %v1812, 0
        %1824 = vmatpush.msra.mxu0 0.0
        %1825 = vmatpush.msra.mxu0 0.0
        %1826 = vmatpush.msra.mxu0 0.0
        %1827 = vmatpush.msra.mxu0 0.0
        %1828 = vmatpush.msra.mxu0 0.0
        %1829 = vmatpush.msra.mxu0 0.0
        %1830 = vmatpush.msra.mxu0 0.0
        %1831 = vmatpush.msra.mxu0 0.0
        %1832 = vmatpush.msra.mxu0 0.0
        %1833 = vmatpush.msra.mxu0 0.0
        %1834 = vmatpush.msra.mxu0 0.0
        %1835 = vmatpush.msra.mxu0 0.0
        %1836 = vmatpush.msra.mxu0 0.0
        %1837 = vmatpush.msra.mxu0 0.0
        %1838 = vmatpush.msra.mxu0 0.0
        %1839 = vmatpush.msra.mxu0 %v1818
        %1840 = vmatmul.f32.gmra.mxu0 %v1816
        %v1841 = vpop.f32.mrf.mxu0
        %v1842 = vadd.f32 0.0, %v1841
        %1843 = vdwg.mxu0
        %1844 = vmatpush.msra.mxu0 0.0
        %1845 = vmatpush.msra.mxu0 0.0
        %1846 = vmatpush.msra.mxu0 0.0
        %1847 = vmatpush.msra.mxu0 0.0
        %1848 = vmatpush.msra.mxu0 0.0
        %1849 = vmatpush.msra.mxu0 0.0
        %1850 = vmatpush.msra.mxu0 0.0
        %1851 = vmatpush.msra.mxu0 0.0
        %1852 = vmatpush.msra.mxu0 0.0
        %1853 = vmatpush.msra.mxu0 0.0
        %1854 = vmatpush.msra.mxu0 0.0
        %1855 = vmatpush.msra.mxu0 0.0
        %1856 = vmatpush.msra.mxu0 0.0
        %1857 = vmatpush.msra.mxu0 0.0
        %1858 = vmatpush.msra.mxu0 0.0
        %1859 = vmatpush.msra.mxu0 %v1820
        %1860 = vmatmul.f32.gmra.mxu0 %v1816
        %v1861 = vpop.f32.mrf.mxu0
        %v1862 = vadd.f32 0.0, %v1861
        %1863 = vdwg.mxu0
        %1864 = vmatpush.msra.mxu0 0.0
        %1865 = vmatpush.msra.mxu0 0.0
        %1866 = vmatpush.msra.mxu0 0.0
        %1867 = vmatpush.msra.mxu0 0.0
        %1868 = vmatpush.msra.mxu0 0.0
        %1869 = vmatpush.msra.mxu0 0.0
        %1870 = vmatpush.msra.mxu0 0.0
        %1871 = vmatpush.msra.mxu0 0.0
        %1872 = vmatpush.msra.mxu0 0.0
        %1873 = vmatpush.msra.mxu0 0.0
        %1874 = vmatpush.msra.mxu0 0.0
        %1875 = vmatpush.msra.mxu0 0.0
        %1876 = vmatpush.msra.mxu0 0.0
        %1877 = vmatpush.msra.mxu0 0.0
        %1878 = vmatpush.msra.mxu0 0.0
        %1879 = vmatpush.msra.mxu0 %v1822
        %1880 = vmatmul.f32.gmra.mxu0 %v1816
        %v1881 = vpop.f32.mrf.mxu0
        %v1882 = vadd.f32 0.0, %v1881
        %1883 = vdwg.mxu0
        %1884 = vst [vmem:[#allocation1] ss:$2 sm:$0xff] %v1705
        %s1885 = scalar_lea.vmem [#allocation1], 16
        %1886 = vst [vmem:[%s1885] ss:$2 sm:$0xff] %v1706
        %v1887 = vld.sshfl [vmem:[#allocation1] sm:$0xff pattern:$0x75316420]
        %v1888 = vld.sshfl [vmem:[#allocation1 + $0x8] sm:$0xff pattern:$0x75316420]
        %v1889 = vld.sshfl [vmem:[#allocation1 + $0x10] sm:$0xff pattern:$0x75316420]
        %1890 = vrot.lane.b32.xlu0 %v1887, 109
        %v1891 = vpop.permute.xlu0 %1890
        %1892 = vrot.lane.b32.xlu0 %v1888, 109
        %v1893 = vpop.permute.xlu0 %1892
        %1894 = vrot.lane.b32.xlu0 %v1889, 109
        %v1895 = vpop.permute.xlu0 %1894
        %v1896 = vsel %vm1727, %v1891, %v1893
        %v1897 = vsel %vm1727, %v1893, %v1895
        %v1898 = vsel %vm370, %v1896, 0
        %v1900 = vsel %vm370, %v1897, 0
        %v1902 = vsel %vm370, %v1895, 0
        %1904 = vmatpush.msra.mxu0 0.0
        %1905 = vmatpush.msra.mxu0 0.0
        %1906 = vmatpush.msra.mxu0 0.0
        %1907 = vmatpush.msra.mxu0 0.0
        %1908 = vmatpush.msra.mxu0 0.0
        %1909 = vmatpush.msra.mxu0 0.0
        %1910 = vmatpush.msra.mxu0 0.0
        %1911 = vmatpush.msra.mxu0 0.0
        %1912 = vmatpush.msra.mxu0 0.0
        %1913 = vmatpush.msra.mxu0 0.0
        %1914 = vmatpush.msra.mxu0 0.0
        %1915 = vmatpush.msra.mxu0 0.0
        %1916 = vmatpush.msra.mxu0 0.0
        %1917 = vmatpush.msra.mxu0 0.0
        %1918 = vmatpush.msra.mxu0 0.0
        %1919 = vmatpush.msra.mxu0 %v1898
        %1920 = vmatmul.f32.gmra.mxu0 %v1816
        %v1921 = vpop.f32.mrf.mxu0
        %v1922 = vadd.f32 0.0, %v1921
        %1923 = vdwg.mxu0
        %1924 = vmatpush.msra.mxu0 0.0
        %1925 = vmatpush.msra.mxu0 0.0
        %1926 = vmatpush.msra.mxu0 0.0
        %1927 = vmatpush.msra.mxu0 0.0
        %1928 = vmatpush.msra.mxu0 0.0
        %1929 = vmatpush.msra.mxu0 0.0
        %1930 = vmatpush.msra.mxu0 0.0
        %1931 = vmatpush.msra.mxu0 0.0
        %1932 = vmatpush.msra.mxu0 0.0
        %1933 = vmatpush.msra.mxu0 0.0
        %1934 = vmatpush.msra.mxu0 0.0
        %1935 = vmatpush.msra.mxu0 0.0
        %1936 = vmatpush.msra.mxu0 0.0
        %1937 = vmatpush.msra.mxu0 0.0
        %1938 = vmatpush.msra.mxu0 0.0
        %1939 = vmatpush.msra.mxu0 %v1900
        %1940 = vmatmul.f32.gmra.mxu0 %v1816
        %v1941 = vpop.f32.mrf.mxu0
        %v1942 = vadd.f32 0.0, %v1941
        %1943 = vdwg.mxu0
        %1944 = vmatpush.msra.mxu0 0.0
        %1945 = vmatpush.msra.mxu0 0.0
        %1946 = vmatpush.msra.mxu0 0.0
        %1947 = vmatpush.msra.mxu0 0.0
        %1948 = vmatpush.msra.mxu0 0.0
        %1949 = vmatpush.msra.mxu0 0.0
        %1950 = vmatpush.msra.mxu0 0.0
        %1951 = vmatpush.msra.mxu0 0.0
        %1952 = vmatpush.msra.mxu0 0.0
        %1953 = vmatpush.msra.mxu0 0.0
        %1954 = vmatpush.msra.mxu0 0.0
        %1955 = vmatpush.msra.mxu0 0.0
        %1956 = vmatpush.msra.mxu0 0.0
        %1957 = vmatpush.msra.mxu0 0.0
        %1958 = vmatpush.msra.mxu0 0.0
        %1959 = vmatpush.msra.mxu0 %v1902
        %1960 = vmatmul.f32.gmra.mxu0 %v1816
        %v1961 = vpop.f32.mrf.mxu0
        %v1962 = vadd.f32 0.0, %v1961
        %1963 = vdwg.mxu0
        %v1964 = vsub.f32 %v1757, %v1842
        %v1965 = vsub.f32 %v1777, %v1862
        %v1966 = vsub.f32 %v1797, %v1882
        %1967 = vst [vmem:[#allocation1] ss:$2 sm:$0xff] %v1707
        %s1968 = scalar_lea.vmem [#allocation1], 16
        %1969 = vst [vmem:[%s1968] ss:$2 sm:$0xff] %v1708
        %v1970 = vld.sshfl [vmem:[#allocation1] sm:$0xff pattern:$0x75316420]
        %v1971 = vld.sshfl [vmem:[#allocation1 + $0x8] sm:$0xff pattern:$0x75316420]
        %v1972 = vld.sshfl [vmem:[#allocation1 + $0x10] sm:$0xff pattern:$0x75316420]
        %1973 = vrot.lane.b32.xlu0 %v1970, 109
        %v1974 = vpop.permute.xlu0 %1973
        %1975 = vrot.lane.b32.xlu0 %v1971, 109
        %v1976 = vpop.permute.xlu0 %1975
        %1977 = vrot.lane.b32.xlu0 %v1972, 109
        %v1978 = vpop.permute.xlu0 %1977
        %v1979 = vsel %vm1727, %v1974, %v1976
        %v1980 = vsel %vm1727, %v1976, %v1978
        %v1981 = vsel %vm370, %v1979, 0
        %v1983 = vsel %vm370, %v1980, 0
        %v1985 = vsel %vm370, %v1978, 0
        %1987 = vmatpush.msra.mxu0 0.0
        %1988 = vmatpush.msra.mxu0 0.0
        %1989 = vmatpush.msra.mxu0 0.0
        %1990 = vmatpush.msra.mxu0 0.0
        %1991 = vmatpush.msra.mxu0 0.0
        %1992 = vmatpush.msra.mxu0 0.0
        %1993 = vmatpush.msra.mxu0 0.0
        %1994 = vmatpush.msra.mxu0 0.0
        %1995 = vmatpush.msra.mxu0 0.0
        %1996 = vmatpush.msra.mxu0 0.0
        %1997 = vmatpush.msra.mxu0 0.0
        %1998 = vmatpush.msra.mxu0 0.0
        %1999 = vmatpush.msra.mxu0 0.0
        %2000 = vmatpush.msra.mxu0 0.0
        %2001 = vmatpush.msra.mxu0 0.0
        %2002 = vmatpush.msra.mxu0 %v1981
        %2003 = vmatmul.f32.gmra.mxu0 %v1731
        %v2004 = vpop.f32.mrf.mxu0
        %v2005 = vadd.f32 %v1922, %v2004
        %2006 = vdwg.mxu0
        %2007 = vmatpush.msra.mxu0 0.0
        %2008 = vmatpush.msra.mxu0 0.0
        %2009 = vmatpush.msra.mxu0 0.0
        %2010 = vmatpush.msra.mxu0 0.0
        %2011 = vmatpush.msra.mxu0 0.0
        %2012 = vmatpush.msra.mxu0 0.0
        %2013 = vmatpush.msra.mxu0 0.0
        %2014 = vmatpush.msra.mxu0 0.0
        %2015 = vmatpush.msra.mxu0 0.0
        %2016 = vmatpush.msra.mxu0 0.0
        %2017 = vmatpush.msra.mxu0 0.0
        %2018 = vmatpush.msra.mxu0 0.0
        %2019 = vmatpush.msra.mxu0 0.0
        %2020 = vmatpush.msra.mxu0 0.0
        %2021 = vmatpush.msra.mxu0 0.0
        %2022 = vmatpush.msra.mxu0 %v1983
        %2023 = vmatmul.f32.gmra.mxu0 %v1731
        %v2024 = vpop.f32.mrf.mxu0
        %v2025 = vadd.f32 %v1942, %v2024
        %2026 = vdwg.mxu0
        %2027 = vmatpush.msra.mxu0 0.0
        %2028 = vmatpush.msra.mxu0 0.0
        %2029 = vmatpush.msra.mxu0 0.0
        %2030 = vmatpush.msra.mxu0 0.0
        %2031 = vmatpush.msra.mxu0 0.0
        %2032 = vmatpush.msra.mxu0 0.0
        %2033 = vmatpush.msra.mxu0 0.0
        %2034 = vmatpush.msra.mxu0 0.0
        %2035 = vmatpush.msra.mxu0 0.0
        %2036 = vmatpush.msra.mxu0 0.0
        %2037 = vmatpush.msra.mxu0 0.0
        %2038 = vmatpush.msra.mxu0 0.0
        %2039 = vmatpush.msra.mxu0 0.0
        %2040 = vmatpush.msra.mxu0 0.0
        %2041 = vmatpush.msra.mxu0 0.0
        %2042 = vmatpush.msra.mxu0 %v1985
        %2043 = vmatmul.f32.gmra.mxu0 %v1731
        %v2044 = vpop.f32.mrf.mxu0
        %v2045 = vadd.f32 %v1962, %v2044
        %2046 = vdwg.mxu0
        %v2047 = vadd.f32 %v1699, %v1964
        %v2048 = vadd.f32 %v1700, %v1965
        %v2049 = vadd.f32 %v1701, %v1966
        %v2050 = vadd.f32 %v1702, %v2005
        %v2051 = vadd.f32 %v1703, %v2025
        %v2052 = vadd.f32 %v1704, %v2045
        %v2053 = vld [vmem:[%s342] sm:$0xff]
        %v2054 = vld [vmem:[%s342 + $0x8] sm:$0xf]
        %v2055 = vld [vmem:[%s351] sm:$0xff]
        %v2056 = vld [vmem:[%s351 + $0x8] sm:$0xf]
        %s2057 = scalar_lea.vmem %s2, 40
        %v2058 = vld [vmem:[%s2057] sm:$0xff]
        %s2059 = scalar_lea.vmem %s3, 40
        %v2060 = vld [vmem:[%s2059] sm:$0xff]
        %2063 = vst [vmem:[#allocation1] ss:$2 sm:$0xff] %v2053
        %s2064 = scalar_lea.vmem [#allocation1], 16
        %2065 = vst [vmem:[%s2064] ss:$2 sm:$0xff] %v2054
        %v2066 = vld.sshfl [vmem:[#allocation1] sm:$0xff pattern:$0x75316420]
        %v2067 = vld.sshfl [vmem:[#allocation1 + $0x8] sm:$0xff pattern:$0x75316420]
        %v2068 = vld.sshfl [vmem:[#allocation1 + $0x10] sm:$0xff pattern:$0x75316420]
        %2069 = vrot.lane.b32.xlu0 %v2066, 108
        %v2070 = vpop.permute.xlu0 %2069
        %2071 = vrot.lane.b32.xlu0 %v2067, 108
        %v2072 = vpop.permute.xlu0 %2071
        %2073 = vrot.lane.b32.xlu0 %v2068, 108
        %v2074 = vpop.permute.xlu0 %2073
        %vm2075 = vcmask 883712
        %v2076 = vsel %vm2075, %v2070, %v2072
        %v2077 = vsel %vm2075, %v2072, %v2074
        %v2079 = vsel %vm366, %v2058, 0
        %v2081 = vsel %vm370, %v2076, 0
        %v2083 = vsel %vm370, %v2077, 0
        %v2085 = vsel %vm370, %v2074, 0
        %2087 = vmatpush.msra.mxu0 0.0
        %2088 = vmatpush.msra.mxu0 0.0
        %2089 = vmatpush.msra.mxu0 0.0
        %2090 = vmatpush.msra.mxu0 0.0
        %2091 = vmatpush.msra.mxu0 0.0
        %2092 = vmatpush.msra.mxu0 0.0
        %2093 = vmatpush.msra.mxu0 0.0
        %2094 = vmatpush.msra.mxu0 0.0
        %2095 = vmatpush.msra.mxu0 0.0
        %2096 = vmatpush.msra.mxu0 0.0
        %2097 = vmatpush.msra.mxu0 0.0
        %2098 = vmatpush.msra.mxu0 0.0
        %2099 = vmatpush.msra.mxu0 0.0
        %2100 = vmatpush.msra.mxu0 0.0
        %2101 = vmatpush.msra.mxu0 0.0
        %2102 = vmatpush.msra.mxu0 %v2081
        %2103 = vmatmul.f32.gmra.mxu0 %v2079
        %v2104 = vpop.f32.mrf.mxu0
        %v2105 = vadd.f32 0.0, %v2104
        %2106 = vdwg.mxu0
        %2107 = vmatpush.msra.mxu0 0.0
        %2108 = vmatpush.msra.mxu0 0.0
        %2109 = vmatpush.msra.mxu0 0.0
        %2110 = vmatpush.msra.mxu0 0.0
        %2111 = vmatpush.msra.mxu0 0.0
        %2112 = vmatpush.msra.mxu0 0.0
        %2113 = vmatpush.msra.mxu0 0.0
        %2114 = vmatpush.msra.mxu0 0.0
        %2115 = vmatpush.msra.mxu0 0.0
        %2116 = vmatpush.msra.mxu0 0.0
        %2117 = vmatpush.msra.mxu0 0.0
        %2118 = vmatpush.msra.mxu0 0.0
        %2119 = vmatpush.msra.mxu0 0.0
        %2120 = vmatpush.msra.mxu0 0.0
        %2121 = vmatpush.msra.mxu0 0.0
        %2122 = vmatpush.msra.mxu0 %v2083
        %2123 = vmatmul.f32.gmra.mxu0 %v2079
        %v2124 = vpop.f32.mrf.mxu0
        %v2125 = vadd.f32 0.0, %v2124
        %2126 = vdwg.mxu0
        %2127 = vmatpush.msra.mxu0 0.0
        %2128 = vmatpush.msra.mxu0 0.0
        %2129 = vmatpush.msra.mxu0 0.0
        %2130 = vmatpush.msra.mxu0 0.0
        %2131 = vmatpush.msra.mxu0 0.0
        %2132 = vmatpush.msra.mxu0 0.0
        %2133 = vmatpush.msra.mxu0 0.0
        %2134 = vmatpush.msra.mxu0 0.0
        %2135 = vmatpush.msra.mxu0 0.0
        %2136 = vmatpush.msra.mxu0 0.0
        %2137 = vmatpush.msra.mxu0 0.0
        %2138 = vmatpush.msra.mxu0 0.0
        %2139 = vmatpush.msra.mxu0 0.0
        %2140 = vmatpush.msra.mxu0 0.0
        %2141 = vmatpush.msra.mxu0 0.0
        %2142 = vmatpush.msra.mxu0 %v2085
        %2143 = vmatmul.f32.gmra.mxu0 %v2079
        %v2144 = vpop.f32.mrf.mxu0
        %v2145 = vadd.f32 0.0, %v2144
        %2146 = vdwg.mxu0
        %2149 = vst [vmem:[#allocation1] ss:$2 sm:$0xff] %v2055
        %s2150 = scalar_lea.vmem [#allocation1], 16
        %2151 = vst [vmem:[%s2150] ss:$2 sm:$0xff] %v2056
        %v2152 = vld.sshfl [vmem:[#allocation1] sm:$0xff pattern:$0x75316420]
        %v2153 = vld.sshfl [vmem:[#allocation1 + $0x8] sm:$0xff pattern:$0x75316420]
        %v2154 = vld.sshfl [vmem:[#allocation1 + $0x10] sm:$0xff pattern:$0x75316420]
        %2155 = vrot.lane.b32.xlu0 %v2152, 108
        %v2156 = vpop.permute.xlu0 %2155
        %2157 = vrot.lane.b32.xlu0 %v2153, 108
        %v2158 = vpop.permute.xlu0 %2157
        %2159 = vrot.lane.b32.xlu0 %v2154, 108
        %v2160 = vpop.permute.xlu0 %2159
        %v2161 = vsel %vm2075, %v2156, %v2158
        %v2162 = vsel %vm2075, %v2158, %v2160
        %v2164 = vsel %vm366, %v2060, 0
        %v2166 = vsel %vm370, %v2161, 0
        %v2168 = vsel %vm370, %v2162, 0
        %v2170 = vsel %vm370, %v2160, 0
        %2172 = vmatpush.msra.mxu0 0.0
        %2173 = vmatpush.msra.mxu0 0.0
        %2174 = vmatpush.msra.mxu0 0.0
        %2175 = vmatpush.msra.mxu0 0.0
        %2176 = vmatpush.msra.mxu0 0.0
        %2177 = vmatpush.msra.mxu0 0.0
        %2178 = vmatpush.msra.mxu0 0.0
        %2179 = vmatpush.msra.mxu0 0.0
        %2180 = vmatpush.msra.mxu0 0.0
        %2181 = vmatpush.msra.mxu0 0.0
        %2182 = vmatpush.msra.mxu0 0.0
        %2183 = vmatpush.msra.mxu0 0.0
        %2184 = vmatpush.msra.mxu0 0.0
        %2185 = vmatpush.msra.mxu0 0.0
        %2186 = vmatpush.msra.mxu0 0.0
        %2187 = vmatpush.msra.mxu0 %v2166
        %2188 = vmatmul.f32.gmra.mxu0 %v2164
        %v2189 = vpop.f32.mrf.mxu0
        %v2190 = vadd.f32 0.0, %v2189
        %2191 = vdwg.mxu0
        %2192 = vmatpush.msra.mxu0 0.0
        %2193 = vmatpush.msra.mxu0 0.0
        %2194 = vmatpush.msra.mxu0 0.0
        %2195 = vmatpush.msra.mxu0 0.0
        %2196 = vmatpush.msra.mxu0 0.0
        %2197 = vmatpush.msra.mxu0 0.0
        %2198 = vmatpush.msra.mxu0 0.0
        %2199 = vmatpush.msra.mxu0 0.0
        %2200 = vmatpush.msra.mxu0 0.0
        %2201 = vmatpush.msra.mxu0 0.0
        %2202 = vmatpush.msra.mxu0 0.0
        %2203 = vmatpush.msra.mxu0 0.0
        %2204 = vmatpush.msra.mxu0 0.0
        %2205 = vmatpush.msra.mxu0 0.0
        %2206 = vmatpush.msra.mxu0 0.0
        %2207 = vmatpush.msra.mxu0 %v2168
        %2208 = vmatmul.f32.gmra.mxu0 %v2164
        %v2209 = vpop.f32.mrf.mxu0
        %v2210 = vadd.f32 0.0, %v2209
        %2211 = vdwg.mxu0
        %2212 = vmatpush.msra.mxu0 0.0
        %2213 = vmatpush.msra.mxu0 0.0
        %2214 = vmatpush.msra.mxu0 0.0
        %2215 = vmatpush.msra.mxu0 0.0
        %2216 = vmatpush.msra.mxu0 0.0
        %2217 = vmatpush.msra.mxu0 0.0
        %2218 = vmatpush.msra.mxu0 0.0
        %2219 = vmatpush.msra.mxu0 0.0
        %2220 = vmatpush.msra.mxu0 0.0
        %2221 = vmatpush.msra.mxu0 0.0
        %2222 = vmatpush.msra.mxu0 0.0
        %2223 = vmatpush.msra.mxu0 0.0
        %2224 = vmatpush.msra.mxu0 0.0
        %2225 = vmatpush.msra.mxu0 0.0
        %2226 = vmatpush.msra.mxu0 0.0
        %2227 = vmatpush.msra.mxu0 %v2170
        %2228 = vmatmul.f32.gmra.mxu0 %v2164
        %v2229 = vpop.f32.mrf.mxu0
        %v2230 = vadd.f32 0.0, %v2229
        %2231 = vdwg.mxu0
        %2232 = vst [vmem:[#allocation1] ss:$2 sm:$0xff] %v2053
        %s2233 = scalar_lea.vmem [#allocation1], 16
        %2234 = vst [vmem:[%s2233] ss:$2 sm:$0xff] %v2054
        %v2235 = vld.sshfl [vmem:[#allocation1] sm:$0xff pattern:$0x75316420]
        %v2236 = vld.sshfl [vmem:[#allocation1 + $0x8] sm:$0xff pattern:$0x75316420]
        %v2237 = vld.sshfl [vmem:[#allocation1 + $0x10] sm:$0xff pattern:$0x75316420]
        %2238 = vrot.lane.b32.xlu0 %v2235, 108
        %v2239 = vpop.permute.xlu0 %2238
        %2240 = vrot.lane.b32.xlu0 %v2236, 108
        %v2241 = vpop.permute.xlu0 %2240
        %2242 = vrot.lane.b32.xlu0 %v2237, 108
        %v2243 = vpop.permute.xlu0 %2242
        %v2244 = vsel %vm2075, %v2239, %v2241
        %v2245 = vsel %vm2075, %v2241, %v2243
        %v2246 = vsel %vm370, %v2244, 0
        %v2248 = vsel %vm370, %v2245, 0
        %v2250 = vsel %vm370, %v2243, 0
        %2252 = vmatpush.msra.mxu0 0.0
        %2253 = vmatpush.msra.mxu0 0.0
        %2254 = vmatpush.msra.mxu0 0.0
        %2255 = vmatpush.msra.mxu0 0.0
        %2256 = vmatpush.msra.mxu0 0.0
        %2257 = vmatpush.msra.mxu0 0.0
        %2258 = vmatpush.msra.mxu0 0.0
        %2259 = vmatpush.msra.mxu0 0.0
        %2260 = vmatpush.msra.mxu0 0.0
        %2261 = vmatpush.msra.mxu0 0.0
        %2262 = vmatpush.msra.mxu0 0.0
        %2263 = vmatpush.msra.mxu0 0.0
        %2264 = vmatpush.msra.mxu0 0.0
        %2265 = vmatpush.msra.mxu0 0.0
        %2266 = vmatpush.msra.mxu0 0.0
        %2267 = vmatpush.msra.mxu0 %v2246
        %2268 = vmatmul.f32.gmra.mxu0 %v2164
        %v2269 = vpop.f32.mrf.mxu0
        %v2270 = vadd.f32 0.0, %v2269
        %2271 = vdwg.mxu0
        %2272 = vmatpush.msra.mxu0 0.0
        %2273 = vmatpush.msra.mxu0 0.0
        %2274 = vmatpush.msra.mxu0 0.0
        %2275 = vmatpush.msra.mxu0 0.0
        %2276 = vmatpush.msra.mxu0 0.0
        %2277 = vmatpush.msra.mxu0 0.0
        %2278 = vmatpush.msra.mxu0 0.0
        %2279 = vmatpush.msra.mxu0 0.0
        %2280 = vmatpush.msra.mxu0 0.0
        %2281 = vmatpush.msra.mxu0 0.0
        %2282 = vmatpush.msra.mxu0 0.0
        %2283 = vmatpush.msra.mxu0 0.0
        %2284 = vmatpush.msra.mxu0 0.0
        %2285 = vmatpush.msra.mxu0 0.0
        %2286 = vmatpush.msra.mxu0 0.0
        %2287 = vmatpush.msra.mxu0 %v2248
        %2288 = vmatmul.f32.gmra.mxu0 %v2164
        %v2289 = vpop.f32.mrf.mxu0
        %v2290 = vadd.f32 0.0, %v2289
        %2291 = vdwg.mxu0
        %2292 = vmatpush.msra.mxu0 0.0
        %2293 = vmatpush.msra.mxu0 0.0
        %2294 = vmatpush.msra.mxu0 0.0
        %2295 = vmatpush.msra.mxu0 0.0
        %2296 = vmatpush.msra.mxu0 0.0
        %2297 = vmatpush.msra.mxu0 0.0
        %2298 = vmatpush.msra.mxu0 0.0
        %2299 = vmatpush.msra.mxu0 0.0
        %2300 = vmatpush.msra.mxu0 0.0
        %2301 = vmatpush.msra.mxu0 0.0
        %2302 = vmatpush.msra.mxu0 0.0
        %2303 = vmatpush.msra.mxu0 0.0
        %2304 = vmatpush.msra.mxu0 0.0
        %2305 = vmatpush.msra.mxu0 0.0
        %2306 = vmatpush.msra.mxu0 0.0
        %2307 = vmatpush.msra.mxu0 %v2250
        %2308 = vmatmul.f32.gmra.mxu0 %v2164
        %v2309 = vpop.f32.mrf.mxu0
        %v2310 = vadd.f32 0.0, %v2309
        %2311 = vdwg.mxu0
        %v2312 = vsub.f32 %v2105, %v2190
        %v2313 = vsub.f32 %v2125, %v2210
        %v2314 = vsub.f32 %v2145, %v2230
        %2315 = vst [vmem:[#allocation1] ss:$2 sm:$0xff] %v2055
        %s2316 = scalar_lea.vmem [#allocation1], 16
        %2317 = vst [vmem:[%s2316] ss:$2 sm:$0xff] %v2056
        %v2318 = vld.sshfl [vmem:[#allocation1] sm:$0xff pattern:$0x75316420]
        %v2319 = vld.sshfl [vmem:[#allocation1 + $0x8] sm:$0xff pattern:$0x75316420]
        %v2320 = vld.sshfl [vmem:[#allocation1 + $0x10] sm:$0xff pattern:$0x75316420]
        %2321 = vrot.lane.b32.xlu0 %v2318, 108
        %v2322 = vpop.permute.xlu0 %2321
        %2323 = vrot.lane.b32.xlu0 %v2319, 108
        %v2324 = vpop.permute.xlu0 %2323
        %2325 = vrot.lane.b32.xlu0 %v2320, 108
        %v2326 = vpop.permute.xlu0 %2325
        %v2327 = vsel %vm2075, %v2322, %v2324
        %v2328 = vsel %vm2075, %v2324, %v2326
        %v2329 = vsel %vm370, %v2327, 0
        %v2331 = vsel %vm370, %v2328, 0
        %v2333 = vsel %vm370, %v2326, 0
        %2335 = vmatpush.msra.mxu0 0.0
        %2336 = vmatpush.msra.mxu0 0.0
        %2337 = vmatpush.msra.mxu0 0.0
        %2338 = vmatpush.msra.mxu0 0.0
        %2339 = vmatpush.msra.mxu0 0.0
        %2340 = vmatpush.msra.mxu0 0.0
        %2341 = vmatpush.msra.mxu0 0.0
        %2342 = vmatpush.msra.mxu0 0.0
        %2343 = vmatpush.msra.mxu0 0.0
        %2344 = vmatpush.msra.mxu0 0.0
        %2345 = vmatpush.msra.mxu0 0.0
        %2346 = vmatpush.msra.mxu0 0.0
        %2347 = vmatpush.msra.mxu0 0.0
        %2348 = vmatpush.msra.mxu0 0.0
        %2349 = vmatpush.msra.mxu0 0.0
        %2350 = vmatpush.msra.mxu0 %v2329
        %2351 = vmatmul.f32.gmra.mxu0 %v2079
        %v2352 = vpop.f32.mrf.mxu0
        %v2353 = vadd.f32 %v2270, %v2352
        %2354 = vdwg.mxu0
        %2355 = vmatpush.msra.mxu0 0.0
        %2356 = vmatpush.msra.mxu0 0.0
        %2357 = vmatpush.msra.mxu0 0.0
        %2358 = vmatpush.msra.mxu0 0.0
        %2359 = vmatpush.msra.mxu0 0.0
        %2360 = vmatpush.msra.mxu0 0.0
        %2361 = vmatpush.msra.mxu0 0.0
        %2362 = vmatpush.msra.mxu0 0.0
        %2363 = vmatpush.msra.mxu0 0.0
        %2364 = vmatpush.msra.mxu0 0.0
        %2365 = vmatpush.msra.mxu0 0.0
        %2366 = vmatpush.msra.mxu0 0.0
        %2367 = vmatpush.msra.mxu0 0.0
        %2368 = vmatpush.msra.mxu0 0.0
        %2369 = vmatpush.msra.mxu0 0.0
        %2370 = vmatpush.msra.mxu0 %v2331
        %2371 = vmatmul.f32.gmra.mxu0 %v2079
        %v2372 = vpop.f32.mrf.mxu0
        %v2373 = vadd.f32 %v2290, %v2372
        %2374 = vdwg.mxu0
        %2375 = vmatpush.msra.mxu0 0.0
        %2376 = vmatpush.msra.mxu0 0.0
        %2377 = vmatpush.msra.mxu0 0.0
        %2378 = vmatpush.msra.mxu0 0.0
        %2379 = vmatpush.msra.mxu0 0.0
        %2380 = vmatpush.msra.mxu0 0.0
        %2381 = vmatpush.msra.mxu0 0.0
        %2382 = vmatpush.msra.mxu0 0.0
        %2383 = vmatpush.msra.mxu0 0.0
        %2384 = vmatpush.msra.mxu0 0.0
        %2385 = vmatpush.msra.mxu0 0.0
        %2386 = vmatpush.msra.mxu0 0.0
        %2387 = vmatpush.msra.mxu0 0.0
        %2388 = vmatpush.msra.mxu0 0.0
        %2389 = vmatpush.msra.mxu0 0.0
        %2390 = vmatpush.msra.mxu0 %v2333
        %2391 = vmatmul.f32.gmra.mxu0 %v2079
        %v2392 = vpop.f32.mrf.mxu0
        %v2393 = vadd.f32 %v2310, %v2392
        %2394 = vdwg.mxu0
        %v2395 = vadd.f32 %v2047, %v2312
        %v2396 = vadd.f32 %v2048, %v2313
        %v2397 = vadd.f32 %v2049, %v2314
        %v2398 = vadd.f32 %v2050, %v2353
        %v2399 = vadd.f32 %v2051, %v2373
        %v2400 = vadd.f32 %v2052, %v2393
        %v2401 = vld [vmem:[%s342] sm:$0xff]
        %v2402 = vld [vmem:[%s342 + $0x8] sm:$0xf]
        %v2403 = vld [vmem:[%s351] sm:$0xff]
        %v2404 = vld [vmem:[%s351 + $0x8] sm:$0xf]
        %s2405 = scalar_lea.vmem %s2, 48
        %v2406 = vld [vmem:[%s2405] sm:$0xff]
        %s2407 = scalar_lea.vmem %s3, 48
        %v2408 = vld [vmem:[%s2407] sm:$0xff]
        %2411 = vst [vmem:[#allocation1] ss:$2 sm:$0xff] %v2401
        %s2412 = scalar_lea.vmem [#allocation1], 16
        %2413 = vst [vmem:[%s2412] ss:$2 sm:$0xff] %v2402
        %v2414 = vld.sshfl [vmem:[#allocation1] sm:$0xff pattern:$0x75316420]
        %v2415 = vld.sshfl [vmem:[#allocation1 + $0x8] sm:$0xff pattern:$0x75316420]
        %v2416 = vld.sshfl [vmem:[#allocation1 + $0x10] sm:$0xff pattern:$0x75316420]
        %2417 = vrot.lane.b32.xlu0 %v2414, 92
        %v2418 = vpop.permute.xlu0 %2417
        %2419 = vrot.lane.b32.xlu0 %v2415, 92
        %v2420 = vpop.permute.xlu0 %2419
        %2421 = vrot.lane.b32.xlu0 %v2416, 92
        %v2422 = vpop.permute.xlu0 %2421
        %vm2423 = vcmask 752640
        %v2424 = vsel %vm2423, %v2418, %v2420
        %v2425 = vsel %vm2423, %v2420, %v2422
        %v2427 = vsel %vm366, %v2406, 0
        %v2429 = vsel %vm370, %v2424, 0
        %v2431 = vsel %vm370, %v2425, 0
        %v2433 = vsel %vm370, %v2422, 0
        %2435 = vmatpush.msra.mxu0 0.0
        %2436 = vmatpush.msra.mxu0 0.0
        %2437 = vmatpush.msra.mxu0 0.0
        %2438 = vmatpush.msra.mxu0 0.0
        %2439 = vmatpush.msra.mxu0 0.0
        %2440 = vmatpush.msra.mxu0 0.0
        %2441 = vmatpush.msra.mxu0 0.0
        %2442 = vmatpush.msra.mxu0 0.0
        %2443 = vmatpush.msra.mxu0 0.0
        %2444 = vmatpush.msra.mxu0 0.0
        %2445 = vmatpush.msra.mxu0 0.0
        %2446 = vmatpush.msra.mxu0 0.0
        %2447 = vmatpush.msra.mxu0 0.0
        %2448 = vmatpush.msra.mxu0 0.0
        %2449 = vmatpush.msra.mxu0 0.0
        %2450 = vmatpush.msra.mxu0 %v2429
        %2451 = vmatmul.f32.gmra.mxu0 %v2427
        %v2452 = vpop.f32.mrf.mxu0
        %v2453 = vadd.f32 0.0, %v2452
        %2454 = vdwg.mxu0
        %2455 = vmatpush.msra.mxu0 0.0
        %2456 = vmatpush.msra.mxu0 0.0
        %2457 = vmatpush.msra.mxu0 0.0
        %2458 = vmatpush.msra.mxu0 0.0
        %2459 = vmatpush.msra.mxu0 0.0
        %2460 = vmatpush.msra.mxu0 0.0
        %2461 = vmatpush.msra.mxu0 0.0
        %2462 = vmatpush.msra.mxu0 0.0
        %2463 = vmatpush.msra.mxu0 0.0
        %2464 = vmatpush.msra.mxu0 0.0
        %2465 = vmatpush.msra.mxu0 0.0
        %2466 = vmatpush.msra.mxu0 0.0
        %2467 = vmatpush.msra.mxu0 0.0
        %2468 = vmatpush.msra.mxu0 0.0
        %2469 = vmatpush.msra.mxu0 0.0
        %2470 = vmatpush.msra.mxu0 %v2431
        %2471 = vmatmul.f32.gmra.mxu0 %v2427
        %v2472 = vpop.f32.mrf.mxu0
        %v2473 = vadd.f32 0.0, %v2472
        %2474 = vdwg.mxu0
        %2475 = vmatpush.msra.mxu0 0.0
        %2476 = vmatpush.msra.mxu0 0.0
        %2477 = vmatpush.msra.mxu0 0.0
        %2478 = vmatpush.msra.mxu0 0.0
        %2479 = vmatpush.msra.mxu0 0.0
        %2480 = vmatpush.msra.mxu0 0.0
        %2481 = vmatpush.msra.mxu0 0.0
        %2482 = vmatpush.msra.mxu0 0.0
        %2483 = vmatpush.msra.mxu0 0.0
        %2484 = vmatpush.msra.mxu0 0.0
        %2485 = vmatpush.msra.mxu0 0.0
        %2486 = vmatpush.msra.mxu0 0.0
        %2487 = vmatpush.msra.mxu0 0.0
        %2488 = vmatpush.msra.mxu0 0.0
        %2489 = vmatpush.msra.mxu0 0.0
        %2490 = vmatpush.msra.mxu0 %v2433
        %2491 = vmatmul.f32.gmra.mxu0 %v2427
        %v2492 = vpop.f32.mrf.mxu0
        %v2493 = vadd.f32 0.0, %v2492
        %2494 = vdwg.mxu0
        %2497 = vst [vmem:[#allocation1] ss:$2 sm:$0xff] %v2403
        %s2498 = scalar_lea.vmem [#allocation1], 16
        %2499 = vst [vmem:[%s2498] ss:$2 sm:$0xff] %v2404
        %v2500 = vld.sshfl [vmem:[#allocation1] sm:$0xff pattern:$0x75316420]
        %v2501 = vld.sshfl [vmem:[#allocation1 + $0x8] sm:$0xff pattern:$0x75316420]
        %v2502 = vld.sshfl [vmem:[#allocation1 + $0x10] sm:$0xff pattern:$0x75316420]
        %2503 = vrot.lane.b32.xlu0 %v2500, 92
        %v2504 = vpop.permute.xlu0 %2503
        %2505 = vrot.lane.b32.xlu0 %v2501, 92
        %v2506 = vpop.permute.xlu0 %2505
        %2507 = vrot.lane.b32.xlu0 %v2502, 92
        %v2508 = vpop.permute.xlu0 %2507
        %v2509 = vsel %vm2423, %v2504, %v2506
        %v2510 = vsel %vm2423, %v2506, %v2508
        %v2512 = vsel %vm366, %v2408, 0
        %v2514 = vsel %vm370, %v2509, 0
        %v2516 = vsel %vm370, %v2510, 0
        %v2518 = vsel %vm370, %v2508, 0
        %2520 = vmatpush.msra.mxu0 0.0
        %2521 = vmatpush.msra.mxu0 0.0
        %2522 = vmatpush.msra.mxu0 0.0
        %2523 = vmatpush.msra.mxu0 0.0
        %2524 = vmatpush.msra.mxu0 0.0
        %2525 = vmatpush.msra.mxu0 0.0
        %2526 = vmatpush.msra.mxu0 0.0
        %2527 = vmatpush.msra.mxu0 0.0
        %2528 = vmatpush.msra.mxu0 0.0
        %2529 = vmatpush.msra.mxu0 0.0
        %2530 = vmatpush.msra.mxu0 0.0
        %2531 = vmatpush.msra.mxu0 0.0
        %2532 = vmatpush.msra.mxu0 0.0
        %2533 = vmatpush.msra.mxu0 0.0
        %2534 = vmatpush.msra.mxu0 0.0
        %2535 = vmatpush.msra.mxu0 %v2514
        %2536 = vmatmul.f32.gmra.mxu0 %v2512
        %v2537 = vpop.f32.mrf.mxu0
        %v2538 = vadd.f32 0.0, %v2537
        %2539 = vdwg.mxu0
        %2540 = vmatpush.msra.mxu0 0.0
        %2541 = vmatpush.msra.mxu0 0.0
        %2542 = vmatpush.msra.mxu0 0.0
        %2543 = vmatpush.msra.mxu0 0.0
        %2544 = vmatpush.msra.mxu0 0.0
        %2545 = vmatpush.msra.mxu0 0.0
        %2546 = vmatpush.msra.mxu0 0.0
        %2547 = vmatpush.msra.mxu0 0.0
        %2548 = vmatpush.msra.mxu0 0.0
        %2549 = vmatpush.msra.mxu0 0.0
        %2550 = vmatpush.msra.mxu0 0.0
        %2551 = vmatpush.msra.mxu0 0.0
        %2552 = vmatpush.msra.mxu0 0.0
        %2553 = vmatpush.msra.mxu0 0.0
        %2554 = vmatpush.msra.mxu0 0.0
        %2555 = vmatpush.msra.mxu0 %v2516
        %2556 = vmatmul.f32.gmra.mxu0 %v2512
        %v2557 = vpop.f32.mrf.mxu0
        %v2558 = vadd.f32 0.0, %v2557
        %2559 = vdwg.mxu0
        %2560 = vmatpush.msra.mxu0 0.0
        %2561 = vmatpush.msra.mxu0 0.0
        %2562 = vmatpush.msra.mxu0 0.0
        %2563 = vmatpush.msra.mxu0 0.0
        %2564 = vmatpush.msra.mxu0 0.0
        %2565 = vmatpush.msra.mxu0 0.0
        %2566 = vmatpush.msra.mxu0 0.0
        %2567 = vmatpush.msra.mxu0 0.0
        %2568 = vmatpush.msra.mxu0 0.0
        %2569 = vmatpush.msra.mxu0 0.0
        %2570 = vmatpush.msra.mxu0 0.0
        %2571 = vmatpush.msra.mxu0 0.0
        %2572 = vmatpush.msra.mxu0 0.0
        %2573 = vmatpush.msra.mxu0 0.0
        %2574 = vmatpush.msra.mxu0 0.0
        %2575 = vmatpush.msra.mxu0 %v2518
        %2576 = vmatmul.f32.gmra.mxu0 %v2512
        %v2577 = vpop.f32.mrf.mxu0
        %v2578 = vadd.f32 0.0, %v2577
        %2579 = vdwg.mxu0
        %2580 = vst [vmem:[#allocation1] ss:$2 sm:$0xff] %v2401
        %s2581 = scalar_lea.vmem [#allocation1], 16
        %2582 = vst [vmem:[%s2581] ss:$2 sm:$0xff] %v2402
        %v2583 = vld.sshfl [vmem:[#allocation1] sm:$0xff pattern:$0x75316420]
        %v2584 = vld.sshfl [vmem:[#allocation1 + $0x8] sm:$0xff pattern:$0x75316420]
        %v2585 = vld.sshfl [vmem:[#allocation1 + $0x10] sm:$0xff pattern:$0x75316420]
        %2586 = vrot.lane.b32.xlu0 %v2583, 92
        %v2587 = vpop.permute.xlu0 %2586
        %2588 = vrot.lane.b32.xlu0 %v2584, 92
        %v2589 = vpop.permute.xlu0 %2588
        %2590 = vrot.lane.b32.xlu0 %v2585, 92
        %v2591 = vpop.permute.xlu0 %2590
        %v2592 = vsel %vm2423, %v2587, %v2589
        %v2593 = vsel %vm2423, %v2589, %v2591
        %v2594 = vsel %vm370, %v2592, 0
        %v2596 = vsel %vm370, %v2593, 0
        %v2598 = vsel %vm370, %v2591, 0
        %2600 = vmatpush.msra.mxu0 0.0
        %2601 = vmatpush.msra.mxu0 0.0
        %2602 = vmatpush.msra.mxu0 0.0
        %2603 = vmatpush.msra.mxu0 0.0
        %2604 = vmatpush.msra.mxu0 0.0
        %2605 = vmatpush.msra.mxu0 0.0
        %2606 = vmatpush.msra.mxu0 0.0
        %2607 = vmatpush.msra.mxu0 0.0
        %2608 = vmatpush.msra.mxu0 0.0
        %2609 = vmatpush.msra.mxu0 0.0
        %2610 = vmatpush.msra.mxu0 0.0
        %2611 = vmatpush.msra.mxu0 0.0
        %2612 = vmatpush.msra.mxu0 0.0
        %2613 = vmatpush.msra.mxu0 0.0
        %2614 = vmatpush.msra.mxu0 0.0
        %2615 = vmatpush.msra.mxu0 %v2594
        %2616 = vmatmul.f32.gmra.mxu0 %v2512
        %v2617 = vpop.f32.mrf.mxu0
        %v2618 = vadd.f32 0.0, %v2617
        %2619 = vdwg.mxu0
        %2620 = vmatpush.msra.mxu0 0.0
        %2621 = vmatpush.msra.mxu0 0.0
        %2622 = vmatpush.msra.mxu0 0.0
        %2623 = vmatpush.msra.mxu0 0.0
        %2624 = vmatpush.msra.mxu0 0.0
        %2625 = vmatpush.msra.mxu0 0.0
        %2626 = vmatpush.msra.mxu0 0.0
        %2627 = vmatpush.msra.mxu0 0.0
        %2628 = vmatpush.msra.mxu0 0.0
        %2629 = vmatpush.msra.mxu0 0.0
        %2630 = vmatpush.msra.mxu0 0.0
        %2631 = vmatpush.msra.mxu0 0.0
        %2632 = vmatpush.msra.mxu0 0.0
        %2633 = vmatpush.msra.mxu0 0.0
        %2634 = vmatpush.msra.mxu0 0.0
        %2635 = vmatpush.msra.mxu0 %v2596
        %2636 = vmatmul.f32.gmra.mxu0 %v2512
        %v2637 = vpop.f32.mrf.mxu0
        %v2638 = vadd.f32 0.0, %v2637
        %2639 = vdwg.mxu0
        %2640 = vmatpush.msra.mxu0 0.0
        %2641 = vmatpush.msra.mxu0 0.0
        %2642 = vmatpush.msra.mxu0 0.0
        %2643 = vmatpush.msra.mxu0 0.0
        %2644 = vmatpush.msra.mxu0 0.0
        %2645 = vmatpush.msra.mxu0 0.0
        %2646 = vmatpush.msra.mxu0 0.0
        %2647 = vmatpush.msra.mxu0 0.0
        %2648 = vmatpush.msra.mxu0 0.0
        %2649 = vmatpush.msra.mxu0 0.0
        %2650 = vmatpush.msra.mxu0 0.0
        %2651 = vmatpush.msra.mxu0 0.0
        %2652 = vmatpush.msra.mxu0 0.0
        %2653 = vmatpush.msra.mxu0 0.0
        %2654 = vmatpush.msra.mxu0 0.0
        %2655 = vmatpush.msra.mxu0 %v2598
        %2656 = vmatmul.f32.gmra.mxu0 %v2512
        %v2657 = vpop.f32.mrf.mxu0
        %v2658 = vadd.f32 0.0, %v2657
        %2659 = vdwg.mxu0
        %v2660 = vsub.f32 %v2453, %v2538
        %v2661 = vsub.f32 %v2473, %v2558
        %v2662 = vsub.f32 %v2493, %v2578
        %2663 = vst [vmem:[#allocation1] ss:$2 sm:$0xff] %v2403
        %s2664 = scalar_lea.vmem [#allocation1], 16
        %2665 = vst [vmem:[%s2664] ss:$2 sm:$0xff] %v2404
        %v2666 = vld.sshfl [vmem:[#allocation1] sm:$0xff pattern:$0x75316420]
        %v2667 = vld.sshfl [vmem:[#allocation1 + $0x8] sm:$0xff pattern:$0x75316420]
        %v2668 = vld.sshfl [vmem:[#allocation1 + $0x10] sm:$0xff pattern:$0x75316420]
        %2669 = vrot.lane.b32.xlu0 %v2666, 92
        %v2670 = vpop.permute.xlu0 %2669
        %2671 = vrot.lane.b32.xlu0 %v2667, 92
        %v2672 = vpop.permute.xlu0 %2671
        %2673 = vrot.lane.b32.xlu0 %v2668, 92
        %v2674 = vpop.permute.xlu0 %2673
        %v2675 = vsel %vm2423, %v2670, %v2672
        %v2676 = vsel %vm2423, %v2672, %v2674
        %v2677 = vsel %vm370, %v2675, 0
        %v2679 = vsel %vm370, %v2676, 0
        %v2681 = vsel %vm370, %v2674, 0
        %2683 = vmatpush.msra.mxu0 0.0
        %2684 = vmatpush.msra.mxu0 0.0
        %2685 = vmatpush.msra.mxu0 0.0
        %2686 = vmatpush.msra.mxu0 0.0
        %2687 = vmatpush.msra.mxu0 0.0
        %2688 = vmatpush.msra.mxu0 0.0
        %2689 = vmatpush.msra.mxu0 0.0
        %2690 = vmatpush.msra.mxu0 0.0
        %2691 = vmatpush.msra.mxu0 0.0
        %2692 = vmatpush.msra.mxu0 0.0
        %2693 = vmatpush.msra.mxu0 0.0
        %2694 = vmatpush.msra.mxu0 0.0
        %2695 = vmatpush.msra.mxu0 0.0
        %2696 = vmatpush.msra.mxu0 0.0
        %2697 = vmatpush.msra.mxu0 0.0
        %2698 = vmatpush.msra.mxu0 %v2677
        %2699 = vmatmul.f32.gmra.mxu0 %v2427
        %v2700 = vpop.f32.mrf.mxu0
        %v2701 = vadd.f32 %v2618, %v2700
        %2702 = vdwg.mxu0
        %2703 = vmatpush.msra.mxu0 0.0
        %2704 = vmatpush.msra.mxu0 0.0
        %2705 = vmatpush.msra.mxu0 0.0
        %2706 = vmatpush.msra.mxu0 0.0
        %2707 = vmatpush.msra.mxu0 0.0
        %2708 = vmatpush.msra.mxu0 0.0
        %2709 = vmatpush.msra.mxu0 0.0
        %2710 = vmatpush.msra.mxu0 0.0
        %2711 = vmatpush.msra.mxu0 0.0
        %2712 = vmatpush.msra.mxu0 0.0
        %2713 = vmatpush.msra.mxu0 0.0
        %2714 = vmatpush.msra.mxu0 0.0
        %2715 = vmatpush.msra.mxu0 0.0
        %2716 = vmatpush.msra.mxu0 0.0
        %2717 = vmatpush.msra.mxu0 0.0
        %2718 = vmatpush.msra.mxu0 %v2679
        %2719 = vmatmul.f32.gmra.mxu0 %v2427
        %v2720 = vpop.f32.mrf.mxu0
        %v2721 = vadd.f32 %v2638, %v2720
        %2722 = vdwg.mxu0
        %2723 = vmatpush.msra.mxu0 0.0
        %2724 = vmatpush.msra.mxu0 0.0
        %2725 = vmatpush.msra.mxu0 0.0
        %2726 = vmatpush.msra.mxu0 0.0
        %2727 = vmatpush.msra.mxu0 0.0
        %2728 = vmatpush.msra.mxu0 0.0
        %2729 = vmatpush.msra.mxu0 0.0
        %2730 = vmatpush.msra.mxu0 0.0
        %2731 = vmatpush.msra.mxu0 0.0
        %2732 = vmatpush.msra.mxu0 0.0
        %2733 = vmatpush.msra.mxu0 0.0
        %2734 = vmatpush.msra.mxu0 0.0
        %2735 = vmatpush.msra.mxu0 0.0
        %2736 = vmatpush.msra.mxu0 0.0
        %2737 = vmatpush.msra.mxu0 0.0
        %2738 = vmatpush.msra.mxu0 %v2681
        %2739 = vmatmul.f32.gmra.mxu0 %v2427
        %v2740 = vpop.f32.mrf.mxu0
        %v2741 = vadd.f32 %v2658, %v2740
        %2742 = vdwg.mxu0
        %v2743 = vadd.f32 %v2395, %v2660
        %v2744 = vadd.f32 %v2396, %v2661
        %v2745 = vadd.f32 %v2397, %v2662
        %v2746 = vadd.f32 %v2398, %v2701
        %v2747 = vadd.f32 %v2399, %v2721
        %v2748 = vadd.f32 %v2400, %v2741
        %v2749 = vld [vmem:[%s342] sm:$0xff]
        %v2750 = vld [vmem:[%s342 + $0x8] sm:$0xf]
        %v2751 = vld [vmem:[%s351] sm:$0xff]
        %v2752 = vld [vmem:[%s351 + $0x8] sm:$0xf]
        %s2753 = scalar_lea.vmem %s2, 56
        %v2754 = vld [vmem:[%s2753] sm:$0xff]
        %s2755 = scalar_lea.vmem %s3, 56
        %v2756 = vld [vmem:[%s2755] sm:$0xff]
        %2759 = vst [vmem:[#allocation1] ss:$2 sm:$0xff] %v2749
        %s2760 = scalar_lea.vmem [#allocation1], 16
        %2761 = vst [vmem:[%s2760] ss:$2 sm:$0xff] %v2750
        %v2762 = vld.sshfl [vmem:[#allocation1] sm:$0xff pattern:$0x75316420]
        %v2763 = vld.sshfl [vmem:[#allocation1 + $0x8] sm:$0xff pattern:$0x75316420]
        %v2764 = vld.sshfl [vmem:[#allocation1 + $0x10] sm:$0xff pattern:$0x75316420]
        %2765 = vrot.lane.b32.xlu0 %v2762, 91
        %v2766 = vpop.permute.xlu0 %2765
        %2767 = vrot.lane.b32.xlu0 %v2763, 91
        %v2768 = vpop.permute.xlu0 %2767
        %2769 = vrot.lane.b32.xlu0 %v2764, 91
        %v2770 = vpop.permute.xlu0 %2769
        %vm2771 = vcmask 744448
        %v2772 = vsel %vm2771, %v2766, %v2768
        %v2773 = vsel %vm2771, %v2768, %v2770
        %v2775 = vsel %vm366, %v2754, 0
        %v2777 = vsel %vm370, %v2772, 0
        %v2779 = vsel %vm370, %v2773, 0
        %v2781 = vsel %vm370, %v2770, 0
        %2783 = vmatpush.msra.mxu0 0.0
        %2784 = vmatpush.msra.mxu0 0.0
        %2785 = vmatpush.msra.mxu0 0.0
        %2786 = vmatpush.msra.mxu0 0.0
        %2787 = vmatpush.msra.mxu0 0.0
        %2788 = vmatpush.msra.mxu0 0.0
        %2789 = vmatpush.msra.mxu0 0.0
        %2790 = vmatpush.msra.mxu0 0.0
        %2791 = vmatpush.msra.mxu0 0.0
        %2792 = vmatpush.msra.mxu0 0.0
        %2793 = vmatpush.msra.mxu0 0.0
        %2794 = vmatpush.msra.mxu0 0.0
        %2795 = vmatpush.msra.mxu0 0.0
        %2796 = vmatpush.msra.mxu0 0.0
        %2797 = vmatpush.msra.mxu0 0.0
        %2798 = vmatpush.msra.mxu0 %v2777
        %2799 = vmatmul.f32.gmra.mxu0 %v2775
        %v2800 = vpop.f32.mrf.mxu0
        %v2801 = vadd.f32 0.0, %v2800
        %2802 = vdwg.mxu0
        %2803 = vmatpush.msra.mxu0 0.0
        %2804 = vmatpush.msra.mxu0 0.0
        %2805 = vmatpush.msra.mxu0 0.0
        %2806 = vmatpush.msra.mxu0 0.0
        %2807 = vmatpush.msra.mxu0 0.0
        %2808 = vmatpush.msra.mxu0 0.0
        %2809 = vmatpush.msra.mxu0 0.0
        %2810 = vmatpush.msra.mxu0 0.0
        %2811 = vmatpush.msra.mxu0 0.0
        %2812 = vmatpush.msra.mxu0 0.0
        %2813 = vmatpush.msra.mxu0 0.0
        %2814 = vmatpush.msra.mxu0 0.0
        %2815 = vmatpush.msra.mxu0 0.0
        %2816 = vmatpush.msra.mxu0 0.0
        %2817 = vmatpush.msra.mxu0 0.0
        %2818 = vmatpush.msra.mxu0 %v2779
        %2819 = vmatmul.f32.gmra.mxu0 %v2775
        %v2820 = vpop.f32.mrf.mxu0
        %v2821 = vadd.f32 0.0, %v2820
        %2822 = vdwg.mxu0
        %2823 = vmatpush.msra.mxu0 0.0
        %2824 = vmatpush.msra.mxu0 0.0
        %2825 = vmatpush.msra.mxu0 0.0
        %2826 = vmatpush.msra.mxu0 0.0
        %2827 = vmatpush.msra.mxu0 0.0
        %2828 = vmatpush.msra.mxu0 0.0
        %2829 = vmatpush.msra.mxu0 0.0
        %2830 = vmatpush.msra.mxu0 0.0
        %2831 = vmatpush.msra.mxu0 0.0
        %2832 = vmatpush.msra.mxu0 0.0
        %2833 = vmatpush.msra.mxu0 0.0
        %2834 = vmatpush.msra.mxu0 0.0
        %2835 = vmatpush.msra.mxu0 0.0
        %2836 = vmatpush.msra.mxu0 0.0
        %2837 = vmatpush.msra.mxu0 0.0
        %2838 = vmatpush.msra.mxu0 %v2781
        %2839 = vmatmul.f32.gmra.mxu0 %v2775
        %v2840 = vpop.f32.mrf.mxu0
        %v2841 = vadd.f32 0.0, %v2840
        %2842 = vdwg.mxu0
        %2845 = vst [vmem:[#allocation1] ss:$2 sm:$0xff] %v2751
        %s2846 = scalar_lea.vmem [#allocation1], 16
        %2847 = vst [vmem:[%s2846] ss:$2 sm:$0xff] %v2752
        %v2848 = vld.sshfl [vmem:[#allocation1] sm:$0xff pattern:$0x75316420]
        %v2849 = vld.sshfl [vmem:[#allocation1 + $0x8] sm:$0xff pattern:$0x75316420]
        %v2850 = vld.sshfl [vmem:[#allocation1 + $0x10] sm:$0xff pattern:$0x75316420]
        %2851 = vrot.lane.b32.xlu0 %v2848, 91
        %v2852 = vpop.permute.xlu0 %2851
        %2853 = vrot.lane.b32.xlu0 %v2849, 91
        %v2854 = vpop.permute.xlu0 %2853
        %2855 = vrot.lane.b32.xlu0 %v2850, 91
        %v2856 = vpop.permute.xlu0 %2855
        %v2857 = vsel %vm2771, %v2852, %v2854
        %v2858 = vsel %vm2771, %v2854, %v2856
        %v2860 = vsel %vm366, %v2756, 0
        %v2862 = vsel %vm370, %v2857, 0
        %v2864 = vsel %vm370, %v2858, 0
        %v2866 = vsel %vm370, %v2856, 0
        %2868 = vmatpush.msra.mxu0 0.0
        %2869 = vmatpush.msra.mxu0 0.0
        %2870 = vmatpush.msra.mxu0 0.0
        %2871 = vmatpush.msra.mxu0 0.0
        %2872 = vmatpush.msra.mxu0 0.0
        %2873 = vmatpush.msra.mxu0 0.0
        %2874 = vmatpush.msra.mxu0 0.0
        %2875 = vmatpush.msra.mxu0 0.0
        %2876 = vmatpush.msra.mxu0 0.0
        %2877 = vmatpush.msra.mxu0 0.0
        %2878 = vmatpush.msra.mxu0 0.0
        %2879 = vmatpush.msra.mxu0 0.0
        %2880 = vmatpush.msra.mxu0 0.0
        %2881 = vmatpush.msra.mxu0 0.0
        %2882 = vmatpush.msra.mxu0 0.0
        %2883 = vmatpush.msra.mxu0 %v2862
        %2884 = vmatmul.f32.gmra.mxu0 %v2860
        %v2885 = vpop.f32.mrf.mxu0
        %v2886 = vadd.f32 0.0, %v2885
        %2887 = vdwg.mxu0
        %2888 = vmatpush.msra.mxu0 0.0
        %2889 = vmatpush.msra.mxu0 0.0
        %2890 = vmatpush.msra.mxu0 0.0
        %2891 = vmatpush.msra.mxu0 0.0
        %2892 = vmatpush.msra.mxu0 0.0
        %2893 = vmatpush.msra.mxu0 0.0
        %2894 = vmatpush.msra.mxu0 0.0
        %2895 = vmatpush.msra.mxu0 0.0
        %2896 = vmatpush.msra.mxu0 0.0
        %2897 = vmatpush.msra.mxu0 0.0
        %2898 = vmatpush.msra.mxu0 0.0
        %2899 = vmatpush.msra.mxu0 0.0
        %2900 = vmatpush.msra.mxu0 0.0
        %2901 = vmatpush.msra.mxu0 0.0
        %2902 = vmatpush.msra.mxu0 0.0
        %2903 = vmatpush.msra.mxu0 %v2864
        %2904 = vmatmul.f32.gmra.mxu0 %v2860
        %v2905 = vpop.f32.mrf.mxu0
        %v2906 = vadd.f32 0.0, %v2905
        %2907 = vdwg.mxu0
        %2908 = vmatpush.msra.mxu0 0.0
        %2909 = vmatpush.msra.mxu0 0.0
        %2910 = vmatpush.msra.mxu0 0.0
        %2911 = vmatpush.msra.mxu0 0.0
        %2912 = vmatpush.msra.mxu0 0.0
        %2913 = vmatpush.msra.mxu0 0.0
        %2914 = vmatpush.msra.mxu0 0.0
        %2915 = vmatpush.msra.mxu0 0.0
        %2916 = vmatpush.msra.mxu0 0.0
        %2917 = vmatpush.msra.mxu0 0.0
        %2918 = vmatpush.msra.mxu0 0.0
        %2919 = vmatpush.msra.mxu0 0.0
        %2920 = vmatpush.msra.mxu0 0.0
        %2921 = vmatpush.msra.mxu0 0.0
        %2922 = vmatpush.msra.mxu0 0.0
        %2923 = vmatpush.msra.mxu0 %v2866
        %2924 = vmatmul.f32.gmra.mxu0 %v2860
        %v2925 = vpop.f32.mrf.mxu0
        %v2926 = vadd.f32 0.0, %v2925
        %2927 = vdwg.mxu0
        %2928 = vst [vmem:[#allocation1] ss:$2 sm:$0xff] %v2749
        %s2929 = scalar_lea.vmem [#allocation1], 16
        %2930 = vst [vmem:[%s2929] ss:$2 sm:$0xff] %v2750
        %v2931 = vld.sshfl [vmem:[#allocation1] sm:$0xff pattern:$0x75316420]
        %v2932 = vld.sshfl [vmem:[#allocation1 + $0x8] sm:$0xff pattern:$0x75316420]
        %v2933 = vld.sshfl [vmem:[#allocation1 + $0x10] sm:$0xff pattern:$0x75316420]
        %2934 = vrot.lane.b32.xlu0 %v2931, 91
        %v2935 = vpop.permute.xlu0 %2934
        %2936 = vrot.lane.b32.xlu0 %v2932, 91
        %v2937 = vpop.permute.xlu0 %2936
        %2938 = vrot.lane.b32.xlu0 %v2933, 91
        %v2939 = vpop.permute.xlu0 %2938
        %v2940 = vsel %vm2771, %v2935, %v2937
        %v2941 = vsel %vm2771, %v2937, %v2939
        %v2942 = vsel %vm370, %v2940, 0
        %v2944 = vsel %vm370, %v2941, 0
        %v2946 = vsel %vm370, %v2939, 0
        %2948 = vmatpush.msra.mxu0 0.0
        %2949 = vmatpush.msra.mxu0 0.0
        %2950 = vmatpush.msra.mxu0 0.0
        %2951 = vmatpush.msra.mxu0 0.0
        %2952 = vmatpush.msra.mxu0 0.0
        %2953 = vmatpush.msra.mxu0 0.0
        %2954 = vmatpush.msra.mxu0 0.0
        %2955 = vmatpush.msra.mxu0 0.0
        %2956 = vmatpush.msra.mxu0 0.0
        %2957 = vmatpush.msra.mxu0 0.0
        %2958 = vmatpush.msra.mxu0 0.0
        %2959 = vmatpush.msra.mxu0 0.0
        %2960 = vmatpush.msra.mxu0 0.0
        %2961 = vmatpush.msra.mxu0 0.0
        %2962 = vmatpush.msra.mxu0 0.0
        %2963 = vmatpush.msra.mxu0 %v2942
        %2964 = vmatmul.f32.gmra.mxu0 %v2860
        %v2965 = vpop.f32.mrf.mxu0
        %v2966 = vadd.f32 0.0, %v2965
        %2967 = vdwg.mxu0
        %2968 = vmatpush.msra.mxu0 0.0
        %2969 = vmatpush.msra.mxu0 0.0
        %2970 = vmatpush.msra.mxu0 0.0
        %2971 = vmatpush.msra.mxu0 0.0
        %2972 = vmatpush.msra.mxu0 0.0
        %2973 = vmatpush.msra.mxu0 0.0
        %2974 = vmatpush.msra.mxu0 0.0
        %2975 = vmatpush.msra.mxu0 0.0
        %2976 = vmatpush.msra.mxu0 0.0
        %2977 = vmatpush.msra.mxu0 0.0
        %2978 = vmatpush.msra.mxu0 0.0
        %2979 = vmatpush.msra.mxu0 0.0
        %2980 = vmatpush.msra.mxu0 0.0
        %2981 = vmatpush.msra.mxu0 0.0
        %2982 = vmatpush.msra.mxu0 0.0
        %2983 = vmatpush.msra.mxu0 %v2944
        %2984 = vmatmul.f32.gmra.mxu0 %v2860
        %v2985 = vpop.f32.mrf.mxu0
        %v2986 = vadd.f32 0.0, %v2985
        %2987 = vdwg.mxu0
        %2988 = vmatpush.msra.mxu0 0.0
        %2989 = vmatpush.msra.mxu0 0.0
        %2990 = vmatpush.msra.mxu0 0.0
        %2991 = vmatpush.msra.mxu0 0.0
        %2992 = vmatpush.msra.mxu0 0.0
        %2993 = vmatpush.msra.mxu0 0.0
        %2994 = vmatpush.msra.mxu0 0.0
        %2995 = vmatpush.msra.mxu0 0.0
        %2996 = vmatpush.msra.mxu0 0.0
        %2997 = vmatpush.msra.mxu0 0.0
        %2998 = vmatpush.msra.mxu0 0.0
        %2999 = vmatpush.msra.mxu0 0.0
        %3000 = vmatpush.msra.mxu0 0.0
        %3001 = vmatpush.msra.mxu0 0.0
        %3002 = vmatpush.msra.mxu0 0.0
        %3003 = vmatpush.msra.mxu0 %v2946
        %3004 = vmatmul.f32.gmra.mxu0 %v2860
        %v3005 = vpop.f32.mrf.mxu0
        %v3006 = vadd.f32 0.0, %v3005
        %3007 = vdwg.mxu0
        %v3008 = vsub.f32 %v2801, %v2886
        %v3009 = vsub.f32 %v2821, %v2906
        %v3010 = vsub.f32 %v2841, %v2926
        %3011 = vst [vmem:[#allocation1] ss:$2 sm:$0xff] %v2751
        %s3012 = scalar_lea.vmem [#allocation1], 16
        %3013 = vst [vmem:[%s3012] ss:$2 sm:$0xff] %v2752
        %v3014 = vld.sshfl [vmem:[#allocation1] sm:$0xff pattern:$0x75316420]
        %v3015 = vld.sshfl [vmem:[#allocation1 + $0x8] sm:$0xff pattern:$0x75316420]
        %v3016 = vld.sshfl [vmem:[#allocation1 + $0x10] sm:$0xff pattern:$0x75316420]
        %3017 = vrot.lane.b32.xlu0 %v3014, 91
        %v3018 = vpop.permute.xlu0 %3017
        %3019 = vrot.lane.b32.xlu0 %v3015, 91
        %v3020 = vpop.permute.xlu0 %3019
        %3021 = vrot.lane.b32.xlu0 %v3016, 91
        %v3022 = vpop.permute.xlu0 %3021
        %v3023 = vsel %vm2771, %v3018, %v3020
        %v3024 = vsel %vm2771, %v3020, %v3022
        %v3025 = vsel %vm370, %v3023, 0
        %v3027 = vsel %vm370, %v3024, 0
        %v3029 = vsel %vm370, %v3022, 0
        %3031 = vmatpush.msra.mxu0 0.0
        %3032 = vmatpush.msra.mxu0 0.0
        %3033 = vmatpush.msra.mxu0 0.0
        %3034 = vmatpush.msra.mxu0 0.0
        %3035 = vmatpush.msra.mxu0 0.0
        %3036 = vmatpush.msra.mxu0 0.0
        %3037 = vmatpush.msra.mxu0 0.0
        %3038 = vmatpush.msra.mxu0 0.0
        %3039 = vmatpush.msra.mxu0 0.0
        %3040 = vmatpush.msra.mxu0 0.0
        %3041 = vmatpush.msra.mxu0 0.0
        %3042 = vmatpush.msra.mxu0 0.0
        %3043 = vmatpush.msra.mxu0 0.0
        %3044 = vmatpush.msra.mxu0 0.0
        %3045 = vmatpush.msra.mxu0 0.0
        %3046 = vmatpush.msra.mxu0 %v3025
        %3047 = vmatmul.f32.gmra.mxu0 %v2775
        %v3048 = vpop.f32.mrf.mxu0
        %v3049 = vadd.f32 %v2966, %v3048
        %3050 = vdwg.mxu0
        %3051 = vmatpush.msra.mxu0 0.0
        %3052 = vmatpush.msra.mxu0 0.0
        %3053 = vmatpush.msra.mxu0 0.0
        %3054 = vmatpush.msra.mxu0 0.0
        %3055 = vmatpush.msra.mxu0 0.0
        %3056 = vmatpush.msra.mxu0 0.0
        %3057 = vmatpush.msra.mxu0 0.0
        %3058 = vmatpush.msra.mxu0 0.0
        %3059 = vmatpush.msra.mxu0 0.0
        %3060 = vmatpush.msra.mxu0 0.0
        %3061 = vmatpush.msra.mxu0 0.0
        %3062 = vmatpush.msra.mxu0 0.0
        %3063 = vmatpush.msra.mxu0 0.0
        %3064 = vmatpush.msra.mxu0 0.0
        %3065 = vmatpush.msra.mxu0 0.0
        %3066 = vmatpush.msra.mxu0 %v3027
        %3067 = vmatmul.f32.gmra.mxu0 %v2775
        %v3068 = vpop.f32.mrf.mxu0
        %v3069 = vadd.f32 %v2986, %v3068
        %3070 = vdwg.mxu0
        %3071 = vmatpush.msra.mxu0 0.0
        %3072 = vmatpush.msra.mxu0 0.0
        %3073 = vmatpush.msra.mxu0 0.0
        %3074 = vmatpush.msra.mxu0 0.0
        %3075 = vmatpush.msra.mxu0 0.0
        %3076 = vmatpush.msra.mxu0 0.0
        %3077 = vmatpush.msra.mxu0 0.0
        %3078 = vmatpush.msra.mxu0 0.0
        %3079 = vmatpush.msra.mxu0 0.0
        %3080 = vmatpush.msra.mxu0 0.0
        %3081 = vmatpush.msra.mxu0 0.0
        %3082 = vmatpush.msra.mxu0 0.0
        %3083 = vmatpush.msra.mxu0 0.0
        %3084 = vmatpush.msra.mxu0 0.0
        %3085 = vmatpush.msra.mxu0 0.0
        %3086 = vmatpush.msra.mxu0 %v3029
        %3087 = vmatmul.f32.gmra.mxu0 %v2775
        %v3088 = vpop.f32.mrf.mxu0
        %v3089 = vadd.f32 %v3006, %v3088
        %3090 = vdwg.mxu0
        %v3091 = vadd.f32 %v2743, %v3008
        %v3092 = vadd.f32 %v2744, %v3009
        %v3093 = vadd.f32 %v2745, %v3010
        %v3094 = vadd.f32 %v2746, %v3049
        %v3095 = vadd.f32 %v2747, %v3069
        %v3096 = vadd.f32 %v2748, %v3089
        %v3097 = vld [vmem:[%s342] sm:$0xff]
        %v3098 = vld [vmem:[%s342 + $0x8] sm:$0xf]
        %v3099 = vld [vmem:[%s351] sm:$0xff]
        %v3100 = vld [vmem:[%s351 + $0x8] sm:$0xf]
        %s3101 = scalar_lea.vmem %s2, 64
        %v3102 = vld [vmem:[%s3101] sm:$0xff]
        %s3103 = scalar_lea.vmem %s3, 64
        %v3104 = vld [vmem:[%s3103] sm:$0xff]
        %3107 = vst [vmem:[#allocation1] ss:$2 sm:$0xff] %v3097
        %s3108 = scalar_lea.vmem [#allocation1], 16
        %3109 = vst [vmem:[%s3108] ss:$2 sm:$0xff] %v3098
        %v3110 = vld.sshfl [vmem:[#allocation1] sm:$0xff pattern:$0x75316420]
        %v3111 = vld.sshfl [vmem:[#allocation1 + $0x8] sm:$0xff pattern:$0x75316420]
        %v3112 = vld.sshfl [vmem:[#allocation1 + $0x10] sm:$0xff pattern:$0x75316420]
        %3113 = vrot.lane.b32.xlu0 %v3110, 90
        %v3114 = vpop.permute.xlu0 %3113
        %3115 = vrot.lane.b32.xlu0 %v3111, 90
        %v3116 = vpop.permute.xlu0 %3115
        %3117 = vrot.lane.b32.xlu0 %v3112, 90
        %v3118 = vpop.permute.xlu0 %3117
        %vm3119 = vcmask 736256
        %v3120 = vsel %vm3119, %v3114, %v3116
        %v3121 = vsel %vm3119, %v3116, %v3118
        %v3123 = vsel %vm366, %v3102, 0
        %v3125 = vsel %vm370, %v3120, 0
        %v3127 = vsel %vm370, %v3121, 0
        %v3129 = vsel %vm370, %v3118, 0
        %3131 = vmatpush.msra.mxu0 0.0
        %3132 = vmatpush.msra.mxu0 0.0
        %3133 = vmatpush.msra.mxu0 0.0
        %3134 = vmatpush.msra.mxu0 0.0
        %3135 = vmatpush.msra.mxu0 0.0
        %3136 = vmatpush.msra.mxu0 0.0
        %3137 = vmatpush.msra.mxu0 0.0
        %3138 = vmatpush.msra.mxu0 0.0
        %3139 = vmatpush.msra.mxu0 0.0
        %3140 = vmatpush.msra.mxu0 0.0
        %3141 = vmatpush.msra.mxu0 0.0
        %3142 = vmatpush.msra.mxu0 0.0
        %3143 = vmatpush.msra.mxu0 0.0
        %3144 = vmatpush.msra.mxu0 0.0
        %3145 = vmatpush.msra.mxu0 0.0
        %3146 = vmatpush.msra.mxu0 %v3125
        %3147 = vmatmul.f32.gmra.mxu0 %v3123
        %v3148 = vpop.f32.mrf.mxu0
        %v3149 = vadd.f32 0.0, %v3148
        %3150 = vdwg.mxu0
        %3151 = vmatpush.msra.mxu0 0.0
        %3152 = vmatpush.msra.mxu0 0.0
        %3153 = vmatpush.msra.mxu0 0.0
        %3154 = vmatpush.msra.mxu0 0.0
        %3155 = vmatpush.msra.mxu0 0.0
        %3156 = vmatpush.msra.mxu0 0.0
        %3157 = vmatpush.msra.mxu0 0.0
        %3158 = vmatpush.msra.mxu0 0.0
        %3159 = vmatpush.msra.mxu0 0.0
        %3160 = vmatpush.msra.mxu0 0.0
        %3161 = vmatpush.msra.mxu0 0.0
        %3162 = vmatpush.msra.mxu0 0.0
        %3163 = vmatpush.msra.mxu0 0.0
        %3164 = vmatpush.msra.mxu0 0.0
        %3165 = vmatpush.msra.mxu0 0.0
        %3166 = vmatpush.msra.mxu0 %v3127
        %3167 = vmatmul.f32.gmra.mxu0 %v3123
        %v3168 = vpop.f32.mrf.mxu0
        %v3169 = vadd.f32 0.0, %v3168
        %3170 = vdwg.mxu0
        %3171 = vmatpush.msra.mxu0 0.0
        %3172 = vmatpush.msra.mxu0 0.0
        %3173 = vmatpush.msra.mxu0 0.0
        %3174 = vmatpush.msra.mxu0 0.0
        %3175 = vmatpush.msra.mxu0 0.0
        %3176 = vmatpush.msra.mxu0 0.0
        %3177 = vmatpush.msra.mxu0 0.0
        %3178 = vmatpush.msra.mxu0 0.0
        %3179 = vmatpush.msra.mxu0 0.0
        %3180 = vmatpush.msra.mxu0 0.0
        %3181 = vmatpush.msra.mxu0 0.0
        %3182 = vmatpush.msra.mxu0 0.0
        %3183 = vmatpush.msra.mxu0 0.0
        %3184 = vmatpush.msra.mxu0 0.0
        %3185 = vmatpush.msra.mxu0 0.0
        %3186 = vmatpush.msra.mxu0 %v3129
        %3187 = vmatmul.f32.gmra.mxu0 %v3123
        %v3188 = vpop.f32.mrf.mxu0
        %v3189 = vadd.f32 0.0, %v3188
        %3190 = vdwg.mxu0
        %3193 = vst [vmem:[#allocation1] ss:$2 sm:$0xff] %v3099
        %s3194 = scalar_lea.vmem [#allocation1], 16
        %3195 = vst [vmem:[%s3194] ss:$2 sm:$0xff] %v3100
        %v3196 = vld.sshfl [vmem:[#allocation1] sm:$0xff pattern:$0x75316420]
        %v3197 = vld.sshfl [vmem:[#allocation1 + $0x8] sm:$0xff pattern:$0x75316420]
        %v3198 = vld.sshfl [vmem:[#allocation1 + $0x10] sm:$0xff pattern:$0x75316420]
        %3199 = vrot.lane.b32.xlu0 %v3196, 90
        %v3200 = vpop.permute.xlu0 %3199
        %3201 = vrot.lane.b32.xlu0 %v3197, 90
        %v3202 = vpop.permute.xlu0 %3201
        %3203 = vrot.lane.b32.xlu0 %v3198, 90
        %v3204 = vpop.permute.xlu0 %3203
        %v3205 = vsel %vm3119, %v3200, %v3202
        %v3206 = vsel %vm3119, %v3202, %v3204
        %v3208 = vsel %vm366, %v3104, 0
        %v3210 = vsel %vm370, %v3205, 0
        %v3212 = vsel %vm370, %v3206, 0
        %v3214 = vsel %vm370, %v3204, 0
        %3216 = vmatpush.msra.mxu0 0.0
        %3217 = vmatpush.msra.mxu0 0.0
        %3218 = vmatpush.msra.mxu0 0.0
        %3219 = vmatpush.msra.mxu0 0.0
        %3220 = vmatpush.msra.mxu0 0.0
        %3221 = vmatpush.msra.mxu0 0.0
        %3222 = vmatpush.msra.mxu0 0.0
        %3223 = vmatpush.msra.mxu0 0.0
        %3224 = vmatpush.msra.mxu0 0.0
        %3225 = vmatpush.msra.mxu0 0.0
        %3226 = vmatpush.msra.mxu0 0.0
        %3227 = vmatpush.msra.mxu0 0.0
        %3228 = vmatpush.msra.mxu0 0.0
        %3229 = vmatpush.msra.mxu0 0.0
        %3230 = vmatpush.msra.mxu0 0.0
        %3231 = vmatpush.msra.mxu0 %v3210
        %3232 = vmatmul.f32.gmra.mxu0 %v3208
        %v3233 = vpop.f32.mrf.mxu0
        %v3234 = vadd.f32 0.0, %v3233
        %3235 = vdwg.mxu0
        %3236 = vmatpush.msra.mxu0 0.0
        %3237 = vmatpush.msra.mxu0 0.0
        %3238 = vmatpush.msra.mxu0 0.0
        %3239 = vmatpush.msra.mxu0 0.0
        %3240 = vmatpush.msra.mxu0 0.0
        %3241 = vmatpush.msra.mxu0 0.0
        %3242 = vmatpush.msra.mxu0 0.0
        %3243 = vmatpush.msra.mxu0 0.0
        %3244 = vmatpush.msra.mxu0 0.0
        %3245 = vmatpush.msra.mxu0 0.0
        %3246 = vmatpush.msra.mxu0 0.0
        %3247 = vmatpush.msra.mxu0 0.0
        %3248 = vmatpush.msra.mxu0 0.0
        %3249 = vmatpush.msra.mxu0 0.0
        %3250 = vmatpush.msra.mxu0 0.0
        %3251 = vmatpush.msra.mxu0 %v3212
        %3252 = vmatmul.f32.gmra.mxu0 %v3208
        %v3253 = vpop.f32.mrf.mxu0
        %v3254 = vadd.f32 0.0, %v3253
        %3255 = vdwg.mxu0
        %3256 = vmatpush.msra.mxu0 0.0
        %3257 = vmatpush.msra.mxu0 0.0
        %3258 = vmatpush.msra.mxu0 0.0
        %3259 = vmatpush.msra.mxu0 0.0
        %3260 = vmatpush.msra.mxu0 0.0
        %3261 = vmatpush.msra.mxu0 0.0
        %3262 = vmatpush.msra.mxu0 0.0
        %3263 = vmatpush.msra.mxu0 0.0
        %3264 = vmatpush.msra.mxu0 0.0
        %3265 = vmatpush.msra.mxu0 0.0
        %3266 = vmatpush.msra.mxu0 0.0
        %3267 = vmatpush.msra.mxu0 0.0
        %3268 = vmatpush.msra.mxu0 0.0
        %3269 = vmatpush.msra.mxu0 0.0
        %3270 = vmatpush.msra.mxu0 0.0
        %3271 = vmatpush.msra.mxu0 %v3214
        %3272 = vmatmul.f32.gmra.mxu0 %v3208
        %v3273 = vpop.f32.mrf.mxu0
        %v3274 = vadd.f32 0.0, %v3273
        %3275 = vdwg.mxu0
        %3276 = vst [vmem:[#allocation1] ss:$2 sm:$0xff] %v3097
        %s3277 = scalar_lea.vmem [#allocation1], 16
        %3278 = vst [vmem:[%s3277] ss:$2 sm:$0xff] %v3098
        %v3279 = vld.sshfl [vmem:[#allocation1] sm:$0xff pattern:$0x75316420]
        %v3280 = vld.sshfl [vmem:[#allocation1 + $0x8] sm:$0xff pattern:$0x75316420]
        %v3281 = vld.sshfl [vmem:[#allocation1 + $0x10] sm:$0xff pattern:$0x75316420]
        %3282 = vrot.lane.b32.xlu0 %v3279, 90
        %v3283 = vpop.permute.xlu0 %3282
        %3284 = vrot.lane.b32.xlu0 %v3280, 90
        %v3285 = vpop.permute.xlu0 %3284
        %3286 = vrot.lane.b32.xlu0 %v3281, 90
        %v3287 = vpop.permute.xlu0 %3286
        %v3288 = vsel %vm3119, %v3283, %v3285
        %v3289 = vsel %vm3119, %v3285, %v3287
        %v3290 = vsel %vm370, %v3288, 0
        %v3292 = vsel %vm370, %v3289, 0
        %v3294 = vsel %vm370, %v3287, 0
        %3296 = vmatpush.msra.mxu0 0.0
        %3297 = vmatpush.msra.mxu0 0.0
        %3298 = vmatpush.msra.mxu0 0.0
        %3299 = vmatpush.msra.mxu0 0.0
        %3300 = vmatpush.msra.mxu0 0.0
        %3301 = vmatpush.msra.mxu0 0.0
        %3302 = vmatpush.msra.mxu0 0.0
        %3303 = vmatpush.msra.mxu0 0.0
        %3304 = vmatpush.msra.mxu0 0.0
        %3305 = vmatpush.msra.mxu0 0.0
        %3306 = vmatpush.msra.mxu0 0.0
        %3307 = vmatpush.msra.mxu0 0.0
        %3308 = vmatpush.msra.mxu0 0.0
        %3309 = vmatpush.msra.mxu0 0.0
        %3310 = vmatpush.msra.mxu0 0.0
        %3311 = vmatpush.msra.mxu0 %v3290
        %3312 = vmatmul.f32.gmra.mxu0 %v3208
        %v3313 = vpop.f32.mrf.mxu0
        %v3314 = vadd.f32 0.0, %v3313
        %3315 = vdwg.mxu0
        %3316 = vmatpush.msra.mxu0 0.0
        %3317 = vmatpush.msra.mxu0 0.0
        %3318 = vmatpush.msra.mxu0 0.0
        %3319 = vmatpush.msra.mxu0 0.0
        %3320 = vmatpush.msra.mxu0 0.0
        %3321 = vmatpush.msra.mxu0 0.0
        %3322 = vmatpush.msra.mxu0 0.0
        %3323 = vmatpush.msra.mxu0 0.0
        %3324 = vmatpush.msra.mxu0 0.0
        %3325 = vmatpush.msra.mxu0 0.0
        %3326 = vmatpush.msra.mxu0 0.0
        %3327 = vmatpush.msra.mxu0 0.0
        %3328 = vmatpush.msra.mxu0 0.0
        %3329 = vmatpush.msra.mxu0 0.0
        %3330 = vmatpush.msra.mxu0 0.0
        %3331 = vmatpush.msra.mxu0 %v3292
        %3332 = vmatmul.f32.gmra.mxu0 %v3208
        %v3333 = vpop.f32.mrf.mxu0
        %v3334 = vadd.f32 0.0, %v3333
        %3335 = vdwg.mxu0
        %3336 = vmatpush.msra.mxu0 0.0
        %3337 = vmatpush.msra.mxu0 0.0
        %3338 = vmatpush.msra.mxu0 0.0
        %3339 = vmatpush.msra.mxu0 0.0
        %3340 = vmatpush.msra.mxu0 0.0
        %3341 = vmatpush.msra.mxu0 0.0
        %3342 = vmatpush.msra.mxu0 0.0
        %3343 = vmatpush.msra.mxu0 0.0
        %3344 = vmatpush.msra.mxu0 0.0
        %3345 = vmatpush.msra.mxu0 0.0
        %3346 = vmatpush.msra.mxu0 0.0
        %3347 = vmatpush.msra.mxu0 0.0
        %3348 = vmatpush.msra.mxu0 0.0
        %3349 = vmatpush.msra.mxu0 0.0
        %3350 = vmatpush.msra.mxu0 0.0
        %3351 = vmatpush.msra.mxu0 %v3294
        %3352 = vmatmul.f32.gmra.mxu0 %v3208
        %v3353 = vpop.f32.mrf.mxu0
        %v3354 = vadd.f32 0.0, %v3353
        %3355 = vdwg.mxu0
        %v3356 = vsub.f32 %v3149, %v3234
        %v3357 = vsub.f32 %v3169, %v3254
        %v3358 = vsub.f32 %v3189, %v3274
        %3359 = vst [vmem:[#allocation1] ss:$2 sm:$0xff] %v3099
        %s3360 = scalar_lea.vmem [#allocation1], 16
        %3361 = vst [vmem:[%s3360] ss:$2 sm:$0xff] %v3100
        %v3362 = vld.sshfl [vmem:[#allocation1] sm:$0xff pattern:$0x75316420]
        %v3363 = vld.sshfl [vmem:[#allocation1 + $0x8] sm:$0xff pattern:$0x75316420]
        %v3364 = vld.sshfl [vmem:[#allocation1 + $0x10] sm:$0xff pattern:$0x75316420]
        %3365 = vrot.lane.b32.xlu0 %v3362, 90
        %v3366 = vpop.permute.xlu0 %3365
        %3367 = vrot.lane.b32.xlu0 %v3363, 90
        %v3368 = vpop.permute.xlu0 %3367
        %3369 = vrot.lane.b32.xlu0 %v3364, 90
        %v3370 = vpop.permute.xlu0 %3369
        %v3371 = vsel %vm3119, %v3366, %v3368
        %v3372 = vsel %vm3119, %v3368, %v3370
        %v3373 = vsel %vm370, %v3371, 0
        %v3375 = vsel %vm370, %v3372, 0
        %v3377 = vsel %vm370, %v3370, 0
        %3379 = vmatpush.msra.mxu0 0.0
        %3380 = vmatpush.msra.mxu0 0.0
        %3381 = vmatpush.msra.mxu0 0.0
        %3382 = vmatpush.msra.mxu0 0.0
        %3383 = vmatpush.msra.mxu0 0.0
        %3384 = vmatpush.msra.mxu0 0.0
        %3385 = vmatpush.msra.mxu0 0.0
        %3386 = vmatpush.msra.mxu0 0.0
        %3387 = vmatpush.msra.mxu0 0.0
        %3388 = vmatpush.msra.mxu0 0.0
        %3389 = vmatpush.msra.mxu0 0.0
        %3390 = vmatpush.msra.mxu0 0.0
        %3391 = vmatpush.msra.mxu0 0.0
        %3392 = vmatpush.msra.mxu0 0.0
        %3393 = vmatpush.msra.mxu0 0.0
        %3394 = vmatpush.msra.mxu0 %v3373
        %3395 = vmatmul.f32.gmra.mxu0 %v3123
        %v3396 = vpop.f32.mrf.mxu0
        %v3397 = vadd.f32 %v3314, %v3396
        %3398 = vdwg.mxu0
        %3399 = vmatpush.msra.mxu0 0.0
        %3400 = vmatpush.msra.mxu0 0.0
        %3401 = vmatpush.msra.mxu0 0.0
        %3402 = vmatpush.msra.mxu0 0.0
        %3403 = vmatpush.msra.mxu0 0.0
        %3404 = vmatpush.msra.mxu0 0.0
        %3405 = vmatpush.msra.mxu0 0.0
        %3406 = vmatpush.msra.mxu0 0.0
        %3407 = vmatpush.msra.mxu0 0.0
        %3408 = vmatpush.msra.mxu0 0.0
        %3409 = vmatpush.msra.mxu0 0.0
        %3410 = vmatpush.msra.mxu0 0.0
        %3411 = vmatpush.msra.mxu0 0.0
        %3412 = vmatpush.msra.mxu0 0.0
        %3413 = vmatpush.msra.mxu0 0.0
        %3414 = vmatpush.msra.mxu0 %v3375
        %3415 = vmatmul.f32.gmra.mxu0 %v3123
        %v3416 = vpop.f32.mrf.mxu0
        %v3417 = vadd.f32 %v3334, %v3416
        %3418 = vdwg.mxu0
        %3419 = vmatpush.msra.mxu0 0.0
        %3420 = vmatpush.msra.mxu0 0.0
        %3421 = vmatpush.msra.mxu0 0.0
        %3422 = vmatpush.msra.mxu0 0.0
        %3423 = vmatpush.msra.mxu0 0.0
        %3424 = vmatpush.msra.mxu0 0.0
        %3425 = vmatpush.msra.mxu0 0.0
        %3426 = vmatpush.msra.mxu0 0.0
        %3427 = vmatpush.msra.mxu0 0.0
        %3428 = vmatpush.msra.mxu0 0.0
        %3429 = vmatpush.msra.mxu0 0.0
        %3430 = vmatpush.msra.mxu0 0.0
        %3431 = vmatpush.msra.mxu0 0.0
        %3432 = vmatpush.msra.mxu0 0.0
        %3433 = vmatpush.msra.mxu0 0.0
        %3434 = vmatpush.msra.mxu0 %v3377
        %3435 = vmatmul.f32.gmra.mxu0 %v3123
        %v3436 = vpop.f32.mrf.mxu0
        %v3437 = vadd.f32 %v3354, %v3436
        %3438 = vdwg.mxu0
        %v3439 = vadd.f32 %v3091, %v3356
        %v3440 = vadd.f32 %v3092, %v3357
        %v3441 = vadd.f32 %v3093, %v3358
        %v3442 = vadd.f32 %v3094, %v3397
        %v3443 = vadd.f32 %v3095, %v3417
        %v3444 = vadd.f32 %v3096, %v3437
        %v3445 = vld [vmem:[%s4] sm:$0xff]
        %3447 = vset.pattern.permute.xlu0 0
        %3448 = vperm.xlu0 %3447, %v3445
        %v3449 = vpop.permute.xlu0 %3448
        %v3451 = vadd.f32 %v3439, %v3449
        %v3452 = vadd.f32 %v3440, %v3449
        %v3453 = vadd.f32 %v3441, %v3449
        %3454 = vst [vmem:[%s326] sm:$0xff] %v3451
        %3455 = vst [vmem:[%s326 + $0x8] sm:$0xff] %v3452
        %vm3456 = vcmask 261120
        %3457 = vst.msk [vmem:[%s326 + $0x10] sm:$0xff] %vm3456, %v3453
        %v3458 = vld [vmem:[%s5] sm:$0xff]
        %3460 = vset.pattern.permute.xlu0 0
        %3461 = vperm.xlu0 %3460, %v3458
        %v3462 = vpop.permute.xlu0 %3461
        %v3464 = vadd.f32 %v3442, %v3462
        %v3465 = vadd.f32 %v3443, %v3462
        %v3466 = vadd.f32 %v3444, %v3462
        %3467 = vst [vmem:[%s333] sm:$0xff] %v3464
        %3468 = vst [vmem:[%s333 + $0x8] sm:$0xff] %v3465
        %3469 = vst.msk [vmem:[%s333 + $0x10] sm:$0xff] %vm3456, %v3466
        %s3470 = sand.u32 %s187, 1
        %s3471 = scalar_lea.sflag [#allocation3], %s3470
        %s3472 = sand.u32 %s187, 1
        %s3473 = smul.addr %s3472, 24
        %s3474 = scalar_lea.vmem [#allocation2], %s3473
        %s3475 = sand.u32 %s215, 1
        %s3476 = scalar_lea.sflag [#allocation5], %s3475
        %s3477 = sand.u32 %s215, 1
        %s3478 = smul.addr %s3477, 24
        %s3479 = scalar_lea.vmem [#allocation4], %s3478
        // Predicated region
        $region45: #{tpu_custom_call.1} parent=43 // pred_check
          %p3480 = pneg %p197
        $region46: #{tpu_custom_call.1} parent=43 // pred_check_branch
          %3482 = sbr.rel (%p3480) target = $region48
        $region47: #{tpu_custom_call.1} parent=43 // pred_region
          %3484 = vsyncadd %s3471, 0
          %s3485 = smul.addr %s30, 3
          %s3486 = smul.addr %s29, 3
          %s3487 = sadd.s32 %s3485, %s3486
          %s3488 = smul.addr %s3487, 8
          %s3489 = scalar_lea.hbm %s6, %s3488
          %s3491 = sshll.u32 %s3474, 4
          %s3492 = int_to_ptr.vmem [resolvable:$true] %s3491
          %s3493 = sshll.u32 %s3489, 4
          %s3494 = int_to_ptr.hbm [resolvable:$true] %s3493
          %3496 = dma.vmem_to_hbm [thread:$0]  %s3492, 384, %s3494, %s3471
        $region48: #{tpu_custom_call.1} parent=43 // pred_fallthru
          _
        // Predicated region
        $region49: #{tpu_custom_call.1} parent=43 // pred_check
          %p3497 = pneg %p225
        $region50: #{tpu_custom_call.1} parent=43 // pred_check_branch
          %3499 = sbr.rel (%p3497) target = $region52
        $region51: #{tpu_custom_call.1} parent=43 // pred_region
          %3501 = vsyncadd %s3476, 0
          %s3502 = smul.addr %s30, 3
          %s3503 = smul.addr %s29, 3
          %s3504 = sadd.s32 %s3502, %s3503
          %s3505 = smul.addr %s3504, 8
          %s3506 = scalar_lea.hbm %s7, %s3505
          %s3508 = sshll.u32 %s3479, 4
          %s3509 = int_to_ptr.vmem [resolvable:$true] %s3508
          %s3510 = sshll.u32 %s3506, 4
          %s3511 = int_to_ptr.hbm [resolvable:$true] %s3510
          %3513 = dma.vmem_to_hbm [thread:$0]  %s3509, 384, %s3511, %s3476
        $region52: #{tpu_custom_call.1} parent=43 // pred_fallthru
          _
      $region44: #{tpu_custom_call.1} parent=5 // pred_fallthru
        _
      %p3514 = scmp.le.s32.totalorder 2, %s20
      // Predicated region
      $region53: #{tpu_custom_call.1} parent=5 // pred_check
        %p3515 = pneg %p3514
      $region54: #{tpu_custom_call.1} parent=5 // pred_check_branch
        %3517 = sbr.rel (%p3515) target = $region56
      $region55: #{tpu_custom_call.1} parent=5 // pred_region
        %s3518 = ssub.s32 %s20, 2
        // Predicated region
        $region57: #{tpu_custom_call.1} parent=55 // pred_check
          %p3519 = pneg %p203
        $region58: #{tpu_custom_call.1} parent=55 // pred_check_branch
          %3521 = sbr.rel (%p3519) target = $region60
        $region59: #{tpu_custom_call.1} parent=55 // pred_region
          %s3522 = sand.u32 %s188, 1
          %s3523 = scalar_lea.sflag [#allocation3], %s3522
          %s3524 = sand.u32 %s188, 1
          %s3525 = smul.addr %s3524, 24
          %s3526 = scalar_lea.vmem [#allocation2], %s3525
          %3528 = dma.done %s3523, 384
        $region60: #{tpu_custom_call.1} parent=55 // pred_fallthru
          _
        // Predicated region
        $region61: #{tpu_custom_call.1} parent=55 // pred_check
          %p3529 = pneg %p231
        $region62: #{tpu_custom_call.1} parent=55 // pred_check_branch
          %3531 = sbr.rel (%p3529) target = $region64
        $region63: #{tpu_custom_call.1} parent=55 // pred_region
          %s3532 = sand.u32 %s216, 1
          %s3533 = scalar_lea.sflag [#allocation5], %s3532
          %s3534 = sand.u32 %s216, 1
          %s3535 = smul.addr %s3534, 24
          %s3536 = scalar_lea.vmem [#allocation4], %s3535
          %3538 = dma.done %s3533, 384
        $region64: #{tpu_custom_call.1} parent=55 // pred_fallthru
          _
      $region56: #{tpu_custom_call.1} parent=5 // pred_fallthru
        _
    $region6: #{tpu_custom_call.1} parent=1 // loop_footer
      %s24 = sadd.s32 1, %s20
    $region7: #{tpu_custom_call.1} parent=1 // loop_footer_branch
      %19 = sbr.rel target = $region3
    $region8: #{tpu_custom_call.1} parent=1 // loop_exit
      _
    %3539 = vsyncpa [#allocation3], 1
    %s3540 = scalar_lea.sflag [#allocation3], 1
    %3541 = vsyncpa %s3540, 1
    %3542 = vsyncpa [#allocation5], 1
    %s3543 = scalar_lea.sflag [#allocation5], 1
    %3544 = vsyncpa %s3543, 1

</llo_original>
